<compile_context>
chip_gen: v7x
topology: tpu7x:2x2x1
jax: 0.10.0
libtpu: 0.0.40
codegen_flags: <defaults>
</compile_context>

<pallas_src>
import functools

import numpy as np
import jax
import jax.numpy as jnp
from jax.experimental import pallas as pl
from jax.experimental.pallas import tpu as pltpu


# ----------------------------- fused conv-path kernel ------------------------------

def _fused_conv_kernel(*refs, H0, W0):
    """One batch element: input fill + 4 stages ([pool] + 2x(conv3x3+BN+ReLU))."""
    assert len(refs) == 45
    x_ref, sin_ref = refs[0], refs[1]
    w_refs = refs[2:10]          # (3, Cout, 3*Cin) bf16 per conv
    s_refs = refs[10:18]         # (Cout, 1) f32 folded-BN scale
    b_refs = refs[18:26]         # (Cout, 1) f32 folded-BN bias
    m_refs = refs[26:30]         # (1, M_k) f32 interior-column masks, per stage
    sel_refs = refs[30:36]       # [SE1, SO1, SE2, SO2, SE3, SO3] bf16 pool selectors
    o_ref = refs[36]             # (OC, H4*W4) f32
    pad_refs = refs[37:45]       # 8x (3*Cin, (H+3)*(W+2)) bf16 replicated pad buffers

    bf16 = jnp.bfloat16
    Hs = [H0 >> k for k in range(4)]
    Ws = [W0 >> k for k in range(4)]

    def store_rep(pad, val, C, W, M):
        # `val` is a masked (C, M) bf16 activation in flat padded layout (j = y*(W+2)+x,
        # zeros at the 2 junk columns per row).  Write the three kx-shifted replicas and
        # zero only the thin head/tail strips the bulk stores do not cover.
        pad[:, pl.ds(0, W + 3)] = jnp.zeros((3 * C, W + 3), bf16)
        pad[:, pl.ds(M + W + 1, 2 * W + 5)] = jnp.zeros((3 * C, 2 * W + 5), bf16)
        for kx in range(3):
            pad[pl.ds(kx * C, C), pl.ds(W + 3 - kx, M)] = val

    def conv(pad, w_ref, s_ref, b_ref, W, M):
        # 3x3 conv with the 3 kx taps folded into K: 3 matmuls, each RHS a single
        # contiguous lane-window slice of the replicated pad buffer.
        acc = jnp.dot(w_ref[0], pad[:, pl.ds(0, M)],
                      preferred_element_type=jnp.float32)
        acc = acc + jnp.dot(w_ref[1], pad[:, pl.ds(W + 2, M)],
                            preferred_element_type=jnp.float32)
        acc = acc + jnp.dot(w_ref[2], pad[:, pl.ds(2 * (W + 2), M)],
                            preferred_element_type=jnp.float32)
        # folded BatchNorm (eval) + ReLU, f32 epilogue
        return jnp.maximum(acc * s_ref[...] + b_ref[...], 0.0)      # (Cout, M) f32

    def pool2x2(epi, se_ref, so_ref, W, M):
        # Row-pair max on the VPU, then column selection / re-padding for the next
        # stage via two exact 0/1 bf16 MXU matmuls (junk columns come out exactly 0).
        Wp2 = W + 2
        mf = jnp.maximum(epi[:, : M - Wp2], epi[:, Wp2:]).astype(bf16)
        a = jnp.dot(mf, se_ref[...], preferred_element_type=jnp.float32)
        b = jnp.dot(mf, so_ref[...], preferred_element_type=jnp.float32)
        return jnp.maximum(a, b)                                     # (C, M_next) f32

    # ---- input fill: NCHW-flat (3, H*W) -> flat padded layout via exact 0/1 matmul ----
    H, W = Hs[0], Ws[0]
    M = H * (W + 2)
    xv = jnp.dot(x_ref[...].astype(bf16), sin_ref[...],
                 preferred_element_type=jnp.float32)                 # (3, M)
    store_rep(pad_refs[0], xv.astype(bf16), 3, W, M)

    # ---- 4 fused stages ----
    for k in range(4):
        H, W = Hs[k], Ws[k]
        M = H * (W + 2)
        mask = m_refs[k][...]                                        # (1, M) f32
        epi1 = conv(pad_refs[2 * k], w_refs[2 * k], s_refs[2 * k], b_refs[2 * k], W, M)
        store_rep(pad_refs[2 * k + 1], (epi1 * mask).astype(bf16), epi1.shape[0], W, M)
        epi2 = conv(pad_refs[2 * k + 1], w_refs[2 * k + 1],
                    s_refs[2 * k + 1], b_refs[2 * k + 1], W, M)
        if k < 3:
            Hn, Wn = Hs[k + 1], Ws[k + 1]
            Mn = Hn * (Wn + 2)
            pooled = pool2x2(epi2, sel_refs[2 * k], sel_refs[2 * k + 1], W, M)
            store_rep(pad_refs[2 * k + 2], pooled.astype(bf16), epi2.shape[0], Wn, Mn)
        else:
            # final stage: drop the junk columns and write NCHW-flat (Cout, H*W)
            for y in range(H):
                o_ref[:, pl.ds(y * W, W)] = (
                    epi2[:, y * (W + 2): y * (W + 2) + W].astype(o_ref.dtype))


# ----------------------------- downsample kernel (verified rev-1) ------------------------------

def _downsample_kernel(r3_ref, r4_ref, o_ref):
    """Bilinear 1/8 downsample from the two centre rows of every 8x8 block.

    r3_ref, r4_ref: (C, H8, W8, 8) -- rows 3 / 4 (mod 8), all columns
    o_ref         : (C, H8, W8)
    """
    a = r3_ref[...]
    b = r4_ref[...]
    o_ref[...] = 0.25 * (a[..., 3] + a[..., 4] + b[..., 3] + b[..., 4])


# ------------------------------- host-side helpers -----------------------------------

def _const_spec(shape):
    n = len(shape)
    return pl.BlockSpec(tuple(shape), lambda i, n=n: (0,) * n)


def _input_select(H, W):
    """(H*W, H*(W+2)) 0/1 bf16: scatter NCHW-flat pixels into the flat padded layout."""
    Wp2 = W + 2
    S = np.zeros((H * W, H * Wp2), np.float32)
    for y in range(H):
        for x in range(W):
            S[y * W + x, y * Wp2 + x] = 1.0
    return jnp.asarray(S, jnp.bfloat16)


def _col_mask(H, W):
    """(1, H*(W+2)) f32: 1 at real columns, 0 at the 2 junk columns per row."""
    Wp2 = W + 2
    m = (np.arange(H * Wp2) % Wp2) < W
    return jnp.asarray(m.reshape(1, H * Wp2).astype(np.float32))


def _pool_select(H, W):
    """Selection matrices for 2x2 maxpool (H,W)->(H//2,W//2) in flat padded layout."""
    Wp2 = W + 2
    Hn, Wn = H // 2, W // 2
    Wn2 = Wn + 2
    Mp = (H - 1) * Wp2
    Mn = Hn * Wn2
    SE = np.zeros((Mp, Mn), np.float32)
    SO = np.zeros((Mp, Mn), np.float32)
    for Y in range(Hn):
        for X in range(Wn):
            jn = Y * Wn2 + X
            j = 2 * Y * Wp2 + 2 * X
            SE[j, jn] = 1.0
            SO[j + 1, jn] = 1.0
    return jnp.asarray(SE, jnp.bfloat16), jnp.asarray(SO, jnp.bfloat16)


# ------------------------------- wrappers -----------------------------------

def pre_gambler_conv_forward(x_nchw, params):
    """x: (N, 3, H, W) f32 NCHW -> (N, out_channel, H//8, W//8) f32 NCHW."""
    N, C0, H, W = x_nchw.shape
    assert C0 == 3 and H % 8 == 0 and W % 8 == 0
    OC = params[-1]['lhs'].shape[1]
    Hs = [H >> k for k in range(4)]
    Ws = [W >> k for k in range(4)]

    aux = [_input_select(H, W)]
    aux += [p['lhs'] for p in params]
    aux += [p['scale'] for p in params]
    aux += [p['bias'] for p in params]
    aux += [_col_mask(Hs[k], Ws[k]) for k in range(4)]
    for k in range(3):
        se, so = _pool_select(Hs[k], Ws[k])
        aux += [se, so]

    in_specs = [pl.BlockSpec((pl.Squeezed(), 3, H * W), lambda n: (n, 0, 0))]
    in_specs += [_const_spec(a.shape) for a in aux]

    cins = [p['lhs'].shape[2] // 3 for p in params]
    scratch = [pltpu.VMEM((3 * cins[i], (Hs[i // 2] + 3) * (Ws[i // 2] + 2)),
                          jnp.bfloat16) for i in range(8)]

    x_flat = x_nchw.reshape(N, 3, H * W).astype(jnp.float32)     # metadata-only reshape
    out = pl.pallas_call(
        functools.partial(_fused_conv_kernel, H0=H, W0=W),
        out_shape=jax.ShapeDtypeStruct((N, OC, Hs[3] * Ws[3]), jnp.float32),
        grid=(N,),
        in_specs=in_specs,
        out_specs=pl.BlockSpec((pl.Squeezed(), OC, Hs[3] * Ws[3]), lambda n: (n, 0, 0)),
        scratch_shapes=scratch,
        compiler_params=pltpu.CompilerParams(dimension_semantics=("parallel",)),
    )(x_flat, *aux)
    return out.reshape(N, OC, Hs[3], Ws[3])                      # metadata-only reshape


def bilinear_downsample_x8(x_nchw):
    """F.interpolate(scale=1/8, bilinear, align_corners=False); requires H, W % 8 == 0.

    Source coord = 8*i + 3.5 -> mean of taps {3,4}x{3,4} of each 8x8 block.
    Only rows 3 and 4 (mod 8) are DMA'd via the BlockSpec index maps.
    """
    N, C, H, W = x_nchw.shape
    assert H % 8 == 0 and W % 8 == 0
    H8, W8 = H // 8, W // 8
    xr = x_nchw.reshape(N, C, H8, 8, W8, 8)        # metadata-only reshape

    def row_spec(roff):
        return pl.BlockSpec(
            (pl.Squeezed(), C, H8, pl.Squeezed(), W8, 8),
            lambda n, roff=roff: (n, 0, 0, roff, 0, 0))

    return pl.pallas_call(
        _downsample_kernel,
        out_shape=jax.ShapeDtypeStruct((N, C, H8, W8), x_nchw.dtype),
        grid=(N,),
        in_specs=[row_spec(3), row_spec(4)],
        out_specs=pl.BlockSpec((pl.Squeezed(), C, H8, W8), lambda n: (n, 0, 0, 0)),
        compiler_params=pltpu.CompilerParams(dimension_semantics=("parallel",)),
    )(xr, xr)


# --------------------------- parameter construction -------------------------

def _conv_bn_params(key, cin, cout, eps=1e-5):
    k = jax.random.split(key, 6)
    w = jax.random.normal(k[0], (3, 3, cin, cout), jnp.float32) / np.sqrt(9.0 * cin)
    conv_b = 0.05 * jax.random.normal(k[1], (cout,), jnp.float32)
    gamma = 1.0 + 0.1 * jax.random.normal(k[2], (cout,), jnp.float32)
    beta = 0.05 * jax.random.normal(k[3], (cout,), jnp.float32)
    run_mean = 0.05 * jax.random.normal(k[4], (cout,), jnp.float32)
    run_var = 1.0 + 0.1 * jax.random.uniform(k[5], (cout,), jnp.float32)
    scale = gamma / jnp.sqrt(run_var + eps)                   # BN (eval) folded
    bias = (conv_b - run_mean) * scale + beta
    w_bf16 = w.astype(jnp.bfloat16)                           # bf16 MXU weights
    # lhs[ky, co, kx*cin + ci] = w[ky, kx, ci, co]   (kx taps folded into K)
    lhs = jnp.transpose(w_bf16, (0, 3, 1, 2)).reshape(3, cout, 3 * cin)
    return {'lhs': lhs,
            'scale': scale.reshape(cout, 1),
            'bias': bias.reshape(cout, 1),
            'w_hwio': w_bf16}


def init_pre_gambler_params(key, out_channel):
    # DoubleConv(3,8), Down(8,16), Down(16,32), Down(32,out_channel)
    plan = [(3, 8), (8, 8),
            (8, 16), (16, 16),
            (16, 32), (32, 32),
            (32, out_channel), (out_channel, out_channel)]
    keys = jax.random.split(key, len(plan))
    return [_conv_bn_params(k, ci, co) for k, (ci, co) in zip(keys, plan)]


# --------------------------------- forward ----------------------------------

def pre_gambler_image_forward(input_images, params=None, image_mode='conv'):
    if image_mode == 'downsample':
        return bilinear_downsample_x8(input_images)
    elif image_mode == 'conv':
        return pre_gambler_conv_forward(input_images, params)
    else:
        raise Exception('Only these two modes are available')


conv_forward = jax.jit(lambda x, p: pre_gambler_image_forward(x, p, 'conv'))
down_forward = jax.jit(lambda x: pre_gambler_image_forward(x, None, 'downsample'))


# ------------------------------ pure-JAX reference ---------------------------

def _ref_conv_bn_relu(x, p):
    # Same precision policy as the kernel: bf16 operands, f32 accumulation/epilogue.
    y = jax.lax.conv_general_dilated(
        x.astype(jnp.bfloat16), p['w_hwio'], window_strides=(1, 1), padding='SAME',
        dimension_numbers=('NHWC', 'HWIO', 'NHWC'),
        preferred_element_type=jnp.float32)
    return jnp.maximum(y * p['scale'].reshape(1, 1, 1, -1)
                       + p['bias'].reshape(1, 1, 1, -1), 0.0)


def _ref_maxpool2(x):
    N, H, W, C = x.shape
    return x.reshape(N, H // 2, 2, W // 2, 2, C).max(axis=(2, 4))


def ref_forward_conv(x_nchw, params):
    x = jnp.transpose(x_nchw, (0, 2, 3, 1)).astype(jnp.float32)
    x = _ref_conv_bn_relu(x, params[0])
    x = _ref_conv_bn_relu(x, params[1])
    for i in range(3):
        x = _ref_maxpool2(x)
        x = _ref_conv_bn_relu(x, params[2 + 2 * i])
        x = _ref_conv_bn_relu(x, params[3 + 2 * i])
    return jnp.transpose(x, (0, 3, 1, 2))


def ref_forward_down(x_nchw):
    return 0.25 * (x_nchw[:, :, 3::8, 3::8] + x_nchw[:, :, 3::8, 4::8] +
                   x_nchw[:, :, 4::8, 3::8] + x_nchw[:, :, 4::8, 4::8])


# ----------------------------------- main ------------------------------------

if __name__ == "__main__":
    key = jax.random.PRNGKey(0)
    kx, kp = jax.random.split(key)
    x = jax.random.normal(kx, (2, 3, 16, 16), jnp.float32)      # NCHW, like PyTorch
    out_channel = 32
    params = init_pre_gambler_params(kp, out_channel)

    y_conv = jax.block_until_ready(conv_forward(x, params))     # image_mode='conv'
    y_down = jax.block_until_ready(down_forward(x))             # image_mode='downsample'

    assert y_conv.shape == (2, out_channel, 2, 2), y_conv.shape
    assert y_down.shape == (2, 3, 2, 2), y_down.shape

    np.testing.assert_allclose(np.asarray(y_conv),
                               np.asarray(ref_forward_conv(x, params)),
                               rtol=2e-3, atol=2e-3)
    np.testing.assert_allclose(np.asarray(y_down),
                               np.asarray(ref_forward_down(x)),
                               rtol=1e-5, atol=1e-6)

    print("KERNEL_OK")
</pallas_src>

<mosaic_0001>
module attributes {stable_mosaic.version = 11 : i64} {
  func.func @_fused_conv_kernel(%arg0: i32, %arg1: memref<1x3x256xf32, #tpu.memory_space<vmem>>, %arg2: memref<256x288xbf16, #tpu.memory_space<vmem>>, %arg3: memref<3x8x9xbf16, #tpu.memory_space<vmem>>, %arg4: memref<3x8x24xbf16, #tpu.memory_space<vmem>>, %arg5: memref<3x16x24xbf16, #tpu.memory_space<vmem>>, %arg6: memref<3x16x48xbf16, #tpu.memory_space<vmem>>, %arg7: memref<3x32x48xbf16, #tpu.memory_space<vmem>>, %arg8: memref<3x32x96xbf16, #tpu.memory_space<vmem>>, %arg9: memref<3x32x96xbf16, #tpu.memory_space<vmem>>, %arg10: memref<3x32x96xbf16, #tpu.memory_space<vmem>>, %arg11: memref<8x1xf32, #tpu.memory_space<vmem>>, %arg12: memref<8x1xf32, #tpu.memory_space<vmem>>, %arg13: memref<16x1xf32, #tpu.memory_space<vmem>>, %arg14: memref<16x1xf32, #tpu.memory_space<vmem>>, %arg15: memref<32x1xf32, #tpu.memory_space<vmem>>, %arg16: memref<32x1xf32, #tpu.memory_space<vmem>>, %arg17: memref<32x1xf32, #tpu.memory_space<vmem>>, %arg18: memref<32x1xf32, #tpu.memory_space<vmem>>, %arg19: memref<8x1xf32, #tpu.memory_space<vmem>>, %arg20: memref<8x1xf32, #tpu.memory_space<vmem>>, %arg21: memref<16x1xf32, #tpu.memory_space<vmem>>, %arg22: memref<16x1xf32, #tpu.memory_space<vmem>>, %arg23: memref<32x1xf32, #tpu.memory_space<vmem>>, %arg24: memref<32x1xf32, #tpu.memory_space<vmem>>, %arg25: memref<32x1xf32, #tpu.memory_space<vmem>>, %arg26: memref<32x1xf32, #tpu.memory_space<vmem>>, %arg27: memref<1x288xf32, #tpu.memory_space<vmem>>, %arg28: memref<1x80xf32, #tpu.memory_space<vmem>>, %arg29: memref<1x24xf32, #tpu.memory_space<vmem>>, %arg30: memref<1x8xf32, #tpu.memory_space<vmem>>, %arg31: memref<270x80xbf16, #tpu.memory_space<vmem>>, %arg32: memref<270x80xbf16, #tpu.memory_space<vmem>>, %arg33: memref<70x24xbf16, #tpu.memory_space<vmem>>, %arg34: memref<70x24xbf16, #tpu.memory_space<vmem>>, %arg35: memref<18x8xbf16, #tpu.memory_space<vmem>>, %arg36: memref<18x8xbf16, #tpu.memory_space<vmem>>, %arg37: memref<1x32x4xf32, #tpu.memory_space<vmem>>, %arg38: memref<9x342xbf16, #tpu.memory_space<vmem>>, %arg39: memref<24x342xbf16, #tpu.memory_space<vmem>>, %arg40: memref<24x110xbf16, #tpu.memory_space<vmem>>, %arg41: memref<48x110xbf16, #tpu.memory_space<vmem>>, %arg42: memref<48x42xbf16, #tpu.memory_space<vmem>>, %arg43: memref<96x42xbf16, #tpu.memory_space<vmem>>, %arg44: memref<96x20xbf16, #tpu.memory_space<vmem>>, %arg45: memref<96x20xbf16, #tpu.memory_space<vmem>>) attributes {dimension_semantics = [#tpu.dimension_semantics<parallel>], iteration_bounds = array<i64: 2>, scalar_prefetch = 0 : i64, scratch_operands = 8 : i64, tpu.core_type = #tpu.core_type<tc>, window_params = [{transform_indices = @transform_0, window_bounds = array<i64: 1, 3, 256>}, {pipeline_mode = #tpu.pipeline_mode<synchronous>, transform_indices = @transform_1, window_bounds = array<i64: 256, 288>}, {pipeline_mode = #tpu.pipeline_mode<synchronous>, transform_indices = @transform_2, window_bounds = array<i64: 3, 8, 9>}, {pipeline_mode = #tpu.pipeline_mode<synchronous>, transform_indices = @transform_3, window_bounds = array<i64: 3, 8, 24>}, {pipeline_mode = #tpu.pipeline_mode<synchronous>, transform_indices = @transform_4, window_bounds = array<i64: 3, 16, 24>}, {pipeline_mode = #tpu.pipeline_mode<synchronous>, transform_indices = @transform_5, window_bounds = array<i64: 3, 16, 48>}, {pipeline_mode = #tpu.pipeline_mode<synchronous>, transform_indices = @transform_6, window_bounds = array<i64: 3, 32, 48>}, {pipeline_mode = #tpu.pipeline_mode<synchronous>, transform_indices = @transform_7, window_bounds = array<i64: 3, 32, 96>}, {pipeline_mode = #tpu.pipeline_mode<synchronous>, transform_indices = @transform_8, window_bounds = array<i64: 3, 32, 96>}, {pipeline_mode = #tpu.pipeline_mode<synchronous>, transform_indices = @transform_9, window_bounds = array<i64: 3, 32, 96>}, {pipeline_mode = #tpu.pipeline_mode<synchronous>, transform_indices = @transform_10, window_bounds = array<i64: 8, 1>}, {pipeline_mode = #tpu.pipeline_mode<synchronous>, transform_indices = @transform_11, window_bounds = array<i64: 8, 1>}, {pipeline_mode = #tpu.pipeline_mode<synchronous>, transform_indices = @transform_12, window_bounds = array<i64: 16, 1>}, {pipeline_mode = #tpu.pipeline_mode<synchronous>, transform_indices = @transform_13, window_bounds = array<i64: 16, 1>}, {pipeline_mode = #tpu.pipeline_mode<synchronous>, transform_indices = @transform_14, window_bounds = array<i64: 32, 1>}, {pipeline_mode = #tpu.pipeline_mode<synchronous>, transform_indices = @transform_15, window_bounds = array<i64: 32, 1>}, {pipeline_mode = #tpu.pipeline_mode<synchronous>, transform_indices = @transform_16, window_bounds = array<i64: 32, 1>}, {pipeline_mode = #tpu.pipeline_mode<synchronous>, transform_indices = @transform_17, window_bounds = array<i64: 32, 1>}, {pipeline_mode = #tpu.pipeline_mode<synchronous>, transform_indices = @transform_18, window_bounds = array<i64: 8, 1>}, {pipeline_mode = #tpu.pipeline_mode<synchronous>, transform_indices = @transform_19, window_bounds = array<i64: 8, 1>}, {pipeline_mode = #tpu.pipeline_mode<synchronous>, transform_indices = @transform_20, window_bounds = array<i64: 16, 1>}, {pipeline_mode = #tpu.pipeline_mode<synchronous>, transform_indices = @transform_21, window_bounds = array<i64: 16, 1>}, {pipeline_mode = #tpu.pipeline_mode<synchronous>, transform_indices = @transform_22, window_bounds = array<i64: 32, 1>}, {pipeline_mode = #tpu.pipeline_mode<synchronous>, transform_indices = @transform_23, window_bounds = array<i64: 32, 1>}, {pipeline_mode = #tpu.pipeline_mode<synchronous>, transform_indices = @transform_24, window_bounds = array<i64: 32, 1>}, {pipeline_mode = #tpu.pipeline_mode<synchronous>, transform_indices = @transform_25, window_bounds = array<i64: 32, 1>}, {pipeline_mode = #tpu.pipeline_mode<synchronous>, transform_indices = @transform_26, window_bounds = array<i64: 1, 288>}, {pipeline_mode = #tpu.pipeline_mode<synchronous>, transform_indices = @transform_27, window_bounds = array<i64: 1, 80>}, {pipeline_mode = #tpu.pipeline_mode<synchronous>, transform_indices = @transform_28, window_bounds = array<i64: 1, 24>}, {pipeline_mode = #tpu.pipeline_mode<synchronous>, transform_indices = @transform_29, window_bounds = array<i64: 1, 8>}, {pipeline_mode = #tpu.pipeline_mode<synchronous>, transform_indices = @transform_30, window_bounds = array<i64: 270, 80>}, {pipeline_mode = #tpu.pipeline_mode<synchronous>, transform_indices = @transform_31, window_bounds = array<i64: 270, 80>}, {pipeline_mode = #tpu.pipeline_mode<synchronous>, transform_indices = @transform_32, window_bounds = array<i64: 70, 24>}, {pipeline_mode = #tpu.pipeline_mode<synchronous>, transform_indices = @transform_33, window_bounds = array<i64: 70, 24>}, {pipeline_mode = #tpu.pipeline_mode<synchronous>, transform_indices = @transform_34, window_bounds = array<i64: 18, 8>}, {pipeline_mode = #tpu.pipeline_mode<synchronous>, transform_indices = @transform_35, window_bounds = array<i64: 18, 8>}, {transform_indices = @transform_36, window_bounds = array<i64: 1, 32, 4>}]} {
    %c0 = arith.constant 0 : index
    %c0_0 = arith.constant 0 : index
    %c0_1 = arith.constant 0 : index
    %0 = vector.load %arg1[%c0, %c0_0, %c0_1] : memref<1x3x256xf32, #tpu.memory_space<vmem>>, vector<1x3x256xf32>
    %1 = vector.shape_cast %0 : vector<1x3x256xf32> to vector<3x256xf32>
    %2 = arith.truncf %1 : vector<3x256xf32> to vector<3x256xbf16>
    %c0_2 = arith.constant 0 : index
    %c0_3 = arith.constant 0 : index
    %3 = vector.load %arg2[%c0_2, %c0_3] : memref<256x288xbf16, #tpu.memory_space<vmem>>, vector<256x288xbf16>
    %cst = arith.constant dense<0.000000e+00> : vector<3x288xf32>
    %4 = tpu.matmul %2, %3, %cst {dimension_numbers = #tpu.dot_dimension_numbers<[1], [0], [0], [1], [0, 0, 1, 1], [], []>} : vector<3x256xbf16>, vector<256x288xbf16>, vector<3x288xf32> -> vector<3x288xf32>
    %5 = arith.truncf %4 : vector<3x288xf32> to vector<3x288xbf16>
    %cst_4 = arith.constant 0.000000e+00 : bf16
    %6 = vector.broadcast %cst_4 : bf16 to vector<9x19xbf16>
    %c0_5 = arith.constant 0 : index
    %c0_6 = arith.constant 0 : index
    %7 = vector.load %arg38[%c0_5, %c0_6] : memref<9x342xbf16, #tpu.memory_space<vmem>>, vector<9x19xbf16>
    tpu.vector_store %arg38[%c0_5, %c0_6], %6 {strides = array<i32>} : memref<9x342xbf16, #tpu.memory_space<vmem>>, vector<9x19xbf16>,
    %cst_7 = arith.constant 0.000000e+00 : bf16
    %8 = vector.broadcast %cst_7 : bf16 to vector<9x37xbf16>
    %c0_8 = arith.constant 0 : index
    %c305 = arith.constant 305 : index
    %9 = vector.load %arg38[%c0_8, %c305] : memref<9x342xbf16, #tpu.memory_space<vmem>>, vector<9x37xbf16>
    tpu.vector_store %arg38[%c0_8, %c305], %8 {strides = array<i32>} : memref<9x342xbf16, #tpu.memory_space<vmem>>, vector<9x37xbf16>,
    %c0_9 = arith.constant 0 : index
    %c19 = arith.constant 19 : index
    %10 = vector.load %arg38[%c0_9, %c19] : memref<9x342xbf16, #tpu.memory_space<vmem>>, vector<3x288xbf16>
    tpu.vector_store %arg38[%c0_9, %c19], %5 {strides = array<i32>} : memref<9x342xbf16, #tpu.memory_space<vmem>>, vector<3x288xbf16>,
    %c3 = arith.constant 3 : index
    %c18 = arith.constant 18 : index
    %11 = vector.load %arg38[%c3, %c18] : memref<9x342xbf16, #tpu.memory_space<vmem>>, vector<3x288xbf16>
    tpu.vector_store %arg38[%c3, %c18], %5 {strides = array<i32>} : memref<9x342xbf16, #tpu.memory_space<vmem>>, vector<3x288xbf16>,
    %c6 = arith.constant 6 : index
    %c17 = arith.constant 17 : index
    %12 = vector.load %arg38[%c6, %c17] : memref<9x342xbf16, #tpu.memory_space<vmem>>, vector<3x288xbf16>
    tpu.vector_store %arg38[%c6, %c17], %5 {strides = array<i32>} : memref<9x342xbf16, #tpu.memory_space<vmem>>, vector<3x288xbf16>,
    %c0_10 = arith.constant 0 : index
    %c0_11 = arith.constant 0 : index
    %13 = vector.load %arg27[%c0_10, %c0_11] : memref<1x288xf32, #tpu.memory_space<vmem>>, vector<1x288xf32>
    %c0_12 = arith.constant 0 : index
    %c0_13 = arith.constant 0 : index
    %c0_14 = arith.constant 0 : index
    %14 = vector.load %arg3[%c0_12, %c0_13, %c0_14] : memref<3x8x9xbf16, #tpu.memory_space<vmem>>, vector<1x8x9xbf16>
    %15 = vector.shape_cast %14 : vector<1x8x9xbf16> to vector<8x9xbf16>
    %c0_15 = arith.constant 0 : index
    %c0_16 = arith.constant 0 : index
    %16 = vector.load %arg38[%c0_15, %c0_16] : memref<9x342xbf16, #tpu.memory_space<vmem>>, vector<9x288xbf16>
    %cst_17 = arith.constant dense<0.000000e+00> : vector<8x288xf32>
    %17 = tpu.matmul %15, %16, %cst_17 {dimension_numbers = #tpu.dot_dimension_numbers<[1], [0], [0], [1], [0, 0, 1, 1], [], []>} : vector<8x9xbf16>, vector<9x288xbf16>, vector<8x288xf32> -> vector<8x288xf32>
    %c1 = arith.constant 1 : index
    %c0_18 = arith.constant 0 : index
    %c0_19 = arith.constant 0 : index
    %18 = vector.load %arg3[%c1, %c0_18, %c0_19] : memref<3x8x9xbf16, #tpu.memory_space<vmem>>, vector<1x8x9xbf16>
    %19 = vector.shape_cast %18 : vector<1x8x9xbf16> to vector<8x9xbf16>
    %c0_20 = arith.constant 0 : index
    %c18_21 = arith.constant 18 : index
    %20 = vector.load %arg38[%c0_20, %c18_21] : memref<9x342xbf16, #tpu.memory_space<vmem>>, vector<9x288xbf16>
    %cst_22 = arith.constant dense<0.000000e+00> : vector<8x288xf32>
    %21 = tpu.matmul %19, %20, %cst_22 {dimension_numbers = #tpu.dot_dimension_numbers<[1], [0], [0], [1], [0, 0, 1, 1], [], []>} : vector<8x9xbf16>, vector<9x288xbf16>, vector<8x288xf32> -> vector<8x288xf32>
    %22 = arith.addf %17, %21 : vector<8x288xf32>
    %c2 = arith.constant 2 : index
    %c0_23 = arith.constant 0 : index
    %c0_24 = arith.constant 0 : index
    %23 = vector.load %arg3[%c2, %c0_23, %c0_24] : memref<3x8x9xbf16, #tpu.memory_space<vmem>>, vector<1x8x9xbf16>
    %24 = vector.shape_cast %23 : vector<1x8x9xbf16> to vector<8x9xbf16>
    %c0_25 = arith.constant 0 : index
    %c36 = arith.constant 36 : index
    %25 = vector.load %arg38[%c0_25, %c36] : memref<9x342xbf16, #tpu.memory_space<vmem>>, vector<9x288xbf16>
    %cst_26 = arith.constant dense<0.000000e+00> : vector<8x288xf32>
    %26 = tpu.matmul %24, %25, %cst_26 {dimension_numbers = #tpu.dot_dimension_numbers<[1], [0], [0], [1], [0, 0, 1, 1], [], []>} : vector<8x9xbf16>, vector<9x288xbf16>, vector<8x288xf32> -> vector<8x288xf32>
    %27 = arith.addf %22, %26 : vector<8x288xf32>
    %c0_27 = arith.constant 0 : index
    %c0_28 = arith.constant 0 : index
    %28 = vector.load %arg11[%c0_27, %c0_28] : memref<8x1xf32, #tpu.memory_space<vmem>>, vector<8x1xf32>
    %29 = vector.broadcast %28 : vector<8x1xf32> to vector<8x288xf32>
    %30 = arith.mulf %27, %29 : vector<8x288xf32>
    %c0_29 = arith.constant 0 : index
    %c0_30 = arith.constant 0 : index
    %31 = vector.load %arg19[%c0_29, %c0_30] : memref<8x1xf32, #tpu.memory_space<vmem>>, vector<8x1xf32>
    %32 = vector.broadcast %31 : vector<8x1xf32> to vector<8x288xf32>
    %33 = arith.addf %30, %32 : vector<8x288xf32>
    %cst_31 = arith.constant 0.000000e+00 : f32
    %34 = vector.broadcast %cst_31 : f32 to vector<8x288xf32>
    %35 = arith.maximumf %33, %34 : vector<8x288xf32>
    %36 = vector.broadcast %13 : vector<1x288xf32> to vector<8x288xf32>
    %37 = arith.mulf %35, %36 : vector<8x288xf32>
    %38 = arith.truncf %37 : vector<8x288xf32> to vector<8x288xbf16>
    %cst_32 = arith.constant 0.000000e+00 : bf16
    %39 = vector.broadcast %cst_32 : bf16 to vector<24x19xbf16>
    %c0_33 = arith.constant 0 : index
    %c0_34 = arith.constant 0 : index
    %40 = vector.load %arg39[%c0_33, %c0_34] : memref<24x342xbf16, #tpu.memory_space<vmem>>, vector<24x19xbf16>
    tpu.vector_store %arg39[%c0_33, %c0_34], %39 {strides = array<i32>} : memref<24x342xbf16, #tpu.memory_space<vmem>>, vector<24x19xbf16>,
    %cst_35 = arith.constant 0.000000e+00 : bf16
    %41 = vector.broadcast %cst_35 : bf16 to vector<24x37xbf16>
    %c0_36 = arith.constant 0 : index
    %c305_37 = arith.constant 305 : index
    %42 = vector.load %arg39[%c0_36, %c305_37] : memref<24x342xbf16, #tpu.memory_space<vmem>>, vector<24x37xbf16>
    tpu.vector_store %arg39[%c0_36, %c305_37], %41 {strides = array<i32>} : memref<24x342xbf16, #tpu.memory_space<vmem>>, vector<24x37xbf16>,
    %c0_38 = arith.constant 0 : index
    %c19_39 = arith.constant 19 : index
    %43 = vector.load %arg39[%c0_38, %c19_39] : memref<24x342xbf16, #tpu.memory_space<vmem>>, vector<8x288xbf16>
    tpu.vector_store %arg39[%c0_38, %c19_39], %38 {strides = array<i32>} : memref<24x342xbf16, #tpu.memory_space<vmem>>, vector<8x288xbf16>,
    %c8 = arith.constant 8 : index
    %c18_40 = arith.constant 18 : index
    %44 = vector.load %arg39[%c8, %c18_40] : memref<24x342xbf16, #tpu.memory_space<vmem>>, vector<8x288xbf16>
    tpu.vector_store %arg39[%c8, %c18_40], %38 {strides = array<i32>} : memref<24x342xbf16, #tpu.memory_space<vmem>>, vector<8x288xbf16>,
    %c16 = arith.constant 16 : index
    %c17_41 = arith.constant 17 : index
    %45 = vector.load %arg39[%c16, %c17_41] : memref<24x342xbf16, #tpu.memory_space<vmem>>, vector<8x288xbf16>
    tpu.vector_store %arg39[%c16, %c17_41], %38 {strides = array<i32>} : memref<24x342xbf16, #tpu.memory_space<vmem>>, vector<8x288xbf16>,
    %c0_42 = arith.constant 0 : index
    %c0_43 = arith.constant 0 : index
    %c0_44 = arith.constant 0 : index
    %46 = vector.load %arg4[%c0_42, %c0_43, %c0_44] : memref<3x8x24xbf16, #tpu.memory_space<vmem>>, vector<1x8x24xbf16>
    %47 = vector.shape_cast %46 : vector<1x8x24xbf16> to vector<8x24xbf16>
    %c0_45 = arith.constant 0 : index
    %c0_46 = arith.constant 0 : index
    %48 = vector.load %arg39[%c0_45, %c0_46] : memref<24x342xbf16, #tpu.memory_space<vmem>>, vector<24x288xbf16>
    %cst_47 = arith.constant dense<0.000000e+00> : vector<8x288xf32>
    %49 = tpu.matmul %47, %48, %cst_47 {dimension_numbers = #tpu.dot_dimension_numbers<[1], [0], [0], [1], [0, 0, 1, 1], [], []>} : vector<8x24xbf16>, vector<24x288xbf16>, vector<8x288xf32> -> vector<8x288xf32>
    %c1_48 = arith.constant 1 : index
    %c0_49 = arith.constant 0 : index
    %c0_50 = arith.constant 0 : index
    %50 = vector.load %arg4[%c1_48, %c0_49, %c0_50] : memref<3x8x24xbf16, #tpu.memory_space<vmem>>, vector<1x8x24xbf16>
    %51 = vector.shape_cast %50 : vector<1x8x24xbf16> to vector<8x24xbf16>
    %c0_51 = arith.constant 0 : index
    %c18_52 = arith.constant 18 : index
    %52 = vector.load %arg39[%c0_51, %c18_52] : memref<24x342xbf16, #tpu.memory_space<vmem>>, vector<24x288xbf16>
    %cst_53 = arith.constant dense<0.000000e+00> : vector<8x288xf32>
    %53 = tpu.matmul %51, %52, %cst_53 {dimension_numbers = #tpu.dot_dimension_numbers<[1], [0], [0], [1], [0, 0, 1, 1], [], []>} : vector<8x24xbf16>, vector<24x288xbf16>, vector<8x288xf32> -> vector<8x288xf32>
    %54 = arith.addf %49, %53 : vector<8x288xf32>
    %c2_54 = arith.constant 2 : index
    %c0_55 = arith.constant 0 : index
    %c0_56 = arith.constant 0 : index
    %55 = vector.load %arg4[%c2_54, %c0_55, %c0_56] : memref<3x8x24xbf16, #tpu.memory_space<vmem>>, vector<1x8x24xbf16>
    %56 = vector.shape_cast %55 : vector<1x8x24xbf16> to vector<8x24xbf16>
    %c0_57 = arith.constant 0 : index
    %c36_58 = arith.constant 36 : index
    %57 = vector.load %arg39[%c0_57, %c36_58] : memref<24x342xbf16, #tpu.memory_space<vmem>>, vector<24x288xbf16>
    %cst_59 = arith.constant dense<0.000000e+00> : vector<8x288xf32>
    %58 = tpu.matmul %56, %57, %cst_59 {dimension_numbers = #tpu.dot_dimension_numbers<[1], [0], [0], [1], [0, 0, 1, 1], [], []>} : vector<8x24xbf16>, vector<24x288xbf16>, vector<8x288xf32> -> vector<8x288xf32>
    %59 = arith.addf %54, %58 : vector<8x288xf32>
    %c0_60 = arith.constant 0 : index
    %c0_61 = arith.constant 0 : index
    %60 = vector.load %arg12[%c0_60, %c0_61] : memref<8x1xf32, #tpu.memory_space<vmem>>, vector<8x1xf32>
    %61 = vector.broadcast %60 : vector<8x1xf32> to vector<8x288xf32>
    %62 = arith.mulf %59, %61 : vector<8x288xf32>
    %c0_62 = arith.constant 0 : index
    %c0_63 = arith.constant 0 : index
    %63 = vector.load %arg20[%c0_62, %c0_63] : memref<8x1xf32, #tpu.memory_space<vmem>>, vector<8x1xf32>
    %64 = vector.broadcast %63 : vector<8x1xf32> to vector<8x288xf32>
    %65 = arith.addf %62, %64 : vector<8x288xf32>
    %cst_64 = arith.constant 0.000000e+00 : f32
    %66 = vector.broadcast %cst_64 : f32 to vector<8x288xf32>
    %67 = arith.maximumf %65, %66 : vector<8x288xf32>
    %68 = vector.extract_strided_slice %67 {offsets = [0, 0], sizes = [8, 270], strides = [1, 1]} : vector<8x288xf32> to vector<8x270xf32>
    %69 = vector.extract_strided_slice %67 {offsets = [0, 18], sizes = [8, 270], strides = [1, 1]} : vector<8x288xf32> to vector<8x270xf32>
    %70 = arith.maximumf %68, %69 : vector<8x270xf32>
    %71 = arith.truncf %70 : vector<8x270xf32> to vector<8x270xbf16>
    %c0_65 = arith.constant 0 : index
    %c0_66 = arith.constant 0 : index
    %72 = vector.load %arg31[%c0_65, %c0_66] : memref<270x80xbf16, #tpu.memory_space<vmem>>, vector<270x80xbf16>
    %cst_67 = arith.constant dense<0.000000e+00> : vector<8x80xf32>
    %73 = tpu.matmul %71, %72, %cst_67 {dimension_numbers = #tpu.dot_dimension_numbers<[1], [0], [0], [1], [0, 0, 1, 1], [], []>} : vector<8x270xbf16>, vector<270x80xbf16>, vector<8x80xf32> -> vector<8x80xf32>
    %c0_68 = arith.constant 0 : index
    %c0_69 = arith.constant 0 : index
    %74 = vector.load %arg32[%c0_68, %c0_69] : memref<270x80xbf16, #tpu.memory_space<vmem>>, vector<270x80xbf16>
    %cst_70 = arith.constant dense<0.000000e+00> : vector<8x80xf32>
    %75 = tpu.matmul %71, %74, %cst_70 {dimension_numbers = #tpu.dot_dimension_numbers<[1], [0], [0], [1], [0, 0, 1, 1], [], []>} : vector<8x270xbf16>, vector<270x80xbf16>, vector<8x80xf32> -> vector<8x80xf32>
    %76 = arith.maximumf %73, %75 : vector<8x80xf32>
    %77 = arith.truncf %76 : vector<8x80xf32> to vector<8x80xbf16>
    %cst_71 = arith.constant 0.000000e+00 : bf16
    %78 = vector.broadcast %cst_71 : bf16 to vector<24x11xbf16>
    %c0_72 = arith.constant 0 : index
    %c0_73 = arith.constant 0 : index
    %79 = vector.load %arg40[%c0_72, %c0_73] : memref<24x110xbf16, #tpu.memory_space<vmem>>, vector<24x11xbf16>
    tpu.vector_store %arg40[%c0_72, %c0_73], %78 {strides = array<i32>} : memref<24x110xbf16, #tpu.memory_space<vmem>>, vector<24x11xbf16>,
    %cst_74 = arith.constant 0.000000e+00 : bf16
    %80 = vector.broadcast %cst_74 : bf16 to vector<24x21xbf16>
    %c0_75 = arith.constant 0 : index
    %c89 = arith.constant 89 : index
    %81 = vector.load %arg40[%c0_75, %c89] : memref<24x110xbf16, #tpu.memory_space<vmem>>, vector<24x21xbf16>
    tpu.vector_store %arg40[%c0_75, %c89], %80 {strides = array<i32>} : memref<24x110xbf16, #tpu.memory_space<vmem>>, vector<24x21xbf16>,
    %c0_76 = arith.constant 0 : index
    %c11 = arith.constant 11 : index
    %82 = vector.load %arg40[%c0_76, %c11] : memref<24x110xbf16, #tpu.memory_space<vmem>>, vector<8x80xbf16>
    tpu.vector_store %arg40[%c0_76, %c11], %77 {strides = array<i32>} : memref<24x110xbf16, #tpu.memory_space<vmem>>, vector<8x80xbf16>,
    %c8_77 = arith.constant 8 : index
    %c10 = arith.constant 10 : index
    %83 = vector.load %arg40[%c8_77, %c10] : memref<24x110xbf16, #tpu.memory_space<vmem>>, vector<8x80xbf16>
    tpu.vector_store %arg40[%c8_77, %c10], %77 {strides = array<i32>} : memref<24x110xbf16, #tpu.memory_space<vmem>>, vector<8x80xbf16>,
    %c16_78 = arith.constant 16 : index
    %c9 = arith.constant 9 : index
    %84 = vector.load %arg40[%c16_78, %c9] : memref<24x110xbf16, #tpu.memory_space<vmem>>, vector<8x80xbf16>
    tpu.vector_store %arg40[%c16_78, %c9], %77 {strides = array<i32>} : memref<24x110xbf16, #tpu.memory_space<vmem>>, vector<8x80xbf16>,
    %c0_79 = arith.constant 0 : index
    %c0_80 = arith.constant 0 : index
    %85 = vector.load %arg28[%c0_79, %c0_80] : memref<1x80xf32, #tpu.memory_space<vmem>>, vector<1x80xf32>
    %c0_81 = arith.constant 0 : index
    %c0_82 = arith.constant 0 : index
    %c0_83 = arith.constant 0 : index
    %86 = vector.load %arg5[%c0_81, %c0_82, %c0_83] : memref<3x16x24xbf16, #tpu.memory_space<vmem>>, vector<1x16x24xbf16>
    %87 = vector.shape_cast %86 : vector<1x16x24xbf16> to vector<16x24xbf16>
    %c0_84 = arith.constant 0 : index
    %c0_85 = arith.constant 0 : index
    %88 = vector.load %arg40[%c0_84, %c0_85] : memref<24x110xbf16, #tpu.memory_space<vmem>>, vector<24x80xbf16>
    %cst_86 = arith.constant dense<0.000000e+00> : vector<16x80xf32>
    %89 = tpu.matmul %87, %88, %cst_86 {dimension_numbers = #tpu.dot_dimension_numbers<[1], [0], [0], [1], [0, 0, 1, 1], [], []>} : vector<16x24xbf16>, vector<24x80xbf16>, vector<16x80xf32> -> vector<16x80xf32>
    %c1_87 = arith.constant 1 : index
    %c0_88 = arith.constant 0 : index
    %c0_89 = arith.constant 0 : index
    %90 = vector.load %arg5[%c1_87, %c0_88, %c0_89] : memref<3x16x24xbf16, #tpu.memory_space<vmem>>, vector<1x16x24xbf16>
    %91 = vector.shape_cast %90 : vector<1x16x24xbf16> to vector<16x24xbf16>
    %c0_90 = arith.constant 0 : index
    %c10_91 = arith.constant 10 : index
    %92 = vector.load %arg40[%c0_90, %c10_91] : memref<24x110xbf16, #tpu.memory_space<vmem>>, vector<24x80xbf16>
    %cst_92 = arith.constant dense<0.000000e+00> : vector<16x80xf32>
    %93 = tpu.matmul %91, %92, %cst_92 {dimension_numbers = #tpu.dot_dimension_numbers<[1], [0], [0], [1], [0, 0, 1, 1], [], []>} : vector<16x24xbf16>, vector<24x80xbf16>, vector<16x80xf32> -> vector<16x80xf32>
    %94 = arith.addf %89, %93 : vector<16x80xf32>
    %c2_93 = arith.constant 2 : index
    %c0_94 = arith.constant 0 : index
    %c0_95 = arith.constant 0 : index
    %95 = vector.load %arg5[%c2_93, %c0_94, %c0_95] : memref<3x16x24xbf16, #tpu.memory_space<vmem>>, vector<1x16x24xbf16>
    %96 = vector.shape_cast %95 : vector<1x16x24xbf16> to vector<16x24xbf16>
    %c0_96 = arith.constant 0 : index
    %c20 = arith.constant 20 : index
    %97 = vector.load %arg40[%c0_96, %c20] : memref<24x110xbf16, #tpu.memory_space<vmem>>, vector<24x80xbf16>
    %cst_97 = arith.constant dense<0.000000e+00> : vector<16x80xf32>
    %98 = tpu.matmul %96, %97, %cst_97 {dimension_numbers = #tpu.dot_dimension_numbers<[1], [0], [0], [1], [0, 0, 1, 1], [], []>} : vector<16x24xbf16>, vector<24x80xbf16>, vector<16x80xf32> -> vector<16x80xf32>
    %99 = arith.addf %94, %98 : vector<16x80xf32>
    %c0_98 = arith.constant 0 : index
    %c0_99 = arith.constant 0 : index
    %100 = vector.load %arg13[%c0_98, %c0_99] : memref<16x1xf32, #tpu.memory_space<vmem>>, vector<16x1xf32>
    %101 = vector.broadcast %100 : vector<16x1xf32> to vector<16x80xf32>
    %102 = arith.mulf %99, %101 : vector<16x80xf32>
    %c0_100 = arith.constant 0 : index
    %c0_101 = arith.constant 0 : index
    %103 = vector.load %arg21[%c0_100, %c0_101] : memref<16x1xf32, #tpu.memory_space<vmem>>, vector<16x1xf32>
    %104 = vector.broadcast %103 : vector<16x1xf32> to vector<16x80xf32>
    %105 = arith.addf %102, %104 : vector<16x80xf32>
    %cst_102 = arith.constant 0.000000e+00 : f32
    %106 = vector.broadcast %cst_102 : f32 to vector<16x80xf32>
    %107 = arith.maximumf %105, %106 : vector<16x80xf32>
    %108 = vector.broadcast %85 : vector<1x80xf32> to vector<16x80xf32>
    %109 = arith.mulf %107, %108 : vector<16x80xf32>
    %110 = arith.truncf %109 : vector<16x80xf32> to vector<16x80xbf16>
    %cst_103 = arith.constant 0.000000e+00 : bf16
    %111 = vector.broadcast %cst_103 : bf16 to vector<48x11xbf16>
    %c0_104 = arith.constant 0 : index
    %c0_105 = arith.constant 0 : index
    %112 = vector.load %arg41[%c0_104, %c0_105] : memref<48x110xbf16, #tpu.memory_space<vmem>>, vector<48x11xbf16>
    tpu.vector_store %arg41[%c0_104, %c0_105], %111 {strides = array<i32>} : memref<48x110xbf16, #tpu.memory_space<vmem>>, vector<48x11xbf16>,
    %cst_106 = arith.constant 0.000000e+00 : bf16
    %113 = vector.broadcast %cst_106 : bf16 to vector<48x21xbf16>
    %c0_107 = arith.constant 0 : index
    %c89_108 = arith.constant 89 : index
    %114 = vector.load %arg41[%c0_107, %c89_108] : memref<48x110xbf16, #tpu.memory_space<vmem>>, vector<48x21xbf16>
    tpu.vector_store %arg41[%c0_107, %c89_108], %113 {strides = array<i32>} : memref<48x110xbf16, #tpu.memory_space<vmem>>, vector<48x21xbf16>,
    %c0_109 = arith.constant 0 : index
    %c11_110 = arith.constant 11 : index
    %115 = vector.load %arg41[%c0_109, %c11_110] : memref<48x110xbf16, #tpu.memory_space<vmem>>, vector<16x80xbf16>
    tpu.vector_store %arg41[%c0_109, %c11_110], %110 {strides = array<i32>} : memref<48x110xbf16, #tpu.memory_space<vmem>>, vector<16x80xbf16>,
    %c16_111 = arith.constant 16 : index
    %c10_112 = arith.constant 10 : index
    %116 = vector.load %arg41[%c16_111, %c10_112] : memref<48x110xbf16, #tpu.memory_space<vmem>>, vector<16x80xbf16>
    tpu.vector_store %arg41[%c16_111, %c10_112], %110 {strides = array<i32>} : memref<48x110xbf16, #tpu.memory_space<vmem>>, vector<16x80xbf16>,
    %c32 = arith.constant 32 : index
    %c9_113 = arith.constant 9 : index
    %117 = vector.load %arg41[%c32, %c9_113] : memref<48x110xbf16, #tpu.memory_space<vmem>>, vector<16x80xbf16>
    tpu.vector_store %arg41[%c32, %c9_113], %110 {strides = array<i32>} : memref<48x110xbf16, #tpu.memory_space<vmem>>, vector<16x80xbf16>,
    %c0_114 = arith.constant 0 : index
    %c0_115 = arith.constant 0 : index
    %c0_116 = arith.constant 0 : index
    %118 = vector.load %arg6[%c0_114, %c0_115, %c0_116] : memref<3x16x48xbf16, #tpu.memory_space<vmem>>, vector<1x16x48xbf16>
    %119 = vector.shape_cast %118 : vector<1x16x48xbf16> to vector<16x48xbf16>
    %c0_117 = arith.constant 0 : index
    %c0_118 = arith.constant 0 : index
    %120 = vector.load %arg41[%c0_117, %c0_118] : memref<48x110xbf16, #tpu.memory_space<vmem>>, vector<48x80xbf16>
    %cst_119 = arith.constant dense<0.000000e+00> : vector<16x80xf32>
    %121 = tpu.matmul %119, %120, %cst_119 {dimension_numbers = #tpu.dot_dimension_numbers<[1], [0], [0], [1], [0, 0, 1, 1], [], []>} : vector<16x48xbf16>, vector<48x80xbf16>, vector<16x80xf32> -> vector<16x80xf32>
    %c1_120 = arith.constant 1 : index
    %c0_121 = arith.constant 0 : index
    %c0_122 = arith.constant 0 : index
    %122 = vector.load %arg6[%c1_120, %c0_121, %c0_122] : memref<3x16x48xbf16, #tpu.memory_space<vmem>>, vector<1x16x48xbf16>
    %123 = vector.shape_cast %122 : vector<1x16x48xbf16> to vector<16x48xbf16>
    %c0_123 = arith.constant 0 : index
    %c10_124 = arith.constant 10 : index
    %124 = vector.load %arg41[%c0_123, %c10_124] : memref<48x110xbf16, #tpu.memory_space<vmem>>, vector<48x80xbf16>
    %cst_125 = arith.constant dense<0.000000e+00> : vector<16x80xf32>
    %125 = tpu.matmul %123, %124, %cst_125 {dimension_numbers = #tpu.dot_dimension_numbers<[1], [0], [0], [1], [0, 0, 1, 1], [], []>} : vector<16x48xbf16>, vector<48x80xbf16>, vector<16x80xf32> -> vector<16x80xf32>
    %126 = arith.addf %121, %125 : vector<16x80xf32>
    %c2_126 = arith.constant 2 : index
    %c0_127 = arith.constant 0 : index
    %c0_128 = arith.constant 0 : index
    %127 = vector.load %arg6[%c2_126, %c0_127, %c0_128] : memref<3x16x48xbf16, #tpu.memory_space<vmem>>, vector<1x16x48xbf16>
    %128 = vector.shape_cast %127 : vector<1x16x48xbf16> to vector<16x48xbf16>
    %c0_129 = arith.constant 0 : index
    %c20_130 = arith.constant 20 : index
    %129 = vector.load %arg41[%c0_129, %c20_130] : memref<48x110xbf16, #tpu.memory_space<vmem>>, vector<48x80xbf16>
    %cst_131 = arith.constant dense<0.000000e+00> : vector<16x80xf32>
    %130 = tpu.matmul %128, %129, %cst_131 {dimension_numbers = #tpu.dot_dimension_numbers<[1], [0], [0], [1], [0, 0, 1, 1], [], []>} : vector<16x48xbf16>, vector<48x80xbf16>, vector<16x80xf32> -> vector<16x80xf32>
    %131 = arith.addf %126, %130 : vector<16x80xf32>
    %c0_132 = arith.constant 0 : index
    %c0_133 = arith.constant 0 : index
    %132 = vector.load %arg14[%c0_132, %c0_133] : memref<16x1xf32, #tpu.memory_space<vmem>>, vector<16x1xf32>
    %133 = vector.broadcast %132 : vector<16x1xf32> to vector<16x80xf32>
    %134 = arith.mulf %131, %133 : vector<16x80xf32>
    %c0_134 = arith.constant 0 : index
    %c0_135 = arith.constant 0 : index
    %135 = vector.load %arg22[%c0_134, %c0_135] : memref<16x1xf32, #tpu.memory_space<vmem>>, vector<16x1xf32>
    %136 = vector.broadcast %135 : vector<16x1xf32> to vector<16x80xf32>
    %137 = arith.addf %134, %136 : vector<16x80xf32>
    %cst_136 = arith.constant 0.000000e+00 : f32
    %138 = vector.broadcast %cst_136 : f32 to vector<16x80xf32>
    %139 = arith.maximumf %137, %138 : vector<16x80xf32>
    %140 = vector.extract_strided_slice %139 {offsets = [0, 0], sizes = [16, 70], strides = [1, 1]} : vector<16x80xf32> to vector<16x70xf32>
    %141 = vector.extract_strided_slice %139 {offsets = [0, 10], sizes = [16, 70], strides = [1, 1]} : vector<16x80xf32> to vector<16x70xf32>
    %142 = arith.maximumf %140, %141 : vector<16x70xf32>
    %143 = arith.truncf %142 : vector<16x70xf32> to vector<16x70xbf16>
    %c0_137 = arith.constant 0 : index
    %c0_138 = arith.constant 0 : index
    %144 = vector.load %arg33[%c0_137, %c0_138] : memref<70x24xbf16, #tpu.memory_space<vmem>>, vector<70x24xbf16>
    %cst_139 = arith.constant dense<0.000000e+00> : vector<16x24xf32>
    %145 = tpu.matmul %143, %144, %cst_139 {dimension_numbers = #tpu.dot_dimension_numbers<[1], [0], [0], [1], [0, 0, 1, 1], [], []>} : vector<16x70xbf16>, vector<70x24xbf16>, vector<16x24xf32> -> vector<16x24xf32>
    %c0_140 = arith.constant 0 : index
    %c0_141 = arith.constant 0 : index
    %146 = vector.load %arg34[%c0_140, %c0_141] : memref<70x24xbf16, #tpu.memory_space<vmem>>, vector<70x24xbf16>
    %cst_142 = arith.constant dense<0.000000e+00> : vector<16x24xf32>
    %147 = tpu.matmul %143, %146, %cst_142 {dimension_numbers = #tpu.dot_dimension_numbers<[1], [0], [0], [1], [0, 0, 1, 1], [], []>} : vector<16x70xbf16>, vector<70x24xbf16>, vector<16x24xf32> -> vector<16x24xf32>
    %148 = arith.maximumf %145, %147 : vector<16x24xf32>
    %149 = arith.truncf %148 : vector<16x24xf32> to vector<16x24xbf16>
    %cst_143 = arith.constant 0.000000e+00 : bf16
    %150 = vector.broadcast %cst_143 : bf16 to vector<48x7xbf16>
    %c0_144 = arith.constant 0 : index
    %c0_145 = arith.constant 0 : index
    %151 = vector.load %arg42[%c0_144, %c0_145] : memref<48x42xbf16, #tpu.memory_space<vmem>>, vector<48x7xbf16>
    tpu.vector_store %arg42[%c0_144, %c0_145], %150 {strides = array<i32>} : memref<48x42xbf16, #tpu.memory_space<vmem>>, vector<48x7xbf16>,
    %cst_146 = arith.constant 0.000000e+00 : bf16
    %152 = vector.broadcast %cst_146 : bf16 to vector<48x13xbf16>
    %c0_147 = arith.constant 0 : index
    %c29 = arith.constant 29 : index
    %153 = vector.load %arg42[%c0_147, %c29] : memref<48x42xbf16, #tpu.memory_space<vmem>>, vector<48x13xbf16>
    tpu.vector_store %arg42[%c0_147, %c29], %152 {strides = array<i32>} : memref<48x42xbf16, #tpu.memory_space<vmem>>, vector<48x13xbf16>,
    %c0_148 = arith.constant 0 : index
    %c7 = arith.constant 7 : index
    %154 = vector.load %arg42[%c0_148, %c7] : memref<48x42xbf16, #tpu.memory_space<vmem>>, vector<16x24xbf16>
    tpu.vector_store %arg42[%c0_148, %c7], %149 {strides = array<i32>} : memref<48x42xbf16, #tpu.memory_space<vmem>>, vector<16x24xbf16>,
    %c16_149 = arith.constant 16 : index
    %c6_150 = arith.constant 6 : index
    %155 = vector.load %arg42[%c16_149, %c6_150] : memref<48x42xbf16, #tpu.memory_space<vmem>>, vector<16x24xbf16>
    tpu.vector_store %arg42[%c16_149, %c6_150], %149 {strides = array<i32>} : memref<48x42xbf16, #tpu.memory_space<vmem>>, vector<16x24xbf16>,
    %c32_151 = arith.constant 32 : index
    %c5 = arith.constant 5 : index
    %156 = vector.load %arg42[%c32_151, %c5] : memref<48x42xbf16, #tpu.memory_space<vmem>>, vector<16x24xbf16>
    tpu.vector_store %arg42[%c32_151, %c5], %149 {strides = array<i32>} : memref<48x42xbf16, #tpu.memory_space<vmem>>, vector<16x24xbf16>,
    %c0_152 = arith.constant 0 : index
    %c0_153 = arith.constant 0 : index
    %157 = vector.load %arg29[%c0_152, %c0_153] : memref<1x24xf32, #tpu.memory_space<vmem>>, vector<1x24xf32>
    %c0_154 = arith.constant 0 : index
    %c0_155 = arith.constant 0 : index
    %c0_156 = arith.constant 0 : index
    %158 = vector.load %arg7[%c0_154, %c0_155, %c0_156] : memref<3x32x48xbf16, #tpu.memory_space<vmem>>, vector<1x32x48xbf16>
    %159 = vector.shape_cast %158 : vector<1x32x48xbf16> to vector<32x48xbf16>
    %c0_157 = arith.constant 0 : index
    %c0_158 = arith.constant 0 : index
    %160 = vector.load %arg42[%c0_157, %c0_158] : memref<48x42xbf16, #tpu.memory_space<vmem>>, vector<48x24xbf16>
    %cst_159 = arith.constant dense<0.000000e+00> : vector<32x24xf32>
    %161 = tpu.matmul %159, %160, %cst_159 {dimension_numbers = #tpu.dot_dimension_numbers<[1], [0], [0], [1], [0, 0, 1, 1], [], []>} : vector<32x48xbf16>, vector<48x24xbf16>, vector<32x24xf32> -> vector<32x24xf32>
    %c1_160 = arith.constant 1 : index
    %c0_161 = arith.constant 0 : index
    %c0_162 = arith.constant 0 : index
    %162 = vector.load %arg7[%c1_160, %c0_161, %c0_162] : memref<3x32x48xbf16, #tpu.memory_space<vmem>>, vector<1x32x48xbf16>
    %163 = vector.shape_cast %162 : vector<1x32x48xbf16> to vector<32x48xbf16>
    %c0_163 = arith.constant 0 : index
    %c6_164 = arith.constant 6 : index
    %164 = vector.load %arg42[%c0_163, %c6_164] : memref<48x42xbf16, #tpu.memory_space<vmem>>, vector<48x24xbf16>
    %cst_165 = arith.constant dense<0.000000e+00> : vector<32x24xf32>
    %165 = tpu.matmul %163, %164, %cst_165 {dimension_numbers = #tpu.dot_dimension_numbers<[1], [0], [0], [1], [0, 0, 1, 1], [], []>} : vector<32x48xbf16>, vector<48x24xbf16>, vector<32x24xf32> -> vector<32x24xf32>
    %166 = arith.addf %161, %165 : vector<32x24xf32>
    %c2_166 = arith.constant 2 : index
    %c0_167 = arith.constant 0 : index
    %c0_168 = arith.constant 0 : index
    %167 = vector.load %arg7[%c2_166, %c0_167, %c0_168] : memref<3x32x48xbf16, #tpu.memory_space<vmem>>, vector<1x32x48xbf16>
    %168 = vector.shape_cast %167 : vector<1x32x48xbf16> to vector<32x48xbf16>
    %c0_169 = arith.constant 0 : index
    %c12 = arith.constant 12 : index
    %169 = vector.load %arg42[%c0_169, %c12] : memref<48x42xbf16, #tpu.memory_space<vmem>>, vector<48x24xbf16>
    %cst_170 = arith.constant dense<0.000000e+00> : vector<32x24xf32>
    %170 = tpu.matmul %168, %169, %cst_170 {dimension_numbers = #tpu.dot_dimension_numbers<[1], [0], [0], [1], [0, 0, 1, 1], [], []>} : vector<32x48xbf16>, vector<48x24xbf16>, vector<32x24xf32> -> vector<32x24xf32>
    %171 = arith.addf %166, %170 : vector<32x24xf32>
    %c0_171 = arith.constant 0 : index
    %c0_172 = arith.constant 0 : index
    %172 = vector.load %arg15[%c0_171, %c0_172] : memref<32x1xf32, #tpu.memory_space<vmem>>, vector<32x1xf32>
    %173 = vector.broadcast %172 : vector<32x1xf32> to vector<32x24xf32>
    %174 = arith.mulf %171, %173 : vector<32x24xf32>
    %c0_173 = arith.constant 0 : index
    %c0_174 = arith.constant 0 : index
    %175 = vector.load %arg23[%c0_173, %c0_174] : memref<32x1xf32, #tpu.memory_space<vmem>>, vector<32x1xf32>
    %176 = vector.broadcast %175 : vector<32x1xf32> to vector<32x24xf32>
    %177 = arith.addf %174, %176 : vector<32x24xf32>
    %cst_175 = arith.constant 0.000000e+00 : f32
    %178 = vector.broadcast %cst_175 : f32 to vector<32x24xf32>
    %179 = arith.maximumf %177, %178 : vector<32x24xf32>
    %180 = vector.broadcast %157 : vector<1x24xf32> to vector<32x24xf32>
    %181 = arith.mulf %179, %180 : vector<32x24xf32>
    %182 = arith.truncf %181 : vector<32x24xf32> to vector<32x24xbf16>
    %cst_176 = arith.constant 0.000000e+00 : bf16
    %183 = vector.broadcast %cst_176 : bf16 to vector<96x7xbf16>
    %c0_177 = arith.constant 0 : index
    %c0_178 = arith.constant 0 : index
    %184 = vector.load %arg43[%c0_177, %c0_178] : memref<96x42xbf16, #tpu.memory_space<vmem>>, vector<96x7xbf16>
    tpu.vector_store %arg43[%c0_177, %c0_178], %183 {strides = array<i32>} : memref<96x42xbf16, #tpu.memory_space<vmem>>, vector<96x7xbf16>,
    %cst_179 = arith.constant 0.000000e+00 : bf16
    %185 = vector.broadcast %cst_179 : bf16 to vector<96x13xbf16>
    %c0_180 = arith.constant 0 : index
    %c29_181 = arith.constant 29 : index
    %186 = vector.load %arg43[%c0_180, %c29_181] : memref<96x42xbf16, #tpu.memory_space<vmem>>, vector<96x13xbf16>
    tpu.vector_store %arg43[%c0_180, %c29_181], %185 {strides = array<i32>} : memref<96x42xbf16, #tpu.memory_space<vmem>>, vector<96x13xbf16>,
    %c0_182 = arith.constant 0 : index
    %c7_183 = arith.constant 7 : index
    %187 = vector.load %arg43[%c0_182, %c7_183] : memref<96x42xbf16, #tpu.memory_space<vmem>>, vector<32x24xbf16>
    tpu.vector_store %arg43[%c0_182, %c7_183], %182 {strides = array<i32>} : memref<96x42xbf16, #tpu.memory_space<vmem>>, vector<32x24xbf16>,
    %c32_184 = arith.constant 32 : index
    %c6_185 = arith.constant 6 : index
    %188 = vector.load %arg43[%c32_184, %c6_185] : memref<96x42xbf16, #tpu.memory_space<vmem>>, vector<32x24xbf16>
    tpu.vector_store %arg43[%c32_184, %c6_185], %182 {strides = array<i32>} : memref<96x42xbf16, #tpu.memory_space<vmem>>, vector<32x24xbf16>,
    %c64 = arith.constant 64 : index
    %c5_186 = arith.constant 5 : index
    %189 = vector.load %arg43[%c64, %c5_186] : memref<96x42xbf16, #tpu.memory_space<vmem>>, vector<32x24xbf16>
    tpu.vector_store %arg43[%c64, %c5_186], %182 {strides = array<i32>} : memref<96x42xbf16, #tpu.memory_space<vmem>>, vector<32x24xbf16>,
    %c0_187 = arith.constant 0 : index
    %c0_188 = arith.constant 0 : index
    %c0_189 = arith.constant 0 : index
    %190 = vector.load %arg8[%c0_187, %c0_188, %c0_189] : memref<3x32x96xbf16, #tpu.memory_space<vmem>>, vector<1x32x96xbf16>
    %191 = vector.shape_cast %190 : vector<1x32x96xbf16> to vector<32x96xbf16>
    %c0_190 = arith.constant 0 : index
    %c0_191 = arith.constant 0 : index
    %192 = vector.load %arg43[%c0_190, %c0_191] : memref<96x42xbf16, #tpu.memory_space<vmem>>, vector<96x24xbf16>
    %cst_192 = arith.constant dense<0.000000e+00> : vector<32x24xf32>
    %193 = tpu.matmul %191, %192, %cst_192 {dimension_numbers = #tpu.dot_dimension_numbers<[1], [0], [0], [1], [0, 0, 1, 1], [], []>} : vector<32x96xbf16>, vector<96x24xbf16>, vector<32x24xf32> -> vector<32x24xf32>
    %c1_193 = arith.constant 1 : index
    %c0_194 = arith.constant 0 : index
    %c0_195 = arith.constant 0 : index
    %194 = vector.load %arg8[%c1_193, %c0_194, %c0_195] : memref<3x32x96xbf16, #tpu.memory_space<vmem>>, vector<1x32x96xbf16>
    %195 = vector.shape_cast %194 : vector<1x32x96xbf16> to vector<32x96xbf16>
    %c0_196 = arith.constant 0 : index
    %c6_197 = arith.constant 6 : index
    %196 = vector.load %arg43[%c0_196, %c6_197] : memref<96x42xbf16, #tpu.memory_space<vmem>>, vector<96x24xbf16>
    %cst_198 = arith.constant dense<0.000000e+00> : vector<32x24xf32>
    %197 = tpu.matmul %195, %196, %cst_198 {dimension_numbers = #tpu.dot_dimension_numbers<[1], [0], [0], [1], [0, 0, 1, 1], [], []>} : vector<32x96xbf16>, vector<96x24xbf16>, vector<32x24xf32> -> vector<32x24xf32>
    %198 = arith.addf %193, %197 : vector<32x24xf32>
    %c2_199 = arith.constant 2 : index
    %c0_200 = arith.constant 0 : index
    %c0_201 = arith.constant 0 : index
    %199 = vector.load %arg8[%c2_199, %c0_200, %c0_201] : memref<3x32x96xbf16, #tpu.memory_space<vmem>>, vector<1x32x96xbf16>
    %200 = vector.shape_cast %199 : vector<1x32x96xbf16> to vector<32x96xbf16>
    %c0_202 = arith.constant 0 : index
    %c12_203 = arith.constant 12 : index
    %201 = vector.load %arg43[%c0_202, %c12_203] : memref<96x42xbf16, #tpu.memory_space<vmem>>, vector<96x24xbf16>
    %cst_204 = arith.constant dense<0.000000e+00> : vector<32x24xf32>
    %202 = tpu.matmul %200, %201, %cst_204 {dimension_numbers = #tpu.dot_dimension_numbers<[1], [0], [0], [1], [0, 0, 1, 1], [], []>} : vector<32x96xbf16>, vector<96x24xbf16>, vector<32x24xf32> -> vector<32x24xf32>
    %203 = arith.addf %198, %202 : vector<32x24xf32>
    %c0_205 = arith.constant 0 : index
    %c0_206 = arith.constant 0 : index
    %204 = vector.load %arg16[%c0_205, %c0_206] : memref<32x1xf32, #tpu.memory_space<vmem>>, vector<32x1xf32>
    %205 = vector.broadcast %204 : vector<32x1xf32> to vector<32x24xf32>
    %206 = arith.mulf %203, %205 : vector<32x24xf32>
    %c0_207 = arith.constant 0 : index
    %c0_208 = arith.constant 0 : index
    %207 = vector.load %arg24[%c0_207, %c0_208] : memref<32x1xf32, #tpu.memory_space<vmem>>, vector<32x1xf32>
    %208 = vector.broadcast %207 : vector<32x1xf32> to vector<32x24xf32>
    %209 = arith.addf %206, %208 : vector<32x24xf32>
    %cst_209 = arith.constant 0.000000e+00 : f32
    %210 = vector.broadcast %cst_209 : f32 to vector<32x24xf32>
    %211 = arith.maximumf %209, %210 : vector<32x24xf32>
    %212 = vector.extract_strided_slice %211 {offsets = [0, 0], sizes = [32, 18], strides = [1, 1]} : vector<32x24xf32> to vector<32x18xf32>
    %213 = vector.extract_strided_slice %211 {offsets = [0, 6], sizes = [32, 18], strides = [1, 1]} : vector<32x24xf32> to vector<32x18xf32>
    %214 = arith.maximumf %212, %213 : vector<32x18xf32>
    %215 = arith.truncf %214 : vector<32x18xf32> to vector<32x18xbf16>
    %c0_210 = arith.constant 0 : index
    %c0_211 = arith.constant 0 : index
    %216 = vector.load %arg35[%c0_210, %c0_211] : memref<18x8xbf16, #tpu.memory_space<vmem>>, vector<18x8xbf16>
    %cst_212 = arith.constant dense<0.000000e+00> : vector<32x8xf32>
    %217 = tpu.matmul %215, %216, %cst_212 {dimension_numbers = #tpu.dot_dimension_numbers<[1], [0], [0], [1], [0, 0, 1, 1], [], []>} : vector<32x18xbf16>, vector<18x8xbf16>, vector<32x8xf32> -> vector<32x8xf32>
    %c0_213 = arith.constant 0 : index
    %c0_214 = arith.constant 0 : index
    %218 = vector.load %arg36[%c0_213, %c0_214] : memref<18x8xbf16, #tpu.memory_space<vmem>>, vector<18x8xbf16>
    %cst_215 = arith.constant dense<0.000000e+00> : vector<32x8xf32>
    %219 = tpu.matmul %215, %218, %cst_215 {dimension_numbers = #tpu.dot_dimension_numbers<[1], [0], [0], [1], [0, 0, 1, 1], [], []>} : vector<32x18xbf16>, vector<18x8xbf16>, vector<32x8xf32> -> vector<32x8xf32>
    %220 = arith.maximumf %217, %219 : vector<32x8xf32>
    %221 = arith.truncf %220 : vector<32x8xf32> to vector<32x8xbf16>
    %cst_216 = arith.constant 0.000000e+00 : bf16
    %222 = vector.broadcast %cst_216 : bf16 to vector<96x5xbf16>
    %c0_217 = arith.constant 0 : index
    %c0_218 = arith.constant 0 : index
    %223 = vector.load %arg44[%c0_217, %c0_218] : memref<96x20xbf16, #tpu.memory_space<vmem>>, vector<96x5xbf16>
    tpu.vector_store %arg44[%c0_217, %c0_218], %222 {strides = array<i32>} : memref<96x20xbf16, #tpu.memory_space<vmem>>, vector<96x5xbf16>,
    %cst_219 = arith.constant 0.000000e+00 : bf16
    %224 = vector.broadcast %cst_219 : bf16 to vector<96x9xbf16>
    %c0_220 = arith.constant 0 : index
    %c11_221 = arith.constant 11 : index
    %225 = vector.load %arg44[%c0_220, %c11_221] : memref<96x20xbf16, #tpu.memory_space<vmem>>, vector<96x9xbf16>
    tpu.vector_store %arg44[%c0_220, %c11_221], %224 {strides = array<i32>} : memref<96x20xbf16, #tpu.memory_space<vmem>>, vector<96x9xbf16>,
    %c0_222 = arith.constant 0 : index
    %c5_223 = arith.constant 5 : index
    %226 = vector.load %arg44[%c0_222, %c5_223] : memref<96x20xbf16, #tpu.memory_space<vmem>>, vector<32x8xbf16>
    tpu.vector_store %arg44[%c0_222, %c5_223], %221 {strides = array<i32>} : memref<96x20xbf16, #tpu.memory_space<vmem>>, vector<32x8xbf16>,
    %c32_224 = arith.constant 32 : index
    %c4 = arith.constant 4 : index
    %227 = vector.load %arg44[%c32_224, %c4] : memref<96x20xbf16, #tpu.memory_space<vmem>>, vector<32x8xbf16>
    tpu.vector_store %arg44[%c32_224, %c4], %221 {strides = array<i32>} : memref<96x20xbf16, #tpu.memory_space<vmem>>, vector<32x8xbf16>,
    %c64_225 = arith.constant 64 : index
    %c3_226 = arith.constant 3 : index
    %228 = vector.load %arg44[%c64_225, %c3_226] : memref<96x20xbf16, #tpu.memory_space<vmem>>, vector<32x8xbf16>
    tpu.vector_store %arg44[%c64_225, %c3_226], %221 {strides = array<i32>} : memref<96x20xbf16, #tpu.memory_space<vmem>>, vector<32x8xbf16>,
    %c0_227 = arith.constant 0 : index
    %c0_228 = arith.constant 0 : index
    %229 = vector.load %arg30[%c0_227, %c0_228] : memref<1x8xf32, #tpu.memory_space<vmem>>, vector<1x8xf32>
    %c0_229 = arith.constant 0 : index
    %c0_230 = arith.constant 0 : index
    %c0_231 = arith.constant 0 : index
    %230 = vector.load %arg9[%c0_229, %c0_230, %c0_231] : memref<3x32x96xbf16, #tpu.memory_space<vmem>>, vector<1x32x96xbf16>
    %231 = vector.shape_cast %230 : vector<1x32x96xbf16> to vector<32x96xbf16>
    %c0_232 = arith.constant 0 : index
    %c0_233 = arith.constant 0 : index
    %232 = vector.load %arg44[%c0_232, %c0_233] : memref<96x20xbf16, #tpu.memory_space<vmem>>, vector<96x8xbf16>
    %cst_234 = arith.constant dense<0.000000e+00> : vector<32x8xf32>
    %233 = tpu.matmul %231, %232, %cst_234 {dimension_numbers = #tpu.dot_dimension_numbers<[1], [0], [0], [1], [0, 0, 1, 1], [], []>} : vector<32x96xbf16>, vector<96x8xbf16>, vector<32x8xf32> -> vector<32x8xf32>
    %c1_235 = arith.constant 1 : index
    %c0_236 = arith.constant 0 : index
    %c0_237 = arith.constant 0 : index
    %234 = vector.load %arg9[%c1_235, %c0_236, %c0_237] : memref<3x32x96xbf16, #tpu.memory_space<vmem>>, vector<1x32x96xbf16>
    %235 = vector.shape_cast %234 : vector<1x32x96xbf16> to vector<32x96xbf16>
    %c0_238 = arith.constant 0 : index
    %c4_239 = arith.constant 4 : index
    %236 = vector.load %arg44[%c0_238, %c4_239] : memref<96x20xbf16, #tpu.memory_space<vmem>>, vector<96x8xbf16>
    %cst_240 = arith.constant dense<0.000000e+00> : vector<32x8xf32>
    %237 = tpu.matmul %235, %236, %cst_240 {dimension_numbers = #tpu.dot_dimension_numbers<[1], [0], [0], [1], [0, 0, 1, 1], [], []>} : vector<32x96xbf16>, vector<96x8xbf16>, vector<32x8xf32> -> vector<32x8xf32>
    %238 = arith.addf %233, %237 : vector<32x8xf32>
    %c2_241 = arith.constant 2 : index
    %c0_242 = arith.constant 0 : index
    %c0_243 = arith.constant 0 : index
    %239 = vector.load %arg9[%c2_241, %c0_242, %c0_243] : memref<3x32x96xbf16, #tpu.memory_space<vmem>>, vector<1x32x96xbf16>
    %240 = vector.shape_cast %239 : vector<1x32x96xbf16> to vector<32x96xbf16>
    %c0_244 = arith.constant 0 : index
    %c8_245 = arith.constant 8 : index
    %241 = vector.load %arg44[%c0_244, %c8_245] : memref<96x20xbf16, #tpu.memory_space<vmem>>, vector<96x8xbf16>
    %cst_246 = arith.constant dense<0.000000e+00> : vector<32x8xf32>
    %242 = tpu.matmul %240, %241, %cst_246 {dimension_numbers = #tpu.dot_dimension_numbers<[1], [0], [0], [1], [0, 0, 1, 1], [], []>} : vector<32x96xbf16>, vector<96x8xbf16>, vector<32x8xf32> -> vector<32x8xf32>
    %243 = arith.addf %238, %242 : vector<32x8xf32>
    %c0_247 = arith.constant 0 : index
    %c0_248 = arith.constant 0 : index
    %244 = vector.load %arg17[%c0_247, %c0_248] : memref<32x1xf32, #tpu.memory_space<vmem>>, vector<32x1xf32>
    %245 = vector.broadcast %244 : vector<32x1xf32> to vector<32x8xf32>
    %246 = arith.mulf %243, %245 : vector<32x8xf32>
    %c0_249 = arith.constant 0 : index
    %c0_250 = arith.constant 0 : index
    %247 = vector.load %arg25[%c0_249, %c0_250] : memref<32x1xf32, #tpu.memory_space<vmem>>, vector<32x1xf32>
    %248 = vector.broadcast %247 : vector<32x1xf32> to vector<32x8xf32>
    %249 = arith.addf %246, %248 : vector<32x8xf32>
    %cst_251 = arith.constant 0.000000e+00 : f32
    %250 = vector.broadcast %cst_251 : f32 to vector<32x8xf32>
    %251 = arith.maximumf %249, %250 : vector<32x8xf32>
    %252 = vector.broadcast %229 : vector<1x8xf32> to vector<32x8xf32>
    %253 = arith.mulf %251, %252 : vector<32x8xf32>
    %254 = arith.truncf %253 : vector<32x8xf32> to vector<32x8xbf16>
    %cst_252 = arith.constant 0.000000e+00 : bf16
    %255 = vector.broadcast %cst_252 : bf16 to vector<96x5xbf16>
    %c0_253 = arith.constant 0 : index
    %c0_254 = arith.constant 0 : index
    %256 = vector.load %arg45[%c0_253, %c0_254] : memref<96x20xbf16, #tpu.memory_space<vmem>>, vector<96x5xbf16>
    tpu.vector_store %arg45[%c0_253, %c0_254], %255 {strides = array<i32>} : memref<96x20xbf16, #tpu.memory_space<vmem>>, vector<96x5xbf16>,
    %cst_255 = arith.constant 0.000000e+00 : bf16
    %257 = vector.broadcast %cst_255 : bf16 to vector<96x9xbf16>
    %c0_256 = arith.constant 0 : index
    %c11_257 = arith.constant 11 : index
    %258 = vector.load %arg45[%c0_256, %c11_257] : memref<96x20xbf16, #tpu.memory_space<vmem>>, vector<96x9xbf16>
    tpu.vector_store %arg45[%c0_256, %c11_257], %257 {strides = array<i32>} : memref<96x20xbf16, #tpu.memory_space<vmem>>, vector<96x9xbf16>,
    %c0_258 = arith.constant 0 : index
    %c5_259 = arith.constant 5 : index
    %259 = vector.load %arg45[%c0_258, %c5_259] : memref<96x20xbf16, #tpu.memory_space<vmem>>, vector<32x8xbf16>
    tpu.vector_store %arg45[%c0_258, %c5_259], %254 {strides = array<i32>} : memref<96x20xbf16, #tpu.memory_space<vmem>>, vector<32x8xbf16>,
    %c32_260 = arith.constant 32 : index
    %c4_261 = arith.constant 4 : index
    %260 = vector.load %arg45[%c32_260, %c4_261] : memref<96x20xbf16, #tpu.memory_space<vmem>>, vector<32x8xbf16>
    tpu.vector_store %arg45[%c32_260, %c4_261], %254 {strides = array<i32>} : memref<96x20xbf16, #tpu.memory_space<vmem>>, vector<32x8xbf16>,
    %c64_262 = arith.constant 64 : index
    %c3_263 = arith.constant 3 : index
    %261 = vector.load %arg45[%c64_262, %c3_263] : memref<96x20xbf16, #tpu.memory_space<vmem>>, vector<32x8xbf16>
    tpu.vector_store %arg45[%c64_262, %c3_263], %254 {strides = array<i32>} : memref<96x20xbf16, #tpu.memory_space<vmem>>, vector<32x8xbf16>,
    %c0_264 = arith.constant 0 : index
    %c0_265 = arith.constant 0 : index
    %c0_266 = arith.constant 0 : index
    %262 = vector.load %arg10[%c0_264, %c0_265, %c0_266] : memref<3x32x96xbf16, #tpu.memory_space<vmem>>, vector<1x32x96xbf16>
    %263 = vector.shape_cast %262 : vector<1x32x96xbf16> to vector<32x96xbf16>
    %c0_267 = arith.constant 0 : index
    %c0_268 = arith.constant 0 : index
    %264 = vector.load %arg45[%c0_267, %c0_268] : memref<96x20xbf16, #tpu.memory_space<vmem>>, vector<96x8xbf16>
    %cst_269 = arith.constant dense<0.000000e+00> : vector<32x8xf32>
    %265 = tpu.matmul %263, %264, %cst_269 {dimension_numbers = #tpu.dot_dimension_numbers<[1], [0], [0], [1], [0, 0, 1, 1], [], []>} : vector<32x96xbf16>, vector<96x8xbf16>, vector<32x8xf32> -> vector<32x8xf32>
    %c1_270 = arith.constant 1 : index
    %c0_271 = arith.constant 0 : index
    %c0_272 = arith.constant 0 : index
    %266 = vector.load %arg10[%c1_270, %c0_271, %c0_272] : memref<3x32x96xbf16, #tpu.memory_space<vmem>>, vector<1x32x96xbf16>
    %267 = vector.shape_cast %266 : vector<1x32x96xbf16> to vector<32x96xbf16>
    %c0_273 = arith.constant 0 : index
    %c4_274 = arith.constant 4 : index
    %268 = vector.load %arg45[%c0_273, %c4_274] : memref<96x20xbf16, #tpu.memory_space<vmem>>, vector<96x8xbf16>
    %cst_275 = arith.constant dense<0.000000e+00> : vector<32x8xf32>
    %269 = tpu.matmul %267, %268, %cst_275 {dimension_numbers = #tpu.dot_dimension_numbers<[1], [0], [0], [1], [0, 0, 1, 1], [], []>} : vector<32x96xbf16>, vector<96x8xbf16>, vector<32x8xf32> -> vector<32x8xf32>
    %270 = arith.addf %265, %269 : vector<32x8xf32>
    %c2_276 = arith.constant 2 : index
    %c0_277 = arith.constant 0 : index
    %c0_278 = arith.constant 0 : index
    %271 = vector.load %arg10[%c2_276, %c0_277, %c0_278] : memref<3x32x96xbf16, #tpu.memory_space<vmem>>, vector<1x32x96xbf16>
    %272 = vector.shape_cast %271 : vector<1x32x96xbf16> to vector<32x96xbf16>
    %c0_279 = arith.constant 0 : index
    %c8_280 = arith.constant 8 : index
    %273 = vector.load %arg45[%c0_279, %c8_280] : memref<96x20xbf16, #tpu.memory_space<vmem>>, vector<96x8xbf16>
    %cst_281 = arith.constant dense<0.000000e+00> : vector<32x8xf32>
    %274 = tpu.matmul %272, %273, %cst_281 {dimension_numbers = #tpu.dot_dimension_numbers<[1], [0], [0], [1], [0, 0, 1, 1], [], []>} : vector<32x96xbf16>, vector<96x8xbf16>, vector<32x8xf32> -> vector<32x8xf32>
    %275 = arith.addf %270, %274 : vector<32x8xf32>
    %c0_282 = arith.constant 0 : index
    %c0_283 = arith.constant 0 : index
    %276 = vector.load %arg18[%c0_282, %c0_283] : memref<32x1xf32, #tpu.memory_space<vmem>>, vector<32x1xf32>
    %277 = vector.broadcast %276 : vector<32x1xf32> to vector<32x8xf32>
    %278 = arith.mulf %275, %277 : vector<32x8xf32>
    %c0_284 = arith.constant 0 : index
    %c0_285 = arith.constant 0 : index
    %279 = vector.load %arg26[%c0_284, %c0_285] : memref<32x1xf32, #tpu.memory_space<vmem>>, vector<32x1xf32>
    %280 = vector.broadcast %279 : vector<32x1xf32> to vector<32x8xf32>
    %281 = arith.addf %278, %280 : vector<32x8xf32>
    %cst_286 = arith.constant 0.000000e+00 : f32
    %282 = vector.broadcast %cst_286 : f32 to vector<32x8xf32>
    %283 = arith.maximumf %281, %282 : vector<32x8xf32>
    %284 = vector.extract_strided_slice %283 {offsets = [0, 0], sizes = [32, 2], strides = [1, 1]} : vector<32x8xf32> to vector<32x2xf32>
    %c0_287 = arith.constant 0 : index
    %c0_288 = arith.constant 0 : index
    %c0_289 = arith.constant 0 : index
    %285 = vector.load %arg37[%c0_287, %c0_288, %c0_289] : memref<1x32x4xf32, #tpu.memory_space<vmem>>, vector<1x32x2xf32>
    %286 = vector.shape_cast %285 : vector<1x32x2xf32> to vector<32x2xf32>
    %287 = vector.shape_cast %284 : vector<32x2xf32> to vector<1x32x2xf32>
    tpu.vector_store %arg37[%c0_287, %c0_288, %c0_289], %287 {strides = array<i32>} : memref<1x32x4xf32, #tpu.memory_space<vmem>>, vector<1x32x2xf32>,
    %288 = vector.extract_strided_slice %283 {offsets = [0, 4], sizes = [32, 2], strides = [1, 1]} : vector<32x8xf32> to vector<32x2xf32>
    %c0_290 = arith.constant 0 : index
    %c0_291 = arith.constant 0 : index
    %c2_292 = arith.constant 2 : index
    %289 = vector.load %arg37[%c0_290, %c0_291, %c2_292] : memref<1x32x4xf32, #tpu.memory_space<vmem>>, vector<1x32x2xf32>
    %290 = vector.shape_cast %289 : vector<1x32x2xf32> to vector<32x2xf32>
    %291 = vector.shape_cast %288 : vector<32x2xf32> to vector<1x32x2xf32>
    tpu.vector_store %arg37[%c0_290, %c0_291, %c2_292], %291 {strides = array<i32>} : memref<1x32x4xf32, #tpu.memory_space<vmem>>, vector<1x32x2xf32>,
    return
  }
  func.func @transform_0(%arg0: i32) -> (i32, i32, i32) {
    %c0_i32 = arith.constant 0 : i32
    %c0_i32_0 = arith.constant 0 : i32
    %c0_i32_1 = arith.constant 0 : i32
    return %arg0, %c0_i32, %c0_i32_0 : i32, i32, i32
  }
  func.func @transform_1(%arg0: i32) -> (i32, i32) {
    %c0_i32 = arith.constant 0 : i32
    %c0_i32_0 = arith.constant 0 : i32
    %c0_i32_1 = arith.constant 0 : i32
    return %c0_i32, %c0_i32_0 : i32, i32
  }
  func.func @transform_2(%arg0: i32) -> (i32, i32, i32) {
    %c0_i32 = arith.constant 0 : i32
    %c0_i32_0 = arith.constant 0 : i32
    %c0_i32_1 = arith.constant 0 : i32
    %c0_i32_2 = arith.constant 0 : i32
    return %c0_i32, %c0_i32_0, %c0_i32_1 : i32, i32, i32
  }
  func.func @transform_3(%arg0: i32) -> (i32, i32, i32) {
    %c0_i32 = arith.constant 0 : i32
    %c0_i32_0 = arith.constant 0 : i32
    %c0_i32_1 = arith.constant 0 : i32
    %c0_i32_2 = arith.constant 0 : i32
    return %c0_i32, %c0_i32_0, %c0_i32_1 : i32, i32, i32
  }
  func.func @transform_4(%arg0: i32) -> (i32, i32, i32) {
    %c0_i32 = arith.constant 0 : i32
    %c0_i32_0 = arith.constant 0 : i32
    %c0_i32_1 = arith.constant 0 : i32
    %c0_i32_2 = arith.constant 0 : i32
    return %c0_i32, %c0_i32_0, %c0_i32_1 : i32, i32, i32
  }
  func.func @transform_5(%arg0: i32) -> (i32, i32, i32) {
    %c0_i32 = arith.constant 0 : i32
    %c0_i32_0 = arith.constant 0 : i32
    %c0_i32_1 = arith.constant 0 : i32
    %c0_i32_2 = arith.constant 0 : i32
    return %c0_i32, %c0_i32_0, %c0_i32_1 : i32, i32, i32
  }
  func.func @transform_6(%arg0: i32) -> (i32, i32, i32) {
    %c0_i32 = arith.constant 0 : i32
    %c0_i32_0 = arith.constant 0 : i32
    %c0_i32_1 = arith.constant 0 : i32
    %c0_i32_2 = arith.constant 0 : i32
    return %c0_i32, %c0_i32_0, %c0_i32_1 : i32, i32, i32
  }
  func.func @transform_7(%arg0: i32) -> (i32, i32, i32) {
    %c0_i32 = arith.constant 0 : i32
    %c0_i32_0 = arith.constant 0 : i32
    %c0_i32_1 = arith.constant 0 : i32
    %c0_i32_2 = arith.constant 0 : i32
    return %c0_i32, %c0_i32_0, %c0_i32_1 : i32, i32, i32
  }
  func.func @transform_8(%arg0: i32) -> (i32, i32, i32) {
    %c0_i32 = arith.constant 0 : i32
    %c0_i32_0 = arith.constant 0 : i32
    %c0_i32_1 = arith.constant 0 : i32
    %c0_i32_2 = arith.constant 0 : i32
    return %c0_i32, %c0_i32_0, %c0_i32_1 : i32, i32, i32
  }
  func.func @transform_9(%arg0: i32) -> (i32, i32, i32) {
    %c0_i32 = arith.constant 0 : i32
    %c0_i32_0 = arith.constant 0 : i32
    %c0_i32_1 = arith.constant 0 : i32
    %c0_i32_2 = arith.constant 0 : i32
    return %c0_i32, %c0_i32_0, %c0_i32_1 : i32, i32, i32
  }
  func.func @transform_10(%arg0: i32) -> (i32, i32) {
    %c0_i32 = arith.constant 0 : i32
    %c0_i32_0 = arith.constant 0 : i32
    %c0_i32_1 = arith.constant 0 : i32
    return %c0_i32, %c0_i32_0 : i32, i32
  }
  func.func @transform_11(%arg0: i32) -> (i32, i32) {
    %c0_i32 = arith.constant 0 : i32
    %c0_i32_0 = arith.constant 0 : i32
    %c0_i32_1 = arith.constant 0 : i32
    return %c0_i32, %c0_i32_0 : i32, i32
  }
  func.func @transform_12(%arg0: i32) -> (i32, i32) {
    %c0_i32 = arith.constant 0 : i32
    %c0_i32_0 = arith.constant 0 : i32
    %c0_i32_1 = arith.constant 0 : i32
    return %c0_i32, %c0_i32_0 : i32, i32
  }
  func.func @transform_13(%arg0: i32) -> (i32, i32) {
    %c0_i32 = arith.constant 0 : i32
    %c0_i32_0 = arith.constant 0 : i32
    %c0_i32_1 = arith.constant 0 : i32
    return %c0_i32, %c0_i32_0 : i32, i32
  }
  func.func @transform_14(%arg0: i32) -> (i32, i32) {
    %c0_i32 = arith.constant 0 : i32
    %c0_i32_0 = arith.constant 0 : i32
    %c0_i32_1 = arith.constant 0 : i32
    return %c0_i32, %c0_i32_0 : i32, i32
  }
  func.func @transform_15(%arg0: i32) -> (i32, i32) {
    %c0_i32 = arith.constant 0 : i32
    %c0_i32_0 = arith.constant 0 : i32
    %c0_i32_1 = arith.constant 0 : i32
    return %c0_i32, %c0_i32_0 : i32, i32
  }
  func.func @transform_16(%arg0: i32) -> (i32, i32) {
    %c0_i32 = arith.constant 0 : i32
    %c0_i32_0 = arith.constant 0 : i32
    %c0_i32_1 = arith.constant 0 : i32
    return %c0_i32, %c0_i32_0 : i32, i32
  }
  func.func @transform_17(%arg0: i32) -> (i32, i32) {
    %c0_i32 = arith.constant 0 : i32
    %c0_i32_0 = arith.constant 0 : i32
    %c0_i32_1 = arith.constant 0 : i32
    return %c0_i32, %c0_i32_0 : i32, i32
  }
  func.func @transform_18(%arg0: i32) -> (i32, i32) {
    %c0_i32 = arith.constant 0 : i32
    %c0_i32_0 = arith.constant 0 : i32
    %c0_i32_1 = arith.constant 0 : i32
    return %c0_i32, %c0_i32_0 : i32, i32
  }
  func.func @transform_19(%arg0: i32) -> (i32, i32) {
    %c0_i32 = arith.constant 0 : i32
    %c0_i32_0 = arith.constant 0 : i32
    %c0_i32_1 = arith.constant 0 : i32
    return %c0_i32, %c0_i32_0 : i32, i32
  }
  func.func @transform_20(%arg0: i32) -> (i32, i32) {
    %c0_i32 = arith.constant 0 : i32
    %c0_i32_0 = arith.constant 0 : i32
    %c0_i32_1 = arith.constant 0 : i32
    return %c0_i32, %c0_i32_0 : i32, i32
  }
  func.func @transform_21(%arg0: i32) -> (i32, i32) {
    %c0_i32 = arith.constant 0 : i32
    %c0_i32_0 = arith.constant 0 : i32
    %c0_i32_1 = arith.constant 0 : i32
    return %c0_i32, %c0_i32_0 : i32, i32
  }
  func.func @transform_22(%arg0: i32) -> (i32, i32) {
    %c0_i32 = arith.constant 0 : i32
    %c0_i32_0 = arith.constant 0 : i32
    %c0_i32_1 = arith.constant 0 : i32
    return %c0_i32, %c0_i32_0 : i32, i32
  }
  func.func @transform_23(%arg0: i32) -> (i32, i32) {
    %c0_i32 = arith.constant 0 : i32
    %c0_i32_0 = arith.constant 0 : i32
    %c0_i32_1 = arith.constant 0 : i32
    return %c0_i32, %c0_i32_0 : i32, i32
  }
  func.func @transform_24(%arg0: i32) -> (i32, i32) {
    %c0_i32 = arith.constant 0 : i32
    %c0_i32_0 = arith.constant 0 : i32
    %c0_i32_1 = arith.constant 0 : i32
    return %c0_i32, %c0_i32_0 : i32, i32
  }
  func.func @transform_25(%arg0: i32) -> (i32, i32) {
    %c0_i32 = arith.constant 0 : i32
    %c0_i32_0 = arith.constant 0 : i32
    %c0_i32_1 = arith.constant 0 : i32
    return %c0_i32, %c0_i32_0 : i32, i32
  }
  func.func @transform_26(%arg0: i32) -> (i32, i32) {
    %c0_i32 = arith.constant 0 : i32
    %c0_i32_0 = arith.constant 0 : i32
    %c0_i32_1 = arith.constant 0 : i32
    return %c0_i32, %c0_i32_0 : i32, i32
  }
  func.func @transform_27(%arg0: i32) -> (i32, i32) {
    %c0_i32 = arith.constant 0 : i32
    %c0_i32_0 = arith.constant 0 : i32
    %c0_i32_1 = arith.constant 0 : i32
    return %c0_i32, %c0_i32_0 : i32, i32
  }
  func.func @transform_28(%arg0: i32) -> (i32, i32) {
    %c0_i32 = arith.constant 0 : i32
    %c0_i32_0 = arith.constant 0 : i32
    %c0_i32_1 = arith.constant 0 : i32
    return %c0_i32, %c0_i32_0 : i32, i32
  }
  func.func @transform_29(%arg0: i32) -> (i32, i32) {
    %c0_i32 = arith.constant 0 : i32
    %c0_i32_0 = arith.constant 0 : i32
    %c0_i32_1 = arith.constant 0 : i32
    return %c0_i32, %c0_i32_0 : i32, i32
  }
  func.func @transform_30(%arg0: i32) -> (i32, i32) {
    %c0_i32 = arith.constant 0 : i32
    %c0_i32_0 = arith.constant 0 : i32
    %c0_i32_1 = arith.constant 0 : i32
    return %c0_i32, %c0_i32_0 : i32, i32
  }
  func.func @transform_31(%arg0: i32) -> (i32, i32) {
    %c0_i32 = arith.constant 0 : i32
    %c0_i32_0 = arith.constant 0 : i32
    %c0_i32_1 = arith.constant 0 : i32
    return %c0_i32, %c0_i32_0 : i32, i32
  }
  func.func @transform_32(%arg0: i32) -> (i32, i32) {
    %c0_i32 = arith.constant 0 : i32
    %c0_i32_0 = arith.constant 0 : i32
    %c0_i32_1 = arith.constant 0 : i32
    return %c0_i32, %c0_i32_0 : i32, i32
  }
  func.func @transform_33(%arg0: i32) -> (i32, i32) {
    %c0_i32 = arith.constant 0 : i32
    %c0_i32_0 = arith.constant 0 : i32
    %c0_i32_1 = arith.constant 0 : i32
    return %c0_i32, %c0_i32_0 : i32, i32
  }
  func.func @transform_34(%arg0: i32) -> (i32, i32) {
    %c0_i32 = arith.constant 0 : i32
    %c0_i32_0 = arith.constant 0 : i32
    %c0_i32_1 = arith.constant 0 : i32
    return %c0_i32, %c0_i32_0 : i32, i32
  }
  func.func @transform_35(%arg0: i32) -> (i32, i32) {
    %c0_i32 = arith.constant 0 : i32
    %c0_i32_0 = arith.constant 0 : i32
    %c0_i32_1 = arith.constant 0 : i32
    return %c0_i32, %c0_i32_0 : i32, i32
  }
  func.func @transform_36(%arg0: i32) -> (i32, i32, i32) {
    %c0_i32 = arith.constant 0 : i32
    %c0_i32_0 = arith.constant 0 : i32
    %c0_i32_1 = arith.constant 0 : i32
    return %arg0, %c0_i32, %c0_i32_0 : i32, i32, i32
  }
}

</mosaic_0001>

<llo_original>
// kernel: _lambda_.1
$region0: #{_lambda_.1}
  #allocation0 [shape = 'u32[]', space=smem, size = 0x4, offset = 0x4, fixed_abs, tag = 'smem constant byte address 0x4 - core index']
  #allocation1 [shape = 'u32[144,128]{1,0:T(1,128)}', space=vmem, size = 0x12000, scoped, tag = 'internal scratch']
  #allocation2 [shape = 'bf16[9,342]{1,0:T(8,128)(2,1)}', space=vmem, size = 0x3000, scoped, tag = 'scratch operand']
  #allocation3 [shape = 'bf16[24,342]{1,0:T(8,128)(2,1)}', space=vmem, size = 0x4800, scoped, tag = 'scratch operand']
  #allocation4 [shape = 'bf16[24,110]{1,0:T(8,128)(2,1)}', space=vmem, size = 0x1800, scoped, tag = 'scratch operand']
  #allocation5 [shape = 'bf16[48,110]{1,0:T(16,128)(2,1)}', space=vmem, size = 0x3000, scoped, tag = 'scratch operand']
  #allocation6 [shape = 'bf16[48,42]{1,0:T(16,128)(2,1)}', space=vmem, size = 0x3000, scoped, tag = 'scratch operand']
  #allocation7 [shape = 'bf16[96,42]{1,0:T(16,128)(2,1)}', space=vmem, size = 0x6000, scoped, tag = 'scratch operand']
  #allocation8 [shape = 'bf16[96,20]{1,0:T(16,128)(2,1)}', space=vmem, size = 0x6000, scoped, tag = 'scratch operand']
  #allocation9 [shape = 'bf16[96,20]{1,0:T(16,128)(2,1)}', space=vmem, size = 0x6000, scoped, tag = 'scratch operand']
  %s0 = inlined_call_operand.smem [shape: u32[37], index: -1, kind: input, shape index: {}]
  %s1 = sld [smem:[%s0]]
  %s2 = scalar_lea.smem %s0, 1
  %s3 = sld [smem:[%s2]]
  %s4 = scalar_lea.smem %s0, 2
  %s5 = sld [smem:[%s4]]
  %s6 = scalar_lea.smem %s0, 3
  %s7 = sld [smem:[%s6]]
  %s8 = scalar_lea.smem %s0, 4
  %s9 = sld [smem:[%s8]]
  %s10 = scalar_lea.smem %s0, 5
  %s11 = sld [smem:[%s10]]
  %s12 = scalar_lea.smem %s0, 6
  %s13 = sld [smem:[%s12]]
  %s14 = scalar_lea.smem %s0, 7
  %s15 = sld [smem:[%s14]]
  %s16 = scalar_lea.smem %s0, 8
  %s17 = sld [smem:[%s16]]
  %s18 = scalar_lea.smem %s0, 9
  %s19 = sld [smem:[%s18]]
  %s20 = scalar_lea.smem %s0, 10
  %s21 = sld [smem:[%s20]]
  %s22 = scalar_lea.smem %s0, 11
  %s23 = sld [smem:[%s22]]
  %s24 = scalar_lea.smem %s0, 12
  %s25 = sld [smem:[%s24]]
  %s26 = scalar_lea.smem %s0, 13
  %s27 = sld [smem:[%s26]]
  %s28 = scalar_lea.smem %s0, 14
  %s29 = sld [smem:[%s28]]
  %s30 = scalar_lea.smem %s0, 15
  %s31 = sld [smem:[%s30]]
  %s32 = scalar_lea.smem %s0, 16
  %s33 = sld [smem:[%s32]]
  %s34 = scalar_lea.smem %s0, 17
  %s35 = sld [smem:[%s34]]
  %s36 = scalar_lea.smem %s0, 18
  %s37 = sld [smem:[%s36]]
  %s38 = scalar_lea.smem %s0, 19
  %s39 = sld [smem:[%s38]]
  %s40 = scalar_lea.smem %s0, 20
  %s41 = sld [smem:[%s40]]
  %s42 = scalar_lea.smem %s0, 21
  %s43 = sld [smem:[%s42]]
  %s44 = scalar_lea.smem %s0, 22
  %s45 = sld [smem:[%s44]]
  %s46 = scalar_lea.smem %s0, 23
  %s47 = sld [smem:[%s46]]
  %s48 = scalar_lea.smem %s0, 24
  %s49 = sld [smem:[%s48]]
  %s50 = scalar_lea.smem %s0, 25
  %s51 = sld [smem:[%s50]]
  %s52 = scalar_lea.smem %s0, 26
  %s53 = sld [smem:[%s52]]
  %s54 = scalar_lea.smem %s0, 27
  %s55 = sld [smem:[%s54]]
  %s56 = scalar_lea.smem %s0, 28
  %s57 = sld [smem:[%s56]]
  %s58 = scalar_lea.smem %s0, 29
  %s59 = sld [smem:[%s58]]
  %s60 = scalar_lea.smem %s0, 30
  %s61 = sld [smem:[%s60]]
  %s62 = scalar_lea.smem %s0, 31
  %s63 = sld [smem:[%s62]]
  %s64 = scalar_lea.smem %s0, 32
  %s65 = sld [smem:[%s64]]
  %s66 = scalar_lea.smem %s0, 33
  %s67 = sld [smem:[%s66]]
  %s68 = scalar_lea.smem %s0, 34
  %s69 = sld [smem:[%s68]]
  %s70 = scalar_lea.smem %s0, 35
  %s71 = sld [smem:[%s70]]
  %s72 = scalar_lea.smem %s0, 36
  %s73 = sld [smem:[%s72]]
  %s74 = sld [smem:[#allocation0]]
  $region177: #{_lambda_.1} parent=0
    _
  %s76 = ssub.s32 1, %s74
  %s77 = scalar_select 0, %s76, %s74
  loop: start=0, step=1, limit=4
  $region2: #{_lambda_.1} parent=0 // loop_pre_header
    _
  $region3: #{_lambda_.1} parent=0 // loop_header
    %s79 = sphi 0, %s83
    %p80 = scmp.ge.s32.totalorder %s79, 4
    %s89 = sphi 0, %s91
    %s92 = sphi 0, %s89
    %s93 = sphi 0, %s92
    %s109 = sphi 0, %s93
    %s113 = sphi 0, %s113
    %s115 = sphi 0, %s113
    %s116 = sphi 0, %s115
    %s130 = sphi 0, %s116
    %s134 = sphi 0, %s134
    %s136 = sphi 0, %s134
    %s137 = sphi 0, %s136
    %s151 = sphi 0, %s137
    %s155 = sphi 0, %s155
    %s157 = sphi 0, %s155
    %s158 = sphi 0, %s157
    %s172 = sphi 0, %s158
    %s176 = sphi 0, %s176
    %s178 = sphi 0, %s176
    %s179 = sphi 0, %s178
    %s193 = sphi 0, %s179
    %s197 = sphi 0, %s197
    %s199 = sphi 0, %s197
    %s200 = sphi 0, %s199
    %s214 = sphi 0, %s200
    %s218 = sphi 0, %s218
    %s220 = sphi 0, %s218
    %s221 = sphi 0, %s220
    %s235 = sphi 0, %s221
    %s239 = sphi 0, %s239
    %s241 = sphi 0, %s239
    %s242 = sphi 0, %s241
    %s256 = sphi 0, %s242
    %s260 = sphi 0, %s260
    %s262 = sphi 0, %s260
    %s263 = sphi 0, %s262
    %s277 = sphi 0, %s263
    %s281 = sphi 0, %s281
    %s283 = sphi 0, %s281
    %s284 = sphi 0, %s283
    %s298 = sphi 0, %s284
    %s302 = sphi 0, %s302
    %s304 = sphi 0, %s302
    %s305 = sphi 0, %s304
    %s319 = sphi 0, %s305
    %s323 = sphi 0, %s323
    %s325 = sphi 0, %s323
    %s326 = sphi 0, %s325
    %s340 = sphi 0, %s326
    %s344 = sphi 0, %s344
    %s346 = sphi 0, %s344
    %s347 = sphi 0, %s346
    %s361 = sphi 0, %s347
    %s365 = sphi 0, %s365
    %s367 = sphi 0, %s365
    %s368 = sphi 0, %s367
    %s382 = sphi 0, %s368
    %s386 = sphi 0, %s386
    %s388 = sphi 0, %s386
    %s389 = sphi 0, %s388
    %s403 = sphi 0, %s389
    %s407 = sphi 0, %s407
    %s409 = sphi 0, %s407
    %s410 = sphi 0, %s409
    %s424 = sphi 0, %s410
    %s428 = sphi 0, %s428
    %s430 = sphi 0, %s428
    %s431 = sphi 0, %s430
    %s445 = sphi 0, %s431
    %s449 = sphi 0, %s449
    %s451 = sphi 0, %s449
    %s452 = sphi 0, %s451
    %s466 = sphi 0, %s452
    %s470 = sphi 0, %s470
    %s472 = sphi 0, %s470
    %s473 = sphi 0, %s472
    %s487 = sphi 0, %s473
    %s491 = sphi 0, %s491
    %s493 = sphi 0, %s491
    %s494 = sphi 0, %s493
    %s508 = sphi 0, %s494
    %s512 = sphi 0, %s512
    %s514 = sphi 0, %s512
    %s515 = sphi 0, %s514
    %s529 = sphi 0, %s515
    %s533 = sphi 0, %s533
    %s535 = sphi 0, %s533
    %s536 = sphi 0, %s535
    %s550 = sphi 0, %s536
    %s554 = sphi 0, %s554
    %s556 = sphi 0, %s554
    %s557 = sphi 0, %s556
    %s571 = sphi 0, %s557
    %s575 = sphi 0, %s575
    %s577 = sphi 0, %s575
    %s578 = sphi 0, %s577
    %s592 = sphi 0, %s578
    %s596 = sphi 0, %s596
    %s598 = sphi 0, %s596
    %s599 = sphi 0, %s598
    %s613 = sphi 0, %s599
    %s617 = sphi 0, %s617
    %s619 = sphi 0, %s617
    %s620 = sphi 0, %s619
    %s634 = sphi 0, %s620
    %s638 = sphi 0, %s638
    %s640 = sphi 0, %s638
    %s641 = sphi 0, %s640
    %s655 = sphi 0, %s641
    %s659 = sphi 0, %s659
    %s661 = sphi 0, %s659
    %s662 = sphi 0, %s661
    %s676 = sphi 0, %s662
    %s680 = sphi 0, %s680
    %s682 = sphi 0, %s680
    %s683 = sphi 0, %s682
    %s697 = sphi 0, %s683
    %s701 = sphi 0, %s701
    %s703 = sphi 0, %s701
    %s704 = sphi 0, %s703
    %s718 = sphi 0, %s704
    %s722 = sphi 0, %s722
    %s724 = sphi 0, %s722
    %s725 = sphi 0, %s724
    %s739 = sphi 0, %s725
    %s743 = sphi 0, %s743
    %s745 = sphi 0, %s743
    %s746 = sphi 0, %s745
    %s760 = sphi 0, %s746
    %s764 = sphi 0, %s764
    %s766 = sphi 0, %s764
    %s767 = sphi 0, %s766
    %s781 = sphi 0, %s767
    %s785 = sphi 0, %s785
    %s787 = sphi 0, %s785
    %s788 = sphi 0, %s787
    %s802 = sphi 0, %s788
    %s806 = sphi 0, %s806
    %s808 = sphi 0, %s806
    %s809 = sphi 0, %s808
    %s823 = sphi 0, %s809
    %s827 = sphi 0, %s827
    %s829 = sphi 0, %s827
    %s830 = sphi 0, %s829
    %s844 = sphi 0, %s830
    %s850 = sphi 0, %s852
    %s853 = sphi 0, %s850
    %s854 = sphi 0, %s853
    %s870 = sphi 0, %s854
  $region4: #{_lambda_.1} parent=0 // loop_header_branch
    %82 = sbr.rel (%p80) target = $region8
  $region5: #{_lambda_.1} parent=0 // loop_body
    %s84 = ssub.s32 %s79, 1
    %s85 = ssub.s32 %s79, 2
    %s86 = sadd.s32 %s79, 1
    %s87 = ssub.s32 %s79, %s86
    %p88 = scmp.eq.s32.totalorder %s87, 0
    %s90 = sadd.s32 %s89, 1
    %s91 = scalar_select %p88, %s89, %s90
    %p94 = pneg %p88
    %p95 = scmp.eq.s32.totalorder %s79, 1
    %p96 = por %p94, %p95
    %p97 = scmp.ne.s32.totalorder %s89, %s92
    %p98 = scmp.eq.s32.totalorder %s79, 0
    %p99 = por %p97, %p98
    %p100 = scmp.ne.s32.totalorder %s89, %s92
    %p101 = scmp.eq.s32.totalorder %s84, 1
    %p102 = por %p100, %p101
    %p103 = scmp.ne.s32.totalorder %s92, %s93
    %p104 = scmp.eq.s32.totalorder %s84, 0
    %p105 = por %p103, %p104
    %p106 = scmp.ne.s32.totalorder %s92, %s93
    %p107 = scmp.eq.s32.totalorder %s85, 1
    %p108 = por %p106, %p107
    %p110 = scmp.ne.s32.totalorder %s93, %s109
    %p111 = scmp.eq.s32.totalorder %s85, 0
    %p112 = por %p110, %p111
    %s114 = sadd.s32 %s113, 1
    %p117 = scmp.eq.s32.totalorder %s79, 1
    %p118 = scmp.ne.s32.totalorder %s113, %s115
    %p119 = scmp.eq.s32.totalorder %s79, 0
    %p120 = por %p118, %p119
    %p121 = scmp.ne.s32.totalorder %s113, %s115
    %p122 = scmp.eq.s32.totalorder %s84, 1
    %p123 = por %p121, %p122
    %p124 = scmp.ne.s32.totalorder %s115, %s116
    %p125 = scmp.eq.s32.totalorder %s84, 0
    %p126 = por %p124, %p125
    %p127 = scmp.ne.s32.totalorder %s115, %s116
    %p128 = scmp.eq.s32.totalorder %s85, 1
    %p129 = por %p127, %p128
    %p131 = scmp.ne.s32.totalorder %s116, %s130
    %p132 = scmp.eq.s32.totalorder %s85, 0
    %p133 = por %p131, %p132
    %s135 = sadd.s32 %s134, 1
    %p138 = scmp.eq.s32.totalorder %s79, 1
    %p139 = scmp.ne.s32.totalorder %s134, %s136
    %p140 = scmp.eq.s32.totalorder %s79, 0
    %p141 = por %p139, %p140
    %p142 = scmp.ne.s32.totalorder %s134, %s136
    %p143 = scmp.eq.s32.totalorder %s84, 1
    %p144 = por %p142, %p143
    %p145 = scmp.ne.s32.totalorder %s136, %s137
    %p146 = scmp.eq.s32.totalorder %s84, 0
    %p147 = por %p145, %p146
    %p148 = scmp.ne.s32.totalorder %s136, %s137
    %p149 = scmp.eq.s32.totalorder %s85, 1
    %p150 = por %p148, %p149
    %p152 = scmp.ne.s32.totalorder %s137, %s151
    %p153 = scmp.eq.s32.totalorder %s85, 0
    %p154 = por %p152, %p153
    %s156 = sadd.s32 %s155, 1
    %p159 = scmp.eq.s32.totalorder %s79, 1
    %p160 = scmp.ne.s32.totalorder %s155, %s157
    %p161 = scmp.eq.s32.totalorder %s79, 0
    %p162 = por %p160, %p161
    %p163 = scmp.ne.s32.totalorder %s155, %s157
    %p164 = scmp.eq.s32.totalorder %s84, 1
    %p165 = por %p163, %p164
    %p166 = scmp.ne.s32.totalorder %s157, %s158
    %p167 = scmp.eq.s32.totalorder %s84, 0
    %p168 = por %p166, %p167
    %p169 = scmp.ne.s32.totalorder %s157, %s158
    %p170 = scmp.eq.s32.totalorder %s85, 1
    %p171 = por %p169, %p170
    %p173 = scmp.ne.s32.totalorder %s158, %s172
    %p174 = scmp.eq.s32.totalorder %s85, 0
    %p175 = por %p173, %p174
    %s177 = sadd.s32 %s176, 1
    %p180 = scmp.eq.s32.totalorder %s79, 1
    %p181 = scmp.ne.s32.totalorder %s176, %s178
    %p182 = scmp.eq.s32.totalorder %s79, 0
    %p183 = por %p181, %p182
    %p184 = scmp.ne.s32.totalorder %s176, %s178
    %p185 = scmp.eq.s32.totalorder %s84, 1
    %p186 = por %p184, %p185
    %p187 = scmp.ne.s32.totalorder %s178, %s179
    %p188 = scmp.eq.s32.totalorder %s84, 0
    %p189 = por %p187, %p188
    %p190 = scmp.ne.s32.totalorder %s178, %s179
    %p191 = scmp.eq.s32.totalorder %s85, 1
    %p192 = por %p190, %p191
    %p194 = scmp.ne.s32.totalorder %s179, %s193
    %p195 = scmp.eq.s32.totalorder %s85, 0
    %p196 = por %p194, %p195
    %s198 = sadd.s32 %s197, 1
    %p201 = scmp.eq.s32.totalorder %s79, 1
    %p202 = scmp.ne.s32.totalorder %s197, %s199
    %p203 = scmp.eq.s32.totalorder %s79, 0
    %p204 = por %p202, %p203
    %p205 = scmp.ne.s32.totalorder %s197, %s199
    %p206 = scmp.eq.s32.totalorder %s84, 1
    %p207 = por %p205, %p206
    %p208 = scmp.ne.s32.totalorder %s199, %s200
    %p209 = scmp.eq.s32.totalorder %s84, 0
    %p210 = por %p208, %p209
    %p211 = scmp.ne.s32.totalorder %s199, %s200
    %p212 = scmp.eq.s32.totalorder %s85, 1
    %p213 = por %p211, %p212
    %p215 = scmp.ne.s32.totalorder %s200, %s214
    %p216 = scmp.eq.s32.totalorder %s85, 0
    %p217 = por %p215, %p216
    %s219 = sadd.s32 %s218, 1
    %p222 = scmp.eq.s32.totalorder %s79, 1
    %p223 = scmp.ne.s32.totalorder %s218, %s220
    %p224 = scmp.eq.s32.totalorder %s79, 0
    %p225 = por %p223, %p224
    %p226 = scmp.ne.s32.totalorder %s218, %s220
    %p227 = scmp.eq.s32.totalorder %s84, 1
    %p228 = por %p226, %p227
    %p229 = scmp.ne.s32.totalorder %s220, %s221
    %p230 = scmp.eq.s32.totalorder %s84, 0
    %p231 = por %p229, %p230
    %p232 = scmp.ne.s32.totalorder %s220, %s221
    %p233 = scmp.eq.s32.totalorder %s85, 1
    %p234 = por %p232, %p233
    %p236 = scmp.ne.s32.totalorder %s221, %s235
    %p237 = scmp.eq.s32.totalorder %s85, 0
    %p238 = por %p236, %p237
    %s240 = sadd.s32 %s239, 1
    %p243 = scmp.eq.s32.totalorder %s79, 1
    %p244 = scmp.ne.s32.totalorder %s239, %s241
    %p245 = scmp.eq.s32.totalorder %s79, 0
    %p246 = por %p244, %p245
    %p247 = scmp.ne.s32.totalorder %s239, %s241
    %p248 = scmp.eq.s32.totalorder %s84, 1
    %p249 = por %p247, %p248
    %p250 = scmp.ne.s32.totalorder %s241, %s242
    %p251 = scmp.eq.s32.totalorder %s84, 0
    %p252 = por %p250, %p251
    %p253 = scmp.ne.s32.totalorder %s241, %s242
    %p254 = scmp.eq.s32.totalorder %s85, 1
    %p255 = por %p253, %p254
    %p257 = scmp.ne.s32.totalorder %s242, %s256
    %p258 = scmp.eq.s32.totalorder %s85, 0
    %p259 = por %p257, %p258
    %s261 = sadd.s32 %s260, 1
    %p264 = scmp.eq.s32.totalorder %s79, 1
    %p265 = scmp.ne.s32.totalorder %s260, %s262
    %p266 = scmp.eq.s32.totalorder %s79, 0
    %p267 = por %p265, %p266
    %p268 = scmp.ne.s32.totalorder %s260, %s262
    %p269 = scmp.eq.s32.totalorder %s84, 1
    %p270 = por %p268, %p269
    %p271 = scmp.ne.s32.totalorder %s262, %s263
    %p272 = scmp.eq.s32.totalorder %s84, 0
    %p273 = por %p271, %p272
    %p274 = scmp.ne.s32.totalorder %s262, %s263
    %p275 = scmp.eq.s32.totalorder %s85, 1
    %p276 = por %p274, %p275
    %p278 = scmp.ne.s32.totalorder %s263, %s277
    %p279 = scmp.eq.s32.totalorder %s85, 0
    %p280 = por %p278, %p279
    %s282 = sadd.s32 %s281, 1
    %p285 = scmp.eq.s32.totalorder %s79, 1
    %p286 = scmp.ne.s32.totalorder %s281, %s283
    %p287 = scmp.eq.s32.totalorder %s79, 0
    %p288 = por %p286, %p287
    %p289 = scmp.ne.s32.totalorder %s281, %s283
    %p290 = scmp.eq.s32.totalorder %s84, 1
    %p291 = por %p289, %p290
    %p292 = scmp.ne.s32.totalorder %s283, %s284
    %p293 = scmp.eq.s32.totalorder %s84, 0
    %p294 = por %p292, %p293
    %p295 = scmp.ne.s32.totalorder %s283, %s284
    %p296 = scmp.eq.s32.totalorder %s85, 1
    %p297 = por %p295, %p296
    %p299 = scmp.ne.s32.totalorder %s284, %s298
    %p300 = scmp.eq.s32.totalorder %s85, 0
    %p301 = por %p299, %p300
    %s303 = sadd.s32 %s302, 1
    %p306 = scmp.eq.s32.totalorder %s79, 1
    %p307 = scmp.ne.s32.totalorder %s302, %s304
    %p308 = scmp.eq.s32.totalorder %s79, 0
    %p309 = por %p307, %p308
    %p310 = scmp.ne.s32.totalorder %s302, %s304
    %p311 = scmp.eq.s32.totalorder %s84, 1
    %p312 = por %p310, %p311
    %p313 = scmp.ne.s32.totalorder %s304, %s305
    %p314 = scmp.eq.s32.totalorder %s84, 0
    %p315 = por %p313, %p314
    %p316 = scmp.ne.s32.totalorder %s304, %s305
    %p317 = scmp.eq.s32.totalorder %s85, 1
    %p318 = por %p316, %p317
    %p320 = scmp.ne.s32.totalorder %s305, %s319
    %p321 = scmp.eq.s32.totalorder %s85, 0
    %p322 = por %p320, %p321
    %s324 = sadd.s32 %s323, 1
    %p327 = scmp.eq.s32.totalorder %s79, 1
    %p328 = scmp.ne.s32.totalorder %s323, %s325
    %p329 = scmp.eq.s32.totalorder %s79, 0
    %p330 = por %p328, %p329
    %p331 = scmp.ne.s32.totalorder %s323, %s325
    %p332 = scmp.eq.s32.totalorder %s84, 1
    %p333 = por %p331, %p332
    %p334 = scmp.ne.s32.totalorder %s325, %s326
    %p335 = scmp.eq.s32.totalorder %s84, 0
    %p336 = por %p334, %p335
    %p337 = scmp.ne.s32.totalorder %s325, %s326
    %p338 = scmp.eq.s32.totalorder %s85, 1
    %p339 = por %p337, %p338
    %p341 = scmp.ne.s32.totalorder %s326, %s340
    %p342 = scmp.eq.s32.totalorder %s85, 0
    %p343 = por %p341, %p342
    %s345 = sadd.s32 %s344, 1
    %p348 = scmp.eq.s32.totalorder %s79, 1
    %p349 = scmp.ne.s32.totalorder %s344, %s346
    %p350 = scmp.eq.s32.totalorder %s79, 0
    %p351 = por %p349, %p350
    %p352 = scmp.ne.s32.totalorder %s344, %s346
    %p353 = scmp.eq.s32.totalorder %s84, 1
    %p354 = por %p352, %p353
    %p355 = scmp.ne.s32.totalorder %s346, %s347
    %p356 = scmp.eq.s32.totalorder %s84, 0
    %p357 = por %p355, %p356
    %p358 = scmp.ne.s32.totalorder %s346, %s347
    %p359 = scmp.eq.s32.totalorder %s85, 1
    %p360 = por %p358, %p359
    %p362 = scmp.ne.s32.totalorder %s347, %s361
    %p363 = scmp.eq.s32.totalorder %s85, 0
    %p364 = por %p362, %p363
    %s366 = sadd.s32 %s365, 1
    %p369 = scmp.eq.s32.totalorder %s79, 1
    %p370 = scmp.ne.s32.totalorder %s365, %s367
    %p371 = scmp.eq.s32.totalorder %s79, 0
    %p372 = por %p370, %p371
    %p373 = scmp.ne.s32.totalorder %s365, %s367
    %p374 = scmp.eq.s32.totalorder %s84, 1
    %p375 = por %p373, %p374
    %p376 = scmp.ne.s32.totalorder %s367, %s368
    %p377 = scmp.eq.s32.totalorder %s84, 0
    %p378 = por %p376, %p377
    %p379 = scmp.ne.s32.totalorder %s367, %s368
    %p380 = scmp.eq.s32.totalorder %s85, 1
    %p381 = por %p379, %p380
    %p383 = scmp.ne.s32.totalorder %s368, %s382
    %p384 = scmp.eq.s32.totalorder %s85, 0
    %p385 = por %p383, %p384
    %s387 = sadd.s32 %s386, 1
    %p390 = scmp.eq.s32.totalorder %s79, 1
    %p391 = scmp.ne.s32.totalorder %s386, %s388
    %p392 = scmp.eq.s32.totalorder %s79, 0
    %p393 = por %p391, %p392
    %p394 = scmp.ne.s32.totalorder %s386, %s388
    %p395 = scmp.eq.s32.totalorder %s84, 1
    %p396 = por %p394, %p395
    %p397 = scmp.ne.s32.totalorder %s388, %s389
    %p398 = scmp.eq.s32.totalorder %s84, 0
    %p399 = por %p397, %p398
    %p400 = scmp.ne.s32.totalorder %s388, %s389
    %p401 = scmp.eq.s32.totalorder %s85, 1
    %p402 = por %p400, %p401
    %p404 = scmp.ne.s32.totalorder %s389, %s403
    %p405 = scmp.eq.s32.totalorder %s85, 0
    %p406 = por %p404, %p405
    %s408 = sadd.s32 %s407, 1
    %p411 = scmp.eq.s32.totalorder %s79, 1
    %p412 = scmp.ne.s32.totalorder %s407, %s409
    %p413 = scmp.eq.s32.totalorder %s79, 0
    %p414 = por %p412, %p413
    %p415 = scmp.ne.s32.totalorder %s407, %s409
    %p416 = scmp.eq.s32.totalorder %s84, 1
    %p417 = por %p415, %p416
    %p418 = scmp.ne.s32.totalorder %s409, %s410
    %p419 = scmp.eq.s32.totalorder %s84, 0
    %p420 = por %p418, %p419
    %p421 = scmp.ne.s32.totalorder %s409, %s410
    %p422 = scmp.eq.s32.totalorder %s85, 1
    %p423 = por %p421, %p422
    %p425 = scmp.ne.s32.totalorder %s410, %s424
    %p426 = scmp.eq.s32.totalorder %s85, 0
    %p427 = por %p425, %p426
    %s429 = sadd.s32 %s428, 1
    %p432 = scmp.eq.s32.totalorder %s79, 1
    %p433 = scmp.ne.s32.totalorder %s428, %s430
    %p434 = scmp.eq.s32.totalorder %s79, 0
    %p435 = por %p433, %p434
    %p436 = scmp.ne.s32.totalorder %s428, %s430
    %p437 = scmp.eq.s32.totalorder %s84, 1
    %p438 = por %p436, %p437
    %p439 = scmp.ne.s32.totalorder %s430, %s431
    %p440 = scmp.eq.s32.totalorder %s84, 0
    %p441 = por %p439, %p440
    %p442 = scmp.ne.s32.totalorder %s430, %s431
    %p443 = scmp.eq.s32.totalorder %s85, 1
    %p444 = por %p442, %p443
    %p446 = scmp.ne.s32.totalorder %s431, %s445
    %p447 = scmp.eq.s32.totalorder %s85, 0
    %p448 = por %p446, %p447
    %s450 = sadd.s32 %s449, 1
    %p453 = scmp.eq.s32.totalorder %s79, 1
    %p454 = scmp.ne.s32.totalorder %s449, %s451
    %p455 = scmp.eq.s32.totalorder %s79, 0
    %p456 = por %p454, %p455
    %p457 = scmp.ne.s32.totalorder %s449, %s451
    %p458 = scmp.eq.s32.totalorder %s84, 1
    %p459 = por %p457, %p458
    %p460 = scmp.ne.s32.totalorder %s451, %s452
    %p461 = scmp.eq.s32.totalorder %s84, 0
    %p462 = por %p460, %p461
    %p463 = scmp.ne.s32.totalorder %s451, %s452
    %p464 = scmp.eq.s32.totalorder %s85, 1
    %p465 = por %p463, %p464
    %p467 = scmp.ne.s32.totalorder %s452, %s466
    %p468 = scmp.eq.s32.totalorder %s85, 0
    %p469 = por %p467, %p468
    %s471 = sadd.s32 %s470, 1
    %p474 = scmp.eq.s32.totalorder %s79, 1
    %p475 = scmp.ne.s32.totalorder %s470, %s472
    %p476 = scmp.eq.s32.totalorder %s79, 0
    %p477 = por %p475, %p476
    %p478 = scmp.ne.s32.totalorder %s470, %s472
    %p479 = scmp.eq.s32.totalorder %s84, 1
    %p480 = por %p478, %p479
    %p481 = scmp.ne.s32.totalorder %s472, %s473
    %p482 = scmp.eq.s32.totalorder %s84, 0
    %p483 = por %p481, %p482
    %p484 = scmp.ne.s32.totalorder %s472, %s473
    %p485 = scmp.eq.s32.totalorder %s85, 1
    %p486 = por %p484, %p485
    %p488 = scmp.ne.s32.totalorder %s473, %s487
    %p489 = scmp.eq.s32.totalorder %s85, 0
    %p490 = por %p488, %p489
    %s492 = sadd.s32 %s491, 1
    %p495 = scmp.eq.s32.totalorder %s79, 1
    %p496 = scmp.ne.s32.totalorder %s491, %s493
    %p497 = scmp.eq.s32.totalorder %s79, 0
    %p498 = por %p496, %p497
    %p499 = scmp.ne.s32.totalorder %s491, %s493
    %p500 = scmp.eq.s32.totalorder %s84, 1
    %p501 = por %p499, %p500
    %p502 = scmp.ne.s32.totalorder %s493, %s494
    %p503 = scmp.eq.s32.totalorder %s84, 0
    %p504 = por %p502, %p503
    %p505 = scmp.ne.s32.totalorder %s493, %s494
    %p506 = scmp.eq.s32.totalorder %s85, 1
    %p507 = por %p505, %p506
    %p509 = scmp.ne.s32.totalorder %s494, %s508
    %p510 = scmp.eq.s32.totalorder %s85, 0
    %p511 = por %p509, %p510
    %s513 = sadd.s32 %s512, 1
    %p516 = scmp.eq.s32.totalorder %s79, 1
    %p517 = scmp.ne.s32.totalorder %s512, %s514
    %p518 = scmp.eq.s32.totalorder %s79, 0
    %p519 = por %p517, %p518
    %p520 = scmp.ne.s32.totalorder %s512, %s514
    %p521 = scmp.eq.s32.totalorder %s84, 1
    %p522 = por %p520, %p521
    %p523 = scmp.ne.s32.totalorder %s514, %s515
    %p524 = scmp.eq.s32.totalorder %s84, 0
    %p525 = por %p523, %p524
    %p526 = scmp.ne.s32.totalorder %s514, %s515
    %p527 = scmp.eq.s32.totalorder %s85, 1
    %p528 = por %p526, %p527
    %p530 = scmp.ne.s32.totalorder %s515, %s529
    %p531 = scmp.eq.s32.totalorder %s85, 0
    %p532 = por %p530, %p531
    %s534 = sadd.s32 %s533, 1
    %p537 = scmp.eq.s32.totalorder %s79, 1
    %p538 = scmp.ne.s32.totalorder %s533, %s535
    %p539 = scmp.eq.s32.totalorder %s79, 0
    %p540 = por %p538, %p539
    %p541 = scmp.ne.s32.totalorder %s533, %s535
    %p542 = scmp.eq.s32.totalorder %s84, 1
    %p543 = por %p541, %p542
    %p544 = scmp.ne.s32.totalorder %s535, %s536
    %p545 = scmp.eq.s32.totalorder %s84, 0
    %p546 = por %p544, %p545
    %p547 = scmp.ne.s32.totalorder %s535, %s536
    %p548 = scmp.eq.s32.totalorder %s85, 1
    %p549 = por %p547, %p548
    %p551 = scmp.ne.s32.totalorder %s536, %s550
    %p552 = scmp.eq.s32.totalorder %s85, 0
    %p553 = por %p551, %p552
    %s555 = sadd.s32 %s554, 1
    %p558 = scmp.eq.s32.totalorder %s79, 1
    %p559 = scmp.ne.s32.totalorder %s554, %s556
    %p560 = scmp.eq.s32.totalorder %s79, 0
    %p561 = por %p559, %p560
    %p562 = scmp.ne.s32.totalorder %s554, %s556
    %p563 = scmp.eq.s32.totalorder %s84, 1
    %p564 = por %p562, %p563
    %p565 = scmp.ne.s32.totalorder %s556, %s557
    %p566 = scmp.eq.s32.totalorder %s84, 0
    %p567 = por %p565, %p566
    %p568 = scmp.ne.s32.totalorder %s556, %s557
    %p569 = scmp.eq.s32.totalorder %s85, 1
    %p570 = por %p568, %p569
    %p572 = scmp.ne.s32.totalorder %s557, %s571
    %p573 = scmp.eq.s32.totalorder %s85, 0
    %p574 = por %p572, %p573
    %s576 = sadd.s32 %s575, 1
    %p579 = scmp.eq.s32.totalorder %s79, 1
    %p580 = scmp.ne.s32.totalorder %s575, %s577
    %p581 = scmp.eq.s32.totalorder %s79, 0
    %p582 = por %p580, %p581
    %p583 = scmp.ne.s32.totalorder %s575, %s577
    %p584 = scmp.eq.s32.totalorder %s84, 1
    %p585 = por %p583, %p584
    %p586 = scmp.ne.s32.totalorder %s577, %s578
    %p587 = scmp.eq.s32.totalorder %s84, 0
    %p588 = por %p586, %p587
    %p589 = scmp.ne.s32.totalorder %s577, %s578
    %p590 = scmp.eq.s32.totalorder %s85, 1
    %p591 = por %p589, %p590
    %p593 = scmp.ne.s32.totalorder %s578, %s592
    %p594 = scmp.eq.s32.totalorder %s85, 0
    %p595 = por %p593, %p594
    %s597 = sadd.s32 %s596, 1
    %p600 = scmp.eq.s32.totalorder %s79, 1
    %p601 = scmp.ne.s32.totalorder %s596, %s598
    %p602 = scmp.eq.s32.totalorder %s79, 0
    %p603 = por %p601, %p602
    %p604 = scmp.ne.s32.totalorder %s596, %s598
    %p605 = scmp.eq.s32.totalorder %s84, 1
    %p606 = por %p604, %p605
    %p607 = scmp.ne.s32.totalorder %s598, %s599
    %p608 = scmp.eq.s32.totalorder %s84, 0
    %p609 = por %p607, %p608
    %p610 = scmp.ne.s32.totalorder %s598, %s599
    %p611 = scmp.eq.s32.totalorder %s85, 1
    %p612 = por %p610, %p611
    %p614 = scmp.ne.s32.totalorder %s599, %s613
    %p615 = scmp.eq.s32.totalorder %s85, 0
    %p616 = por %p614, %p615
    %s618 = sadd.s32 %s617, 1
    %p621 = scmp.eq.s32.totalorder %s79, 1
    %p622 = scmp.ne.s32.totalorder %s617, %s619
    %p623 = scmp.eq.s32.totalorder %s79, 0
    %p624 = por %p622, %p623
    %p625 = scmp.ne.s32.totalorder %s617, %s619
    %p626 = scmp.eq.s32.totalorder %s84, 1
    %p627 = por %p625, %p626
    %p628 = scmp.ne.s32.totalorder %s619, %s620
    %p629 = scmp.eq.s32.totalorder %s84, 0
    %p630 = por %p628, %p629
    %p631 = scmp.ne.s32.totalorder %s619, %s620
    %p632 = scmp.eq.s32.totalorder %s85, 1
    %p633 = por %p631, %p632
    %p635 = scmp.ne.s32.totalorder %s620, %s634
    %p636 = scmp.eq.s32.totalorder %s85, 0
    %p637 = por %p635, %p636
    %s639 = sadd.s32 %s638, 1
    %p642 = scmp.eq.s32.totalorder %s79, 1
    %p643 = scmp.ne.s32.totalorder %s638, %s640
    %p644 = scmp.eq.s32.totalorder %s79, 0
    %p645 = por %p643, %p644
    %p646 = scmp.ne.s32.totalorder %s638, %s640
    %p647 = scmp.eq.s32.totalorder %s84, 1
    %p648 = por %p646, %p647
    %p649 = scmp.ne.s32.totalorder %s640, %s641
    %p650 = scmp.eq.s32.totalorder %s84, 0
    %p651 = por %p649, %p650
    %p652 = scmp.ne.s32.totalorder %s640, %s641
    %p653 = scmp.eq.s32.totalorder %s85, 1
    %p654 = por %p652, %p653
    %p656 = scmp.ne.s32.totalorder %s641, %s655
    %p657 = scmp.eq.s32.totalorder %s85, 0
    %p658 = por %p656, %p657
    %s660 = sadd.s32 %s659, 1
    %p663 = scmp.eq.s32.totalorder %s79, 1
    %p664 = scmp.ne.s32.totalorder %s659, %s661
    %p665 = scmp.eq.s32.totalorder %s79, 0
    %p666 = por %p664, %p665
    %p667 = scmp.ne.s32.totalorder %s659, %s661
    %p668 = scmp.eq.s32.totalorder %s84, 1
    %p669 = por %p667, %p668
    %p670 = scmp.ne.s32.totalorder %s661, %s662
    %p671 = scmp.eq.s32.totalorder %s84, 0
    %p672 = por %p670, %p671
    %p673 = scmp.ne.s32.totalorder %s661, %s662
    %p674 = scmp.eq.s32.totalorder %s85, 1
    %p675 = por %p673, %p674
    %p677 = scmp.ne.s32.totalorder %s662, %s676
    %p678 = scmp.eq.s32.totalorder %s85, 0
    %p679 = por %p677, %p678
    %s681 = sadd.s32 %s680, 1
    %p684 = scmp.eq.s32.totalorder %s79, 1
    %p685 = scmp.ne.s32.totalorder %s680, %s682
    %p686 = scmp.eq.s32.totalorder %s79, 0
    %p687 = por %p685, %p686
    %p688 = scmp.ne.s32.totalorder %s680, %s682
    %p689 = scmp.eq.s32.totalorder %s84, 1
    %p690 = por %p688, %p689
    %p691 = scmp.ne.s32.totalorder %s682, %s683
    %p692 = scmp.eq.s32.totalorder %s84, 0
    %p693 = por %p691, %p692
    %p694 = scmp.ne.s32.totalorder %s682, %s683
    %p695 = scmp.eq.s32.totalorder %s85, 1
    %p696 = por %p694, %p695
    %p698 = scmp.ne.s32.totalorder %s683, %s697
    %p699 = scmp.eq.s32.totalorder %s85, 0
    %p700 = por %p698, %p699
    %s702 = sadd.s32 %s701, 1
    %p705 = scmp.eq.s32.totalorder %s79, 1
    %p706 = scmp.ne.s32.totalorder %s701, %s703
    %p707 = scmp.eq.s32.totalorder %s79, 0
    %p708 = por %p706, %p707
    %p709 = scmp.ne.s32.totalorder %s701, %s703
    %p710 = scmp.eq.s32.totalorder %s84, 1
    %p711 = por %p709, %p710
    %p712 = scmp.ne.s32.totalorder %s703, %s704
    %p713 = scmp.eq.s32.totalorder %s84, 0
    %p714 = por %p712, %p713
    %p715 = scmp.ne.s32.totalorder %s703, %s704
    %p716 = scmp.eq.s32.totalorder %s85, 1
    %p717 = por %p715, %p716
    %p719 = scmp.ne.s32.totalorder %s704, %s718
    %p720 = scmp.eq.s32.totalorder %s85, 0
    %p721 = por %p719, %p720
    %s723 = sadd.s32 %s722, 1
    %p726 = scmp.eq.s32.totalorder %s79, 1
    %p727 = scmp.ne.s32.totalorder %s722, %s724
    %p728 = scmp.eq.s32.totalorder %s79, 0
    %p729 = por %p727, %p728
    %p730 = scmp.ne.s32.totalorder %s722, %s724
    %p731 = scmp.eq.s32.totalorder %s84, 1
    %p732 = por %p730, %p731
    %p733 = scmp.ne.s32.totalorder %s724, %s725
    %p734 = scmp.eq.s32.totalorder %s84, 0
    %p735 = por %p733, %p734
    %p736 = scmp.ne.s32.totalorder %s724, %s725
    %p737 = scmp.eq.s32.totalorder %s85, 1
    %p738 = por %p736, %p737
    %p740 = scmp.ne.s32.totalorder %s725, %s739
    %p741 = scmp.eq.s32.totalorder %s85, 0
    %p742 = por %p740, %p741
    %s744 = sadd.s32 %s743, 1
    %p747 = scmp.eq.s32.totalorder %s79, 1
    %p748 = scmp.ne.s32.totalorder %s743, %s745
    %p749 = scmp.eq.s32.totalorder %s79, 0
    %p750 = por %p748, %p749
    %p751 = scmp.ne.s32.totalorder %s743, %s745
    %p752 = scmp.eq.s32.totalorder %s84, 1
    %p753 = por %p751, %p752
    %p754 = scmp.ne.s32.totalorder %s745, %s746
    %p755 = scmp.eq.s32.totalorder %s84, 0
    %p756 = por %p754, %p755
    %p757 = scmp.ne.s32.totalorder %s745, %s746
    %p758 = scmp.eq.s32.totalorder %s85, 1
    %p759 = por %p757, %p758
    %p761 = scmp.ne.s32.totalorder %s746, %s760
    %p762 = scmp.eq.s32.totalorder %s85, 0
    %p763 = por %p761, %p762
    %s765 = sadd.s32 %s764, 1
    %p768 = scmp.eq.s32.totalorder %s79, 1
    %p769 = scmp.ne.s32.totalorder %s764, %s766
    %p770 = scmp.eq.s32.totalorder %s79, 0
    %p771 = por %p769, %p770
    %p772 = scmp.ne.s32.totalorder %s764, %s766
    %p773 = scmp.eq.s32.totalorder %s84, 1
    %p774 = por %p772, %p773
    %p775 = scmp.ne.s32.totalorder %s766, %s767
    %p776 = scmp.eq.s32.totalorder %s84, 0
    %p777 = por %p775, %p776
    %p778 = scmp.ne.s32.totalorder %s766, %s767
    %p779 = scmp.eq.s32.totalorder %s85, 1
    %p780 = por %p778, %p779
    %p782 = scmp.ne.s32.totalorder %s767, %s781
    %p783 = scmp.eq.s32.totalorder %s85, 0
    %p784 = por %p782, %p783
    %s786 = sadd.s32 %s785, 1
    %p789 = scmp.eq.s32.totalorder %s79, 1
    %p790 = scmp.ne.s32.totalorder %s785, %s787
    %p791 = scmp.eq.s32.totalorder %s79, 0
    %p792 = por %p790, %p791
    %p793 = scmp.ne.s32.totalorder %s785, %s787
    %p794 = scmp.eq.s32.totalorder %s84, 1
    %p795 = por %p793, %p794
    %p796 = scmp.ne.s32.totalorder %s787, %s788
    %p797 = scmp.eq.s32.totalorder %s84, 0
    %p798 = por %p796, %p797
    %p799 = scmp.ne.s32.totalorder %s787, %s788
    %p800 = scmp.eq.s32.totalorder %s85, 1
    %p801 = por %p799, %p800
    %p803 = scmp.ne.s32.totalorder %s788, %s802
    %p804 = scmp.eq.s32.totalorder %s85, 0
    %p805 = por %p803, %p804
    %s807 = sadd.s32 %s806, 1
    %p810 = scmp.eq.s32.totalorder %s79, 1
    %p811 = scmp.ne.s32.totalorder %s806, %s808
    %p812 = scmp.eq.s32.totalorder %s79, 0
    %p813 = por %p811, %p812
    %p814 = scmp.ne.s32.totalorder %s806, %s808
    %p815 = scmp.eq.s32.totalorder %s84, 1
    %p816 = por %p814, %p815
    %p817 = scmp.ne.s32.totalorder %s808, %s809
    %p818 = scmp.eq.s32.totalorder %s84, 0
    %p819 = por %p817, %p818
    %p820 = scmp.ne.s32.totalorder %s808, %s809
    %p821 = scmp.eq.s32.totalorder %s85, 1
    %p822 = por %p820, %p821
    %p824 = scmp.ne.s32.totalorder %s809, %s823
    %p825 = scmp.eq.s32.totalorder %s85, 0
    %p826 = por %p824, %p825
    %s828 = sadd.s32 %s827, 1
    %p831 = scmp.eq.s32.totalorder %s79, 1
    %p832 = scmp.ne.s32.totalorder %s827, %s829
    %p833 = scmp.eq.s32.totalorder %s79, 0
    %p834 = por %p832, %p833
    %p835 = scmp.ne.s32.totalorder %s827, %s829
    %p836 = scmp.eq.s32.totalorder %s84, 1
    %p837 = por %p835, %p836
    %p838 = scmp.ne.s32.totalorder %s829, %s830
    %p839 = scmp.eq.s32.totalorder %s84, 0
    %p840 = por %p838, %p839
    %p841 = scmp.ne.s32.totalorder %s829, %s830
    %p842 = scmp.eq.s32.totalorder %s85, 1
    %p843 = por %p841, %p842
    %p845 = scmp.ne.s32.totalorder %s830, %s844
    %p846 = scmp.eq.s32.totalorder %s85, 0
    %p847 = por %p845, %p846
    %s848 = ssub.s32 %s79, %s86
    %p849 = scmp.eq.s32.totalorder %s848, 0
    %s851 = sadd.s32 %s850, 1
    %s852 = scalar_select %p849, %s850, %s851
    %p855 = pneg %p849
    %p856 = scmp.eq.s32.totalorder %s79, 1
    %p857 = por %p855, %p856
    %p858 = scmp.ne.s32.totalorder %s850, %s853
    %p859 = scmp.eq.s32.totalorder %s79, 0
    %p860 = por %p858, %p859
    %p861 = scmp.ne.s32.totalorder %s850, %s853
    %p862 = scmp.eq.s32.totalorder %s84, 1
    %p863 = por %p861, %p862
    %p864 = scmp.ne.s32.totalorder %s853, %s854
    %p865 = scmp.eq.s32.totalorder %s84, 0
    %p866 = por %p864, %p865
    %p867 = scmp.ne.s32.totalorder %s853, %s854
    %p868 = scmp.eq.s32.totalorder %s85, 1
    %p869 = por %p867, %p868
    %p871 = scmp.ne.s32.totalorder %s854, %s870
    %p872 = scmp.eq.s32.totalorder %s85, 0
    %p873 = por %p871, %p872
    %p874 = scmp.le.s32.totalorder 1, %s79
    %p875 = scmp.lt.s32.totalorder %s79, 3
    %p876 = pnand %p874, %p875
    %p877 = pneg %p876
    // Predicated region
    $region9: #{_lambda_.1} parent=5 // pred_check
      _
    $region10: #{_lambda_.1} parent=5 // pred_check_branch
      %879 = sbr.rel (%p876) target = $region12
    $region11: #{_lambda_.1} parent=5 // pred_region
      %s880 = ssub.s32 %s79, 1
      // Predicated region
      $region13: #{_lambda_.1} parent=11 // pred_check
        %p881 = pneg %p126
      $region14: #{_lambda_.1} parent=11 // pred_check_branch
        %883 = sbr.rel (%p881) target = $region16
      $region15: #{_lambda_.1} parent=11 // pred_region
        _
      $region16: #{_lambda_.1} parent=11 // pred_fallthru
        _
      // Predicated region
      $region17: #{_lambda_.1} parent=11 // pred_check
        %p884 = pneg %p147
      $region18: #{_lambda_.1} parent=11 // pred_check_branch
        %886 = sbr.rel (%p884) target = $region20
      $region19: #{_lambda_.1} parent=11 // pred_region
        _
      $region20: #{_lambda_.1} parent=11 // pred_fallthru
        _
      // Predicated region
      $region21: #{_lambda_.1} parent=11 // pred_check
        %p887 = pneg %p168
      $region22: #{_lambda_.1} parent=11 // pred_check_branch
        %889 = sbr.rel (%p887) target = $region24
      $region23: #{_lambda_.1} parent=11 // pred_region
        _
      $region24: #{_lambda_.1} parent=11 // pred_fallthru
        _
      // Predicated region
      $region25: #{_lambda_.1} parent=11 // pred_check
        %p890 = pneg %p189
      $region26: #{_lambda_.1} parent=11 // pred_check_branch
        %892 = sbr.rel (%p890) target = $region28
      $region27: #{_lambda_.1} parent=11 // pred_region
        _
      $region28: #{_lambda_.1} parent=11 // pred_fallthru
        _
      // Predicated region
      $region29: #{_lambda_.1} parent=11 // pred_check
        %p893 = pneg %p210
      $region30: #{_lambda_.1} parent=11 // pred_check_branch
        %895 = sbr.rel (%p893) target = $region32
      $region31: #{_lambda_.1} parent=11 // pred_region
        _
      $region32: #{_lambda_.1} parent=11 // pred_fallthru
        _
      // Predicated region
      $region33: #{_lambda_.1} parent=11 // pred_check
        %p896 = pneg %p231
      $region34: #{_lambda_.1} parent=11 // pred_check_branch
        %898 = sbr.rel (%p896) target = $region36
      $region35: #{_lambda_.1} parent=11 // pred_region
        _
      $region36: #{_lambda_.1} parent=11 // pred_fallthru
        _
      // Predicated region
      $region37: #{_lambda_.1} parent=11 // pred_check
        %p899 = pneg %p252
      $region38: #{_lambda_.1} parent=11 // pred_check_branch
        %901 = sbr.rel (%p899) target = $region40
      $region39: #{_lambda_.1} parent=11 // pred_region
        _
      $region40: #{_lambda_.1} parent=11 // pred_fallthru
        _
      // Predicated region
      $region41: #{_lambda_.1} parent=11 // pred_check
        %p902 = pneg %p273
      $region42: #{_lambda_.1} parent=11 // pred_check_branch
        %904 = sbr.rel (%p902) target = $region44
      $region43: #{_lambda_.1} parent=11 // pred_region
        _
      $region44: #{_lambda_.1} parent=11 // pred_fallthru
        _
      // Predicated region
      $region45: #{_lambda_.1} parent=11 // pred_check
        %p905 = pneg %p294
      $region46: #{_lambda_.1} parent=11 // pred_check_branch
        %907 = sbr.rel (%p905) target = $region48
      $region47: #{_lambda_.1} parent=11 // pred_region
        _
      $region48: #{_lambda_.1} parent=11 // pred_fallthru
        _
      // Predicated region
      $region49: #{_lambda_.1} parent=11 // pred_check
        %p908 = pneg %p315
      $region50: #{_lambda_.1} parent=11 // pred_check_branch
        %910 = sbr.rel (%p908) target = $region52
      $region51: #{_lambda_.1} parent=11 // pred_region
        _
      $region52: #{_lambda_.1} parent=11 // pred_fallthru
        _
      // Predicated region
      $region53: #{_lambda_.1} parent=11 // pred_check
        %p911 = pneg %p336
      $region54: #{_lambda_.1} parent=11 // pred_check_branch
        %913 = sbr.rel (%p911) target = $region56
      $region55: #{_lambda_.1} parent=11 // pred_region
        _
      $region56: #{_lambda_.1} parent=11 // pred_fallthru
        _
      // Predicated region
      $region57: #{_lambda_.1} parent=11 // pred_check
        %p914 = pneg %p357
      $region58: #{_lambda_.1} parent=11 // pred_check_branch
        %916 = sbr.rel (%p914) target = $region60
      $region59: #{_lambda_.1} parent=11 // pred_region
        _
      $region60: #{_lambda_.1} parent=11 // pred_fallthru
        _
      // Predicated region
      $region61: #{_lambda_.1} parent=11 // pred_check
        %p917 = pneg %p378
      $region62: #{_lambda_.1} parent=11 // pred_check_branch
        %919 = sbr.rel (%p917) target = $region64
      $region63: #{_lambda_.1} parent=11 // pred_region
        _
      $region64: #{_lambda_.1} parent=11 // pred_fallthru
        _
      // Predicated region
      $region65: #{_lambda_.1} parent=11 // pred_check
        %p920 = pneg %p399
      $region66: #{_lambda_.1} parent=11 // pred_check_branch
        %922 = sbr.rel (%p920) target = $region68
      $region67: #{_lambda_.1} parent=11 // pred_region
        _
      $region68: #{_lambda_.1} parent=11 // pred_fallthru
        _
      // Predicated region
      $region69: #{_lambda_.1} parent=11 // pred_check
        %p923 = pneg %p420
      $region70: #{_lambda_.1} parent=11 // pred_check_branch
        %925 = sbr.rel (%p923) target = $region72
      $region71: #{_lambda_.1} parent=11 // pred_region
        _
      $region72: #{_lambda_.1} parent=11 // pred_fallthru
        _
      // Predicated region
      $region73: #{_lambda_.1} parent=11 // pred_check
        %p926 = pneg %p441
      $region74: #{_lambda_.1} parent=11 // pred_check_branch
        %928 = sbr.rel (%p926) target = $region76
      $region75: #{_lambda_.1} parent=11 // pred_region
        _
      $region76: #{_lambda_.1} parent=11 // pred_fallthru
        _
      // Predicated region
      $region77: #{_lambda_.1} parent=11 // pred_check
        %p929 = pneg %p462
      $region78: #{_lambda_.1} parent=11 // pred_check_branch
        %931 = sbr.rel (%p929) target = $region80
      $region79: #{_lambda_.1} parent=11 // pred_region
        _
      $region80: #{_lambda_.1} parent=11 // pred_fallthru
        _
      // Predicated region
      $region81: #{_lambda_.1} parent=11 // pred_check
        %p932 = pneg %p483
      $region82: #{_lambda_.1} parent=11 // pred_check_branch
        %934 = sbr.rel (%p932) target = $region84
      $region83: #{_lambda_.1} parent=11 // pred_region
        _
      $region84: #{_lambda_.1} parent=11 // pred_fallthru
        _
      // Predicated region
      $region85: #{_lambda_.1} parent=11 // pred_check
        %p935 = pneg %p504
      $region86: #{_lambda_.1} parent=11 // pred_check_branch
        %937 = sbr.rel (%p935) target = $region88
      $region87: #{_lambda_.1} parent=11 // pred_region
        _
      $region88: #{_lambda_.1} parent=11 // pred_fallthru
        _
      // Predicated region
      $region89: #{_lambda_.1} parent=11 // pred_check
        %p938 = pneg %p525
      $region90: #{_lambda_.1} parent=11 // pred_check_branch
        %940 = sbr.rel (%p938) target = $region92
      $region91: #{_lambda_.1} parent=11 // pred_region
        _
      $region92: #{_lambda_.1} parent=11 // pred_fallthru
        _
      // Predicated region
      $region93: #{_lambda_.1} parent=11 // pred_check
        %p941 = pneg %p546
      $region94: #{_lambda_.1} parent=11 // pred_check_branch
        %943 = sbr.rel (%p941) target = $region96
      $region95: #{_lambda_.1} parent=11 // pred_region
        _
      $region96: #{_lambda_.1} parent=11 // pred_fallthru
        _
      // Predicated region
      $region97: #{_lambda_.1} parent=11 // pred_check
        %p944 = pneg %p567
      $region98: #{_lambda_.1} parent=11 // pred_check_branch
        %946 = sbr.rel (%p944) target = $region100
      $region99: #{_lambda_.1} parent=11 // pred_region
        _
      $region100: #{_lambda_.1} parent=11 // pred_fallthru
        _
      // Predicated region
      $region101: #{_lambda_.1} parent=11 // pred_check
        %p947 = pneg %p588
      $region102: #{_lambda_.1} parent=11 // pred_check_branch
        %949 = sbr.rel (%p947) target = $region104
      $region103: #{_lambda_.1} parent=11 // pred_region
        _
      $region104: #{_lambda_.1} parent=11 // pred_fallthru
        _
      // Predicated region
      $region105: #{_lambda_.1} parent=11 // pred_check
        %p950 = pneg %p609
      $region106: #{_lambda_.1} parent=11 // pred_check_branch
        %952 = sbr.rel (%p950) target = $region108
      $region107: #{_lambda_.1} parent=11 // pred_region
        _
      $region108: #{_lambda_.1} parent=11 // pred_fallthru
        _
      // Predicated region
      $region109: #{_lambda_.1} parent=11 // pred_check
        %p953 = pneg %p630
      $region110: #{_lambda_.1} parent=11 // pred_check_branch
        %955 = sbr.rel (%p953) target = $region112
      $region111: #{_lambda_.1} parent=11 // pred_region
        _
      $region112: #{_lambda_.1} parent=11 // pred_fallthru
        _
      // Predicated region
      $region113: #{_lambda_.1} parent=11 // pred_check
        %p956 = pneg %p651
      $region114: #{_lambda_.1} parent=11 // pred_check_branch
        %958 = sbr.rel (%p956) target = $region116
      $region115: #{_lambda_.1} parent=11 // pred_region
        _
      $region116: #{_lambda_.1} parent=11 // pred_fallthru
        _
      // Predicated region
      $region117: #{_lambda_.1} parent=11 // pred_check
        %p959 = pneg %p672
      $region118: #{_lambda_.1} parent=11 // pred_check_branch
        %961 = sbr.rel (%p959) target = $region120
      $region119: #{_lambda_.1} parent=11 // pred_region
        _
      $region120: #{_lambda_.1} parent=11 // pred_fallthru
        _
      // Predicated region
      $region121: #{_lambda_.1} parent=11 // pred_check
        %p962 = pneg %p693
      $region122: #{_lambda_.1} parent=11 // pred_check_branch
        %964 = sbr.rel (%p962) target = $region124
      $region123: #{_lambda_.1} parent=11 // pred_region
        _
      $region124: #{_lambda_.1} parent=11 // pred_fallthru
        _
      // Predicated region
      $region125: #{_lambda_.1} parent=11 // pred_check
        %p965 = pneg %p714
      $region126: #{_lambda_.1} parent=11 // pred_check_branch
        %967 = sbr.rel (%p965) target = $region128
      $region127: #{_lambda_.1} parent=11 // pred_region
        _
      $region128: #{_lambda_.1} parent=11 // pred_fallthru
        _
      // Predicated region
      $region129: #{_lambda_.1} parent=11 // pred_check
        %p968 = pneg %p735
      $region130: #{_lambda_.1} parent=11 // pred_check_branch
        %970 = sbr.rel (%p968) target = $region132
      $region131: #{_lambda_.1} parent=11 // pred_region
        _
      $region132: #{_lambda_.1} parent=11 // pred_fallthru
        _
      // Predicated region
      $region133: #{_lambda_.1} parent=11 // pred_check
        %p971 = pneg %p756
      $region134: #{_lambda_.1} parent=11 // pred_check_branch
        %973 = sbr.rel (%p971) target = $region136
      $region135: #{_lambda_.1} parent=11 // pred_region
        _
      $region136: #{_lambda_.1} parent=11 // pred_fallthru
        _
      // Predicated region
      $region137: #{_lambda_.1} parent=11 // pred_check
        %p974 = pneg %p777
      $region138: #{_lambda_.1} parent=11 // pred_check_branch
        %976 = sbr.rel (%p974) target = $region140
      $region139: #{_lambda_.1} parent=11 // pred_region
        _
      $region140: #{_lambda_.1} parent=11 // pred_fallthru
        _
      // Predicated region
      $region141: #{_lambda_.1} parent=11 // pred_check
        %p977 = pneg %p798
      $region142: #{_lambda_.1} parent=11 // pred_check_branch
        %979 = sbr.rel (%p977) target = $region144
      $region143: #{_lambda_.1} parent=11 // pred_region
        _
      $region144: #{_lambda_.1} parent=11 // pred_fallthru
        _
      // Predicated region
      $region145: #{_lambda_.1} parent=11 // pred_check
        %p980 = pneg %p819
      $region146: #{_lambda_.1} parent=11 // pred_check_branch
        %982 = sbr.rel (%p980) target = $region148
      $region147: #{_lambda_.1} parent=11 // pred_region
        _
      $region148: #{_lambda_.1} parent=11 // pred_fallthru
        _
      // Predicated region
      $region149: #{_lambda_.1} parent=11 // pred_check
        %p983 = pneg %p840
      $region150: #{_lambda_.1} parent=11 // pred_check_branch
        %985 = sbr.rel (%p983) target = $region152
      $region151: #{_lambda_.1} parent=11 // pred_region
        _
      $region152: #{_lambda_.1} parent=11 // pred_fallthru
        _
    $region12: #{_lambda_.1} parent=5 // pred_fallthru
      _
    %p986 = scmp.lt.s32.totalorder %s79, 2
    // Predicated region
    $region153: #{_lambda_.1} parent=5 // pred_check
      %p987 = pneg %p986
    $region154: #{_lambda_.1} parent=5 // pred_check_branch
      %989 = sbr.rel (%p987) target = $region156
    $region155: #{_lambda_.1} parent=5 // pred_region
      // Predicated region
      $region157: #{_lambda_.1} parent=155 // pred_check
        %p990 = pneg %p99
      $region158: #{_lambda_.1} parent=155 // pred_check_branch
        %992 = sbr.rel (%p990) target = $region160
      $region159: #{_lambda_.1} parent=155 // pred_region
        %p993 = scmp.lt.s32.totalorder %s79, 1
        %s994 = scalar_select %p993, %s79, 1
        %s995 = smul.addr %s994, 2
        %s996 = smul.addr %s995, 4
        %s997 = scalar_lea.vmem %s1, %s996
      $region160: #{_lambda_.1} parent=155 // pred_fallthru
        _
    $region156: #{_lambda_.1} parent=5 // pred_fallthru
      _
    %p998 = scmp.le.s32.totalorder 1, %s79
    %p999 = scmp.lt.s32.totalorder %s79, 3
    %p1000 = pnand %p998, %p999
    %p1001 = pneg %p1000
    // Predicated region
    $region161: #{_lambda_.1} parent=5 // pred_check
      _
    $region162: #{_lambda_.1} parent=5 // pred_check_branch
      %1003 = sbr.rel (%p1000) target = $region164
    $region163: #{_lambda_.1} parent=5 // pred_region
      %s1004 = ssub.s32 %s79, 1
      %p1005 = scmp.lt.s32.totalorder %s84, 1
      %s1006 = scalar_select %p1005, %s84, 1
      %s1007 = smul.addr %s1006, 2
      %s1008 = smul.addr %s1007, 4
      %s1009 = scalar_lea.vmem %s1, %s1008
      %p1010 = pneg %p105
      %p1011 = pneg %p102
      %p1012 = pneg %p126
      %p1013 = pneg %p123
      %p1014 = pneg %p147
      %p1015 = pneg %p144
      %p1016 = pneg %p168
      %p1017 = pneg %p165
      %p1018 = pneg %p189
      %p1019 = pneg %p186
      %p1020 = pneg %p210
      %p1021 = pneg %p207
      %p1022 = pneg %p231
      %p1023 = pneg %p228
      %p1024 = pneg %p252
      %p1025 = pneg %p249
      %p1026 = pneg %p273
      %p1027 = pneg %p270
      %p1028 = pneg %p294
      %p1029 = pneg %p291
      %p1030 = pneg %p315
      %p1031 = pneg %p312
      %p1032 = pneg %p336
      %p1033 = pneg %p333
      %p1034 = pneg %p357
      %p1035 = pneg %p354
      %p1036 = pneg %p378
      %p1037 = pneg %p375
      %p1038 = pneg %p399
      %p1039 = pneg %p396
      %p1040 = pneg %p420
      %p1041 = pneg %p417
      %p1042 = pneg %p441
      %p1043 = pneg %p438
      %p1044 = pneg %p462
      %p1045 = pneg %p459
      %p1046 = pneg %p483
      %p1047 = pneg %p480
      %p1048 = pneg %p504
      %p1049 = pneg %p501
      %p1050 = pneg %p525
      %p1051 = pneg %p522
      %p1052 = pneg %p546
      %p1053 = pneg %p543
      %p1054 = pneg %p567
      %p1055 = pneg %p564
      %p1056 = pneg %p588
      %p1057 = pneg %p585
      %p1058 = pneg %p609
      %p1059 = pneg %p606
      %p1060 = pneg %p630
      %p1061 = pneg %p627
      %p1062 = pneg %p651
      %p1063 = pneg %p648
      %p1064 = pneg %p672
      %p1065 = pneg %p669
      %p1066 = pneg %p693
      %p1067 = pneg %p690
      %p1068 = pneg %p714
      %p1069 = pneg %p711
      %p1070 = pneg %p735
      %p1071 = pneg %p732
      %p1072 = pneg %p756
      %p1073 = pneg %p753
      %p1074 = pneg %p777
      %p1075 = pneg %p774
      %p1076 = pneg %p798
      %p1077 = pneg %p795
      %p1078 = pneg %p819
      %p1079 = pneg %p816
      %p1080 = pneg %p840
      %p1081 = pneg %p837
      %p1082 = pneg %p866
      %p1083 = pneg %p863
      %p1084 = scmp.lt.s32.totalorder %s84, 1
      %s1085 = scalar_select %p1084, %s84, 1
      %s1086 = smul.addr %s1085, 4
      %s1087 = smul.addr %s1086, 8
      %s1088 = scalar_lea.vmem %s73, %s1087
      %p1089 = scmp.lt.s32.totalorder %s84, 1
      %s1090 = scalar_select %p1089, %s84, 1
      %s1091 = smul.addr %s1090, 2
      %s1092 = smul.addr %s1091, 4
      %s1093 = scalar_lea.vmem %s1, %s1092
      %p1094 = scmp.lt.s32.totalorder %s84, 1
      %s1095 = scalar_select %p1094, %s84, 1
      %s1096 = smul.addr %s1095, 4
      %s1097 = smul.addr %s1096, 8
      %s1098 = scalar_lea.vmem %s73, %s1097
      %v1100 = vld [vmem:[%s1093] sm:$0x77]
      %v1102 = vcombine.high %v1100, %v1100
      %v1104 = vpack.c.bf16 %v1100, %v1100
      %v1105 = vpack.c.bf16 %v1102, %v1102
      %v1106 = vld [vmem:[%s3] sm:$0xff]
      %v1107 = vld [vmem:[%s3 + $0x8] sm:$0xf]
      %v1108 = vld [vmem:[%s3 + $0xc] sm:$0xff]
      %v1109 = vld [vmem:[%s3 + $0x14] sm:$0xf]
      %v1110 = vld [vmem:[%s3 + $0x18] sm:$0xff]
      %v1111 = vld [vmem:[%s3 + $0x20] sm:$0xf]
      %v1112 = vld [vmem:[%s3 + $0x24] sm:$0xff]
      %v1113 = vld [vmem:[%s3 + $0x2c] sm:$0xf]
      %v1114 = vld [vmem:[%s3 + $0x30] sm:$0xff]
      %v1115 = vld [vmem:[%s3 + $0x38] sm:$0xf]
      %v1116 = vld [vmem:[%s3 + $0x3c] sm:$0xff]
      %v1117 = vld [vmem:[%s3 + $0x44] sm:$0xf]
      %v1118 = vld [vmem:[%s3 + $0x48] sm:$0xff]
      %v1119 = vld [vmem:[%s3 + $0x50] sm:$0xf]
      %v1120 = vld [vmem:[%s3 + $0x54] sm:$0xff]
      %v1121 = vld [vmem:[%s3 + $0x5c] sm:$0xf]
      %v1122 = vld [vmem:[%s3 + $0x60] sm:$0xff]
      %v1123 = vld [vmem:[%s3 + $0x68] sm:$0xf]
      %v1124 = vld [vmem:[%s3 + $0x6c] sm:$0xff]
      %v1125 = vld [vmem:[%s3 + $0x74] sm:$0xf]
      %v1126 = vld [vmem:[%s3 + $0x78] sm:$0xff]
      %v1127 = vld [vmem:[%s3 + $0x80] sm:$0xf]
      %v1128 = vld [vmem:[%s3 + $0x84] sm:$0xff]
      %v1129 = vld [vmem:[%s3 + $0x8c] sm:$0xf]
      %v1130 = vld [vmem:[%s3 + $0x90] sm:$0xff]
      %v1131 = vld [vmem:[%s3 + $0x98] sm:$0xf]
      %v1132 = vld [vmem:[%s3 + $0x9c] sm:$0xff]
      %v1133 = vld [vmem:[%s3 + $0xa4] sm:$0xf]
      %v1134 = vld [vmem:[%s3 + $0xa8] sm:$0xff]
      %v1135 = vld [vmem:[%s3 + $0xb0] sm:$0xf]
      %v1136 = vld [vmem:[%s3 + $0xb4] sm:$0xff]
      %v1137 = vld [vmem:[%s3 + $0xbc] sm:$0xf]
      %v1138 = vld [vmem:[%s3 + $0xc0] sm:$0xff]
      %v1139 = vld [vmem:[%s3 + $0xc8] sm:$0xf]
      %v1140 = vld [vmem:[%s3 + $0xcc] sm:$0xff]
      %v1141 = vld [vmem:[%s3 + $0xd4] sm:$0xf]
      %v1142 = vld [vmem:[%s3 + $0xd8] sm:$0xff]
      %v1143 = vld [vmem:[%s3 + $0xe0] sm:$0xf]
      %v1144 = vld [vmem:[%s3 + $0xe4] sm:$0xff]
      %v1145 = vld [vmem:[%s3 + $0xec] sm:$0xf]
      %v1146 = vld [vmem:[%s3 + $0xf0] sm:$0xff]
      %v1147 = vld [vmem:[%s3 + $0xf8] sm:$0xf]
      %v1148 = vld [vmem:[%s3 + $0xfc] sm:$0xff]
      %v1149 = vld [vmem:[%s3 + $0x104] sm:$0xf]
      %v1150 = vld [vmem:[%s3 + $0x108] sm:$0xff]
      %v1151 = vld [vmem:[%s3 + $0x110] sm:$0xf]
      %v1152 = vld [vmem:[%s3 + $0x114] sm:$0xff]
      %v1153 = vld [vmem:[%s3 + $0x11c] sm:$0xf]
      %v1154 = vld [vmem:[%s3 + $0x120] sm:$0xff]
      %v1155 = vld [vmem:[%s3 + $0x128] sm:$0xf]
      %v1156 = vld [vmem:[%s3 + $0x12c] sm:$0xff]
      %v1157 = vld [vmem:[%s3 + $0x134] sm:$0xf]
      %v1158 = vld [vmem:[%s3 + $0x138] sm:$0xff]
      %v1159 = vld [vmem:[%s3 + $0x140] sm:$0xf]
      %v1160 = vld [vmem:[%s3 + $0x144] sm:$0xff]
      %v1161 = vld [vmem:[%s3 + $0x14c] sm:$0xf]
      %v1162 = vld [vmem:[%s3 + $0x150] sm:$0xff]
      %v1163 = vld [vmem:[%s3 + $0x158] sm:$0xf]
      %v1164 = vld [vmem:[%s3 + $0x15c] sm:$0xff]
      %v1165 = vld [vmem:[%s3 + $0x164] sm:$0xf]
      %v1166 = vld [vmem:[%s3 + $0x168] sm:$0xff]
      %v1167 = vld [vmem:[%s3 + $0x170] sm:$0xf]
      %v1168 = vld [vmem:[%s3 + $0x174] sm:$0xff]
      %v1169 = vld [vmem:[%s3 + $0x17c] sm:$0xf]
      %v1234 = vunpack.c.l.b16 %v1106
      %v1235 = vunpack.c.h.b16 %v1106
      %v1236 = vunpack.c.l.b16 %v1107
      %v1237 = vunpack.c.l.b16 %v1108
      %v1238 = vunpack.c.h.b16 %v1108
      %v1239 = vunpack.c.l.b16 %v1109
      %v1240 = vunpack.c.l.b16 %v1110
      %v1241 = vunpack.c.h.b16 %v1110
      %v1242 = vunpack.c.l.b16 %v1111
      %v1243 = vunpack.c.l.b16 %v1112
      %v1244 = vunpack.c.h.b16 %v1112
      %v1245 = vunpack.c.l.b16 %v1113
      %v1246 = vunpack.c.l.b16 %v1114
      %v1247 = vunpack.c.h.b16 %v1114
      %v1248 = vunpack.c.l.b16 %v1115
      %v1249 = vunpack.c.l.b16 %v1116
      %v1250 = vunpack.c.h.b16 %v1116
      %v1251 = vunpack.c.l.b16 %v1117
      %v1252 = vunpack.c.l.b16 %v1118
      %v1253 = vunpack.c.h.b16 %v1118
      %v1254 = vunpack.c.l.b16 %v1119
      %v1255 = vunpack.c.l.b16 %v1120
      %v1256 = vunpack.c.h.b16 %v1120
      %v1257 = vunpack.c.l.b16 %v1121
      %v1258 = vunpack.c.l.b16 %v1122
      %v1259 = vunpack.c.h.b16 %v1122
      %v1260 = vunpack.c.l.b16 %v1123
      %v1261 = vunpack.c.l.b16 %v1124
      %v1262 = vunpack.c.h.b16 %v1124
      %v1263 = vunpack.c.l.b16 %v1125
      %v1264 = vunpack.c.l.b16 %v1126
      %v1265 = vunpack.c.h.b16 %v1126
      %v1266 = vunpack.c.l.b16 %v1127
      %v1267 = vunpack.c.l.b16 %v1128
      %v1268 = vunpack.c.h.b16 %v1128
      %v1269 = vunpack.c.l.b16 %v1129
      %v1270 = vunpack.c.l.b16 %v1130
      %v1271 = vunpack.c.h.b16 %v1130
      %v1272 = vunpack.c.l.b16 %v1131
      %v1273 = vunpack.c.l.b16 %v1132
      %v1274 = vunpack.c.h.b16 %v1132
      %v1275 = vunpack.c.l.b16 %v1133
      %v1276 = vunpack.c.l.b16 %v1134
      %v1277 = vunpack.c.h.b16 %v1134
      %v1278 = vunpack.c.l.b16 %v1135
      %v1279 = vunpack.c.l.b16 %v1136
      %v1280 = vunpack.c.h.b16 %v1136
      %v1281 = vunpack.c.l.b16 %v1137
      %v1282 = vunpack.c.l.b16 %v1138
      %v1283 = vunpack.c.h.b16 %v1138
      %v1284 = vunpack.c.l.b16 %v1139
      %v1285 = vunpack.c.l.b16 %v1140
      %v1286 = vunpack.c.h.b16 %v1140
      %v1287 = vunpack.c.l.b16 %v1141
      %v1288 = vunpack.c.l.b16 %v1142
      %v1289 = vunpack.c.h.b16 %v1142
      %v1290 = vunpack.c.l.b16 %v1143
      %v1291 = vunpack.c.l.b16 %v1144
      %v1292 = vunpack.c.h.b16 %v1144
      %v1293 = vunpack.c.l.b16 %v1145
      %v1294 = vunpack.c.l.b16 %v1146
      %v1295 = vunpack.c.h.b16 %v1146
      %v1296 = vunpack.c.l.b16 %v1147
      %v1297 = vunpack.c.l.b16 %v1148
      %v1298 = vunpack.c.h.b16 %v1148
      %v1299 = vunpack.c.l.b16 %v1149
      %v1300 = vunpack.c.l.b16 %v1150
      %v1301 = vunpack.c.h.b16 %v1150
      %v1302 = vunpack.c.l.b16 %v1151
      %v1303 = vunpack.c.l.b16 %v1152
      %v1304 = vunpack.c.h.b16 %v1152
      %v1305 = vunpack.c.l.b16 %v1153
      %v1306 = vunpack.c.l.b16 %v1154
      %v1307 = vunpack.c.h.b16 %v1154
      %v1308 = vunpack.c.l.b16 %v1155
      %v1309 = vunpack.c.l.b16 %v1156
      %v1310 = vunpack.c.h.b16 %v1156
      %v1311 = vunpack.c.l.b16 %v1157
      %v1312 = vunpack.c.l.b16 %v1158
      %v1313 = vunpack.c.h.b16 %v1158
      %v1314 = vunpack.c.l.b16 %v1159
      %v1315 = vunpack.c.l.b16 %v1160
      %v1316 = vunpack.c.h.b16 %v1160
      %v1317 = vunpack.c.l.b16 %v1161
      %v1318 = vunpack.c.l.b16 %v1162
      %v1319 = vunpack.c.h.b16 %v1162
      %v1320 = vunpack.c.l.b16 %v1163
      %v1321 = vunpack.c.l.b16 %v1164
      %v1322 = vunpack.c.h.b16 %v1164
      %v1323 = vunpack.c.l.b16 %v1165
      %v1324 = vunpack.c.l.b16 %v1166
      %v1325 = vunpack.c.h.b16 %v1166
      %v1326 = vunpack.c.l.b16 %v1167
      %v1327 = vunpack.c.l.b16 %v1168
      %v1328 = vunpack.c.h.b16 %v1168
      %v1329 = vunpack.c.l.b16 %v1169
      %v1330 = vpack.c.b16 %v1237, %v1234
      %v1331 = vpack.c.b16 %v1238, %v1235
      %v1332 = vpack.c.b16 %v1239, %v1236
      %v1333 = vpack.c.b16 %v1243, %v1240
      %v1334 = vpack.c.b16 %v1244, %v1241
      %v1335 = vpack.c.b16 %v1245, %v1242
      %v1336 = vpack.c.b16 %v1249, %v1246
      %v1337 = vpack.c.b16 %v1250, %v1247
      %v1338 = vpack.c.b16 %v1251, %v1248
      %v1339 = vpack.c.b16 %v1255, %v1252
      %v1340 = vpack.c.b16 %v1256, %v1253
      %v1341 = vpack.c.b16 %v1257, %v1254
      %v1342 = vpack.c.b16 %v1261, %v1258
      %v1343 = vpack.c.b16 %v1262, %v1259
      %v1344 = vpack.c.b16 %v1263, %v1260
      %v1345 = vpack.c.b16 %v1267, %v1264
      %v1346 = vpack.c.b16 %v1268, %v1265
      %v1347 = vpack.c.b16 %v1269, %v1266
      %v1348 = vpack.c.b16 %v1273, %v1270
      %v1349 = vpack.c.b16 %v1274, %v1271
      %v1350 = vpack.c.b16 %v1275, %v1272
      %v1351 = vpack.c.b16 %v1279, %v1276
      %v1352 = vpack.c.b16 %v1280, %v1277
      %v1353 = vpack.c.b16 %v1281, %v1278
      %v1354 = vpack.c.b16 %v1285, %v1282
      %v1355 = vpack.c.b16 %v1286, %v1283
      %v1356 = vpack.c.b16 %v1287, %v1284
      %v1357 = vpack.c.b16 %v1291, %v1288
      %v1358 = vpack.c.b16 %v1292, %v1289
      %v1359 = vpack.c.b16 %v1293, %v1290
      %v1360 = vpack.c.b16 %v1297, %v1294
      %v1361 = vpack.c.b16 %v1298, %v1295
      %v1362 = vpack.c.b16 %v1299, %v1296
      %v1363 = vpack.c.b16 %v1303, %v1300
      %v1364 = vpack.c.b16 %v1304, %v1301
      %v1365 = vpack.c.b16 %v1305, %v1302
      %v1366 = vpack.c.b16 %v1309, %v1306
      %v1367 = vpack.c.b16 %v1310, %v1307
      %v1368 = vpack.c.b16 %v1311, %v1308
      %v1369 = vpack.c.b16 %v1315, %v1312
      %v1370 = vpack.c.b16 %v1316, %v1313
      %v1371 = vpack.c.b16 %v1317, %v1314
      %v1372 = vpack.c.b16 %v1321, %v1318
      %v1373 = vpack.c.b16 %v1322, %v1319
      %v1374 = vpack.c.b16 %v1323, %v1320
      %v1375 = vpack.c.b16 %v1327, %v1324
      %v1376 = vpack.c.b16 %v1328, %v1325
      %v1377 = vpack.c.b16 %v1329, %v1326
      %1426 = vmatprep.subr.bf16.mxu0 %v1331
      %1427 = vmatpush1.bf16.msra.mxu0 %v1330
      %1428 = vmatprep.subr.bf16.mxu0 %v1334
      %1429 = vmatpush1.bf16.msra.mxu0 %v1333
      %1430 = vmatprep.subr.bf16.mxu0 %v1337
      %1431 = vmatpush1.bf16.msra.mxu0 %v1336
      %1432 = vmatprep.subr.bf16.mxu0 %v1340
      %1433 = vmatpush1.bf16.msra.mxu0 %v1339
      %1434 = vmatprep.subr.bf16.mxu0 %v1343
      %1435 = vmatpush1.bf16.msra.mxu0 %v1342
      %1436 = vmatprep.subr.bf16.mxu0 %v1346
      %1437 = vmatpush1.bf16.msra.mxu0 %v1345
      %1438 = vmatprep.subr.bf16.mxu0 %v1349
      %1439 = vmatpush1.bf16.msra.mxu0 %v1348
      %1440 = vmatprep.subr.bf16.mxu0 %v1352
      %1441 = vmatpush1.bf16.msra.mxu0 %v1351
      %1442 = vmatprep.subr.bf16.mxu0 %v1355
      %1443 = vmatpush1.bf16.msra.mxu0 %v1354
      %1444 = vmatprep.subr.bf16.mxu0 %v1358
      %1445 = vmatpush1.bf16.msra.mxu0 %v1357
      %1446 = vmatprep.subr.bf16.mxu0 %v1361
      %1447 = vmatpush1.bf16.msra.mxu0 %v1360
      %1448 = vmatprep.subr.bf16.mxu0 %v1364
      %1449 = vmatpush1.bf16.msra.mxu0 %v1363
      %1450 = vmatprep.subr.bf16.mxu0 %v1367
      %1451 = vmatpush1.bf16.msra.mxu0 %v1366
      %1452 = vmatprep.subr.bf16.mxu0 %v1370
      %1453 = vmatpush1.bf16.msra.mxu0 %v1369
      %1454 = vmatprep.subr.bf16.mxu0 %v1373
      %1455 = vmatpush1.bf16.msra.mxu0 %v1372
      %1456 = vmatprep.subr.bf16.mxu0 %v1376
      %1457 = vmatpush1.bf16.msra.mxu0 %v1375
      %1458 = vmatprep.mubr.bf16.mxu0 %v1105
      %1459 = vmatmul.mubr.bf16.gmra.mrb[0].mxu0 %v1104
      %v1460 = vpop.f32.mrb[0].mxu0
      %v1461 = vadd.f32 0.0, %v1460
      %v1462 = vpop.f32.mrb[0].mxu0
      %v1463 = vadd.f32 0.0, %v1462
      %v1464 = vpop.f32.mrb[0].mxu0
      %v1465 = vpop.f32.mrb[0].mxu0
      %1466 = vdwg.mxu0
      %1467 = vmatprep.subr.bf16.mxu0 0
      %1468 = vmatpush1.bf16.msra.mxu0 %v1332
      %1469 = vmatprep.subr.bf16.mxu0 0
      %1470 = vmatpush1.bf16.msra.mxu0 %v1335
      %1471 = vmatprep.subr.bf16.mxu0 0
      %1472 = vmatpush1.bf16.msra.mxu0 %v1338
      %1473 = vmatprep.subr.bf16.mxu0 0
      %1474 = vmatpush1.bf16.msra.mxu0 %v1341
      %1475 = vmatprep.subr.bf16.mxu0 0
      %1476 = vmatpush1.bf16.msra.mxu0 %v1344
      %1477 = vmatprep.subr.bf16.mxu0 0
      %1478 = vmatpush1.bf16.msra.mxu0 %v1347
      %1479 = vmatprep.subr.bf16.mxu0 0
      %1480 = vmatpush1.bf16.msra.mxu0 %v1350
      %1481 = vmatprep.subr.bf16.mxu0 0
      %1482 = vmatpush1.bf16.msra.mxu0 %v1353
      %1483 = vmatprep.subr.bf16.mxu0 0
      %1484 = vmatpush1.bf16.msra.mxu0 %v1356
      %1485 = vmatprep.subr.bf16.mxu0 0
      %1486 = vmatpush1.bf16.msra.mxu0 %v1359
      %1487 = vmatprep.subr.bf16.mxu0 0
      %1488 = vmatpush1.bf16.msra.mxu0 %v1362
      %1489 = vmatprep.subr.bf16.mxu0 0
      %1490 = vmatpush1.bf16.msra.mxu0 %v1365
      %1491 = vmatprep.subr.bf16.mxu0 0
      %1492 = vmatpush1.bf16.msra.mxu0 %v1368
      %1493 = vmatprep.subr.bf16.mxu0 0
      %1494 = vmatpush1.bf16.msra.mxu0 %v1371
      %1495 = vmatprep.subr.bf16.mxu0 0
      %1496 = vmatpush1.bf16.msra.mxu0 %v1374
      %1497 = vmatprep.subr.bf16.mxu0 0
      %1498 = vmatpush1.bf16.msra.mxu0 %v1377
      %1499 = vmatprep.mubr.bf16.mxu0 %v1105
      %1500 = vmatmul.mubr.bf16.gmra.mrb[0].mxu0 %v1104
      %v1501 = vpop.f32.mrb[0].mxu0
      %v1502 = vadd.f32 0.0, %v1501
      %v1503 = vpop.f32.mrb[0].mxu0
      %v1504 = vpop.f32.mrb[0].mxu0
      %v1505 = vpop.f32.mrb[0].mxu0
      %1506 = vdwg.mxu0
      %v1507 = vpack.c.bf16 %v1461, %v1461
      %v1508 = vpack.c.bf16 %v1463, %v1463
      %v1509 = vpack.c.bf16 %v1502, %v1502
      %vm1510 = vcmask 150528
      %1511 = vst.msk [vmem:[#allocation2] sm:$0xf] %vm1510, 0
      %vm1512 = vcmask 147456
      %vm1513 = vsmask.f32 256
      %vm1514 = vmand %vm1512, %vm1513
      %v1515 = vld [vmem:[#allocation2 + $0xc] sm:$0x1]
      %v1516 = vsel %vm1514, 0, %v1515
      %1517 = vst [vmem:[#allocation2 + $0xc] sm:$0x1] %v1516
      %vm1518 = vcmask 699784
      %1519 = vst.msk [vmem:[#allocation2 + $0x8] sm:$0xf] %vm1518, 0
      %vm1520 = vcmask 696712
      %vm1521 = vmand %vm1520, %vm1513
      %v1522 = vld [vmem:[#allocation2 + $0x14] sm:$0x1]
      %v1523 = vsel %vm1521, 0, %v1522
      %1524 = vst [vmem:[#allocation2 + $0x14] sm:$0x1] %v1523
      %v1528 = vunpack.c.l.b16 %v1507
      %v1529 = vunpack.c.l.b16 %v1508
      %v1530 = vunpack.c.l.b16 %v1509
      %v1531 = vpack.c.b16 %v1529, %v1528
      %v1532 = vpack.c.b16 %v1530, %v1530
      %1533 = vrot.lane.b32.xlu0 %v1531, 19
      %v1534 = vpop.permute.xlu0 %1533
      %1535 = vrot.lane.b32.xlu0 %v1532, 19
      %v1536 = vpop.permute.xlu0 %1535
      %v1537 = vrot.slane %v1534, 4
      %vm1538 = vcmask 154624
      %v1539 = vsel %vm1538, %v1537, %v1534
      %v1540 = vsel %vm1538, %v1537, %v1536
      %vm1543 = vcmask 1041560
      %vm1544 = vsmask.f32 1280
      %vm1545 = vmand %vm1543, %vm1544
      %vm1546 = vcmask 1045508
      %vm1547 = vsmask.f32 5376
      %vm1548 = vmand %vm1546, %vm1547
      %vm1549 = vmor %vm1548, %vm1545
      %v1550 = vld [vmem:[#allocation2] sm:$0x33]
      %v1551 = vsel %vm1549, %v1539, %v1550
      %1552 = vst [vmem:[#allocation2] sm:$0x33] %v1551
      %vm1553 = vcmask 410624
      %vm1554 = vmand %vm1553, %vm1544
      %v1555 = vld [vmem:[#allocation2 + $0x8] sm:$0x3]
      %v1556 = vsel %vm1554, %v1540, %v1555
      %1557 = vst [vmem:[#allocation2 + $0x8] sm:$0x3] %v1556
      %v1559 = vshrl.u32 %v1531, 16
      %v1561 = vrot.slane %v1559, 6
      %v1562 = vshll.u32 %v1531, 16
      %v1564 = vrot.slane %v1562, 7
      %v1565 = vor.u32 %v1561, %v1564
      %v1567 = vshrl.u32 %v1532, 16
      %v1569 = vrot.slane %v1567, 6
      %v1570 = vshll.u32 %v1532, 16
      %v1572 = vrot.slane %v1570, 7
      %v1573 = vor.u32 %v1569, %v1572
      %1574 = vrot.lane.b32.xlu0 %v1565, 18
      %v1575 = vpop.permute.xlu0 %1574
      %1576 = vrot.lane.b32.xlu0 %v1573, 18
      %v1577 = vpop.permute.xlu0 %1576
      %v1578 = vrot.slane %v1575, 4
      %vm1579 = vcmask 146432
      %v1580 = vsel %vm1579, %v1578, %v1575
      %v1581 = vsel %vm1579, %v1578, %v1577
      %vm1584 = vcmask 1042577
      %vm1585 = vsmask.f32 7942
      %vm1586 = vmand %vm1584, %vm1585
      %vm1587 = vcmask 1046533
      %vm1588 = vsmask.f32 7958
      %vm1589 = vmand %vm1587, %vm1588
      %vm1590 = vmor %vm1589, %vm1586
      %v1591 = vld [vmem:[#allocation2] sm:$0x66]
      %v1592 = vsel %vm1590, %v1580, %v1591
      %1593 = vst [vmem:[#allocation2] sm:$0x66] %v1592
      %vm1594 = vcmask 403457
      %vm1595 = vmand %vm1594, %vm1585
      %v1596 = vld [vmem:[#allocation2 + $0x8] sm:$0x6]
      %v1597 = vsel %vm1595, %v1581, %v1596
      %1598 = vst [vmem:[#allocation2 + $0x8] sm:$0x6] %v1597
      %v1599 = vrot.slane %v1531, 5
      %v1600 = vrot.slane %v1532, 5
      %v1601 = vrot.slane %v1599, 4
      %v1602 = vrot.slane %v1600, 4
      %1603 = vrot.lane.b32.xlu0 %v1599, 17
      %v1604 = vpop.permute.xlu0 %1603
      %1605 = vrot.lane.b32.xlu0 %v1600, 17
      %v1606 = vpop.permute.xlu0 %1605
      %1607 = vrot.lane.b32.xlu0 %v1601, 17
      %v1608 = vpop.permute.xlu0 %1607
      %1609 = vrot.lane.b32.xlu0 %v1602, 17
      %v1610 = vpop.permute.xlu0 %1609
      %v1611 = vrot.slane %v1604, 4
      %v1612 = vrot.slane %v1608, 4
      %vm1613 = vcmask 138240
      %v1614 = vsel %vm1613, %v1611, %v1604
      %v1615 = vsel %vm1613, %v1611, %v1606
      %v1616 = vsel %vm1613, %v1612, %v1608
      %v1617 = vsel %vm1613, %v1612, %v1610
      %vm1622 = vcmask 1043595
      %vm1623 = vcmask 1047559
      %vm1624 = vmor %vm1623, %vm1622
      %1625 = vst.msk [vmem:[#allocation2] sm:$0x88] %vm1624, %v1614
      %vm1626 = vcmask 396291
      %1627 = vst.msk [vmem:[#allocation2 + $0x8] sm:$0x8] %vm1626, %v1615
      %vm1628 = vcmask 1040520
      %vm1629 = vmand %vm1628, %vm1513
      %vm1630 = vcmask 1044484
      %vm1631 = vsmask.f32 4352
      %vm1632 = vmand %vm1630, %vm1631
      %vm1633 = vmor %vm1632, %vm1629
      %v1634 = vld [vmem:[#allocation2 + $0xc] sm:$0x11]
      %v1635 = vsel %vm1633, %v1616, %v1634
      %1636 = vst [vmem:[#allocation2 + $0xc] sm:$0x11] %v1635
      %vm1637 = vcmask 393216
      %vm1638 = vmand %vm1637, %vm1513
      %v1639 = vld [vmem:[#allocation2 + $0x14] sm:$0x1]
      %v1640 = vsel %vm1638, %v1617, %v1639
      %1641 = vst [vmem:[#allocation2 + $0x14] sm:$0x1] %v1640
      %v1642 = vld [vmem:[%s53] sm:$0x7]
      %v1643 = vld [vmem:[%s5] sm:$0xf]
      %v1644 = vld [vmem:[#allocation2] sm:$0xff]
      %v1645 = vld [vmem:[#allocation2 + $0x8] sm:$0xf]
      %v1646 = vld [vmem:[#allocation2 + $0xc] sm:$0x11]
      %v1647 = vld [vmem:[#allocation2 + $0x14] sm:$0x1]
      %s1648 = scalar_lea.vmem %s5, 4
      %v1649 = vld [vmem:[%s1648] sm:$0xf]
      %v1654 = vunpack.c.l.b16 %v1644
      %v1655 = vunpack.c.h.b16 %v1644
      %v1656 = vunpack.c.l.b16 %v1645
      %v1657 = vunpack.c.l.b16 %v1646
      %v1658 = vunpack.c.h.b16 %v1646
      %v1659 = vunpack.c.l.b16 %v1647
      %v1660 = vpack.c.b16 %v1657, %v1654
      %v1661 = vpack.c.b16 %v1658, %v1655
      %v1662 = vpack.c.b16 %v1659, %v1656
      %1663 = vrot.lane.b32.xlu0 %v1660, 110
      %v1664 = vpop.permute.xlu0 %1663
      %1665 = vrot.lane.b32.xlu0 %v1661, 110
      %v1666 = vpop.permute.xlu0 %1665
      %1667 = vrot.lane.b32.xlu0 %v1662, 110
      %v1668 = vpop.permute.xlu0 %1667
      %vm1669 = vcmask 900096
      %v1670 = vsel %vm1669, %v1664, %v1666
      %v1671 = vsel %vm1669, %v1666, %v1668
      %vm1672 = vcmask 72704
      %v1674 = vsel %vm1672, %v1649, 0
      %vm1676 = vcmask 1043456
      %vm1677 = vcmask 1044480
      %v1678 = vsel %vm1676, 4294967295, 65535
      %v1679 = vsel %vm1677, %v1678, 0
      %v1681 = vand.u32 %v1670, %v1679
      %v1684 = vand.u32 %v1671, %v1679
      %v1687 = vand.u32 %v1668, %v1679
      %1689 = vmatprep.subr.bf16.mxu0 %v1684
      %1690 = vmatpush1.bf16.msra.mxu0 %v1681
      %1691 = vmatprep.subr.bf16.mxu0 0
      %1692 = vmatpush1.bf16.msra.mxu0 0
      %1693 = vmatprep.subr.bf16.mxu0 0
      %1694 = vmatpush1.bf16.msra.mxu0 0
      %1695 = vmatprep.subr.bf16.mxu0 0
      %1696 = vmatpush1.bf16.msra.mxu0 0
      %1697 = vmatprep.subr.bf16.mxu0 0
      %1698 = vmatpush1.bf16.msra.mxu0 0
      %1699 = vmatprep.subr.bf16.mxu0 0
      %1700 = vmatpush1.bf16.msra.mxu0 0
      %1701 = vmatprep.subr.bf16.mxu0 0
      %1702 = vmatpush1.bf16.msra.mxu0 0
      %1703 = vmatprep.subr.bf16.mxu0 0
      %1704 = vmatpush1.bf16.msra.mxu0 0
      %1705 = vmatprep.subr.bf16.mxu0 0
      %1706 = vmatpush1.bf16.msra.mxu0 0
      %1707 = vmatprep.subr.bf16.mxu0 0
      %1708 = vmatpush1.bf16.msra.mxu0 0
      %1709 = vmatprep.subr.bf16.mxu0 0
      %1710 = vmatpush1.bf16.msra.mxu0 0
      %1711 = vmatprep.subr.bf16.mxu0 0
      %1712 = vmatpush1.bf16.msra.mxu0 0
      %1713 = vmatprep.subr.bf16.mxu0 0
      %1714 = vmatpush1.bf16.msra.mxu0 0
      %1715 = vmatprep.subr.bf16.mxu0 0
      %1716 = vmatpush1.bf16.msra.mxu0 0
      %1717 = vmatprep.subr.bf16.mxu0 0
      %1718 = vmatpush1.bf16.msra.mxu0 0
      %1719 = vmatprep.subr.bf16.mxu0 0
      %1720 = vmatpush1.bf16.msra.mxu0 0
      %1721 = vmatprep.mubr.bf16.mxu0 0
      %1722 = vmatmul.mubr.bf16.gmra.mrb[0].mxu0 %v1674
      %v1723 = vpop.f32.mrb[0].mxu0
      %v1724 = vadd.f32 0.0, %v1723
      %v1725 = vpop.f32.mrb[0].mxu0
      %v1726 = vadd.f32 0.0, %v1725
      %v1727 = vpop.f32.mrb[0].mxu0
      %v1728 = vpop.f32.mrb[0].mxu0
      %1729 = vdwg.mxu0
      %1730 = vmatprep.subr.bf16.mxu0 0
      %1731 = vmatpush1.bf16.msra.mxu0 %v1687
      %1732 = vmatprep.subr.bf16.mxu0 0
      %1733 = vmatpush1.bf16.msra.mxu0 0
      %1734 = vmatprep.subr.bf16.mxu0 0
      %1735 = vmatpush1.bf16.msra.mxu0 0
      %1736 = vmatprep.subr.bf16.mxu0 0
      %1737 = vmatpush1.bf16.msra.mxu0 0
      %1738 = vmatprep.subr.bf16.mxu0 0
      %1739 = vmatpush1.bf16.msra.mxu0 0
      %1740 = vmatprep.subr.bf16.mxu0 0
      %1741 = vmatpush1.bf16.msra.mxu0 0
      %1742 = vmatprep.subr.bf16.mxu0 0
      %1743 = vmatpush1.bf16.msra.mxu0 0
      %1744 = vmatprep.subr.bf16.mxu0 0
      %1745 = vmatpush1.bf16.msra.mxu0 0
      %1746 = vmatprep.subr.bf16.mxu0 0
      %1747 = vmatpush1.bf16.msra.mxu0 0
      %1748 = vmatprep.subr.bf16.mxu0 0
      %1749 = vmatpush1.bf16.msra.mxu0 0
      %1750 = vmatprep.subr.bf16.mxu0 0
      %1751 = vmatpush1.bf16.msra.mxu0 0
      %1752 = vmatprep.subr.bf16.mxu0 0
      %1753 = vmatpush1.bf16.msra.mxu0 0
      %1754 = vmatprep.subr.bf16.mxu0 0
      %1755 = vmatpush1.bf16.msra.mxu0 0
      %1756 = vmatprep.subr.bf16.mxu0 0
      %1757 = vmatpush1.bf16.msra.mxu0 0
      %1758 = vmatprep.subr.bf16.mxu0 0
      %1759 = vmatpush1.bf16.msra.mxu0 0
      %1760 = vmatprep.subr.bf16.mxu0 0
      %1761 = vmatpush1.bf16.msra.mxu0 0
      %1762 = vmatprep.mubr.bf16.mxu0 0
      %1763 = vmatmul.mubr.bf16.gmra.mrb[0].mxu0 %v1674
      %v1764 = vpop.f32.mrb[0].mxu0
      %v1765 = vadd.f32 0.0, %v1764
      %v1766 = vpop.f32.mrb[0].mxu0
      %v1767 = vpop.f32.mrb[0].mxu0
      %v1768 = vpop.f32.mrb[0].mxu0
      %1769 = vdwg.mxu0
      %v1771 = vsel %vm1672, %v1643, 0
      %v1774 = vand.u32 %v1660, %v1679
      %v1777 = vand.u32 %v1661, %v1679
      %v1780 = vand.u32 %v1662, %v1679
      %1782 = vmatprep.subr.bf16.mxu0 %v1777
      %1783 = vmatpush1.bf16.msra.mxu0 %v1774
      %1784 = vmatprep.subr.bf16.mxu0 0
      %1785 = vmatpush1.bf16.msra.mxu0 0
      %1786 = vmatprep.subr.bf16.mxu0 0
      %1787 = vmatpush1.bf16.msra.mxu0 0
      %1788 = vmatprep.subr.bf16.mxu0 0
      %1789 = vmatpush1.bf16.msra.mxu0 0
      %1790 = vmatprep.subr.bf16.mxu0 0
      %1791 = vmatpush1.bf16.msra.mxu0 0
      %1792 = vmatprep.subr.bf16.mxu0 0
      %1793 = vmatpush1.bf16.msra.mxu0 0
      %1794 = vmatprep.subr.bf16.mxu0 0
      %1795 = vmatpush1.bf16.msra.mxu0 0
      %1796 = vmatprep.subr.bf16.mxu0 0
      %1797 = vmatpush1.bf16.msra.mxu0 0
      %1798 = vmatprep.subr.bf16.mxu0 0
      %1799 = vmatpush1.bf16.msra.mxu0 0
      %1800 = vmatprep.subr.bf16.mxu0 0
      %1801 = vmatpush1.bf16.msra.mxu0 0
      %1802 = vmatprep.subr.bf16.mxu0 0
      %1803 = vmatpush1.bf16.msra.mxu0 0
      %1804 = vmatprep.subr.bf16.mxu0 0
      %1805 = vmatpush1.bf16.msra.mxu0 0
      %1806 = vmatprep.subr.bf16.mxu0 0
      %1807 = vmatpush1.bf16.msra.mxu0 0
      %1808 = vmatprep.subr.bf16.mxu0 0
      %1809 = vmatpush1.bf16.msra.mxu0 0
      %1810 = vmatprep.subr.bf16.mxu0 0
      %1811 = vmatpush1.bf16.msra.mxu0 0
      %1812 = vmatprep.subr.bf16.mxu0 0
      %1813 = vmatpush1.bf16.msra.mxu0 0
      %1814 = vmatprep.mubr.bf16.mxu0 0
      %1815 = vmatmul.mubr.bf16.gmra.mrb[0].mxu0 %v1771
      %v1816 = vpop.f32.mrb[0].mxu0
      %v1817 = vadd.f32 %v1724, %v1816
      %v1818 = vpop.f32.mrb[0].mxu0
      %v1819 = vadd.f32 %v1726, %v1818
      %v1820 = vpop.f32.mrb[0].mxu0
      %v1821 = vpop.f32.mrb[0].mxu0
      %1822 = vdwg.mxu0
      %1823 = vmatprep.subr.bf16.mxu0 0
      %1824 = vmatpush1.bf16.msra.mxu0 %v1780
      %1825 = vmatprep.subr.bf16.mxu0 0
      %1826 = vmatpush1.bf16.msra.mxu0 0
      %1827 = vmatprep.subr.bf16.mxu0 0
      %1828 = vmatpush1.bf16.msra.mxu0 0
      %1829 = vmatprep.subr.bf16.mxu0 0
      %1830 = vmatpush1.bf16.msra.mxu0 0
      %1831 = vmatprep.subr.bf16.mxu0 0
      %1832 = vmatpush1.bf16.msra.mxu0 0
      %1833 = vmatprep.subr.bf16.mxu0 0
      %1834 = vmatpush1.bf16.msra.mxu0 0
      %1835 = vmatprep.subr.bf16.mxu0 0
      %1836 = vmatpush1.bf16.msra.mxu0 0
      %1837 = vmatprep.subr.bf16.mxu0 0
      %1838 = vmatpush1.bf16.msra.mxu0 0
      %1839 = vmatprep.subr.bf16.mxu0 0
      %1840 = vmatpush1.bf16.msra.mxu0 0
      %1841 = vmatprep.subr.bf16.mxu0 0
      %1842 = vmatpush1.bf16.msra.mxu0 0
      %1843 = vmatprep.subr.bf16.mxu0 0
      %1844 = vmatpush1.bf16.msra.mxu0 0
      %1845 = vmatprep.subr.bf16.mxu0 0
      %1846 = vmatpush1.bf16.msra.mxu0 0
      %1847 = vmatprep.subr.bf16.mxu0 0
      %1848 = vmatpush1.bf16.msra.mxu0 0
      %1849 = vmatprep.subr.bf16.mxu0 0
      %1850 = vmatpush1.bf16.msra.mxu0 0
      %1851 = vmatprep.subr.bf16.mxu0 0
      %1852 = vmatpush1.bf16.msra.mxu0 0
      %1853 = vmatprep.subr.bf16.mxu0 0
      %1854 = vmatpush1.bf16.msra.mxu0 0
      %1855 = vmatprep.mubr.bf16.mxu0 0
      %1856 = vmatmul.mubr.bf16.gmra.mrb[0].mxu0 %v1771
      %v1857 = vpop.f32.mrb[0].mxu0
      %v1858 = vadd.f32 %v1765, %v1857
      %v1859 = vpop.f32.mrb[0].mxu0
      %v1860 = vpop.f32.mrb[0].mxu0
      %v1861 = vpop.f32.mrb[0].mxu0
      %1862 = vdwg.mxu0
      %s1863 = scalar_lea.vmem %s5, 8
      %v1864 = vld [vmem:[%s1863] sm:$0xf]
      %1865 = vrot.lane.b32.xlu0 %v1660, 92
      %v1866 = vpop.permute.xlu0 %1865
      %1867 = vrot.lane.b32.xlu0 %v1661, 92
      %v1868 = vpop.permute.xlu0 %1867
      %1869 = vrot.lane.b32.xlu0 %v1662, 92
      %v1870 = vpop.permute.xlu0 %1869
      %vm1871 = vcmask 752640
      %v1872 = vsel %vm1871, %v1866, %v1868
      %v1873 = vsel %vm1871, %v1868, %v1870
      %v1875 = vsel %vm1672, %v1864, 0
      %v1878 = vand.u32 %v1872, %v1679
      %v1881 = vand.u32 %v1873, %v1679
      %v1884 = vand.u32 %v1870, %v1679
      %1886 = vmatprep.subr.bf16.mxu0 %v1881
      %1887 = vmatpush1.bf16.msra.mxu0 %v1878
      %1888 = vmatprep.subr.bf16.mxu0 0
      %1889 = vmatpush1.bf16.msra.mxu0 0
      %1890 = vmatprep.subr.bf16.mxu0 0
      %1891 = vmatpush1.bf16.msra.mxu0 0
      %1892 = vmatprep.subr.bf16.mxu0 0
      %1893 = vmatpush1.bf16.msra.mxu0 0
      %1894 = vmatprep.subr.bf16.mxu0 0
      %1895 = vmatpush1.bf16.msra.mxu0 0
      %1896 = vmatprep.subr.bf16.mxu0 0
      %1897 = vmatpush1.bf16.msra.mxu0 0
      %1898 = vmatprep.subr.bf16.mxu0 0
      %1899 = vmatpush1.bf16.msra.mxu0 0
      %1900 = vmatprep.subr.bf16.mxu0 0
      %1901 = vmatpush1.bf16.msra.mxu0 0
      %1902 = vmatprep.subr.bf16.mxu0 0
      %1903 = vmatpush1.bf16.msra.mxu0 0
      %1904 = vmatprep.subr.bf16.mxu0 0
      %1905 = vmatpush1.bf16.msra.mxu0 0
      %1906 = vmatprep.subr.bf16.mxu0 0
      %1907 = vmatpush1.bf16.msra.mxu0 0
      %1908 = vmatprep.subr.bf16.mxu0 0
      %1909 = vmatpush1.bf16.msra.mxu0 0
      %1910 = vmatprep.subr.bf16.mxu0 0
      %1911 = vmatpush1.bf16.msra.mxu0 0
      %1912 = vmatprep.subr.bf16.mxu0 0
      %1913 = vmatpush1.bf16.msra.mxu0 0
      %1914 = vmatprep.subr.bf16.mxu0 0
      %1915 = vmatpush1.bf16.msra.mxu0 0
      %1916 = vmatprep.subr.bf16.mxu0 0
      %1917 = vmatpush1.bf16.msra.mxu0 0
      %1918 = vmatprep.mubr.bf16.mxu0 0
      %1919 = vmatmul.mubr.bf16.gmra.mrb[0].mxu0 %v1875
      %v1920 = vpop.f32.mrb[0].mxu0
      %v1921 = vadd.f32 0.0, %v1920
      %v1922 = vpop.f32.mrb[0].mxu0
      %v1923 = vadd.f32 0.0, %v1922
      %v1924 = vpop.f32.mrb[0].mxu0
      %v1925 = vpop.f32.mrb[0].mxu0
      %1926 = vdwg.mxu0
      %1927 = vmatprep.subr.bf16.mxu0 0
      %1928 = vmatpush1.bf16.msra.mxu0 %v1884
      %1929 = vmatprep.subr.bf16.mxu0 0
      %1930 = vmatpush1.bf16.msra.mxu0 0
      %1931 = vmatprep.subr.bf16.mxu0 0
      %1932 = vmatpush1.bf16.msra.mxu0 0
      %1933 = vmatprep.subr.bf16.mxu0 0
      %1934 = vmatpush1.bf16.msra.mxu0 0
      %1935 = vmatprep.subr.bf16.mxu0 0
      %1936 = vmatpush1.bf16.msra.mxu0 0
      %1937 = vmatprep.subr.bf16.mxu0 0
      %1938 = vmatpush1.bf16.msra.mxu0 0
      %1939 = vmatprep.subr.bf16.mxu0 0
      %1940 = vmatpush1.bf16.msra.mxu0 0
      %1941 = vmatprep.subr.bf16.mxu0 0
      %1942 = vmatpush1.bf16.msra.mxu0 0
      %1943 = vmatprep.subr.bf16.mxu0 0
      %1944 = vmatpush1.bf16.msra.mxu0 0
      %1945 = vmatprep.subr.bf16.mxu0 0
      %1946 = vmatpush1.bf16.msra.mxu0 0
      %1947 = vmatprep.subr.bf16.mxu0 0
      %1948 = vmatpush1.bf16.msra.mxu0 0
      %1949 = vmatprep.subr.bf16.mxu0 0
      %1950 = vmatpush1.bf16.msra.mxu0 0
      %1951 = vmatprep.subr.bf16.mxu0 0
      %1952 = vmatpush1.bf16.msra.mxu0 0
      %1953 = vmatprep.subr.bf16.mxu0 0
      %1954 = vmatpush1.bf16.msra.mxu0 0
      %1955 = vmatprep.subr.bf16.mxu0 0
      %1956 = vmatpush1.bf16.msra.mxu0 0
      %1957 = vmatprep.subr.bf16.mxu0 0
      %1958 = vmatpush1.bf16.msra.mxu0 0
      %1959 = vmatprep.mubr.bf16.mxu0 0
      %1960 = vmatmul.mubr.bf16.gmra.mrb[0].mxu0 %v1875
      %v1961 = vpop.f32.mrb[0].mxu0
      %v1962 = vadd.f32 0.0, %v1961
      %v1963 = vpop.f32.mrb[0].mxu0
      %v1964 = vpop.f32.mrb[0].mxu0
      %v1965 = vpop.f32.mrb[0].mxu0
      %1966 = vdwg.mxu0
      %v1967 = vadd.f32 %v1817, %v1921
      %v1968 = vadd.f32 %v1819, %v1923
      %v1969 = vadd.f32 %v1858, %v1962
      %v1970 = vld [vmem:[%s21] sm:$0xff]
      %1972 = vset.pattern.permute.xlu0 0
      %1973 = vperm.xlu0 %1972, %v1970
      %v1974 = vpop.permute.xlu0 %1973
      %v1976 = vmul.f32 %v1967, %v1974
      %v1977 = vmul.f32 %v1968, %v1974
      %v1978 = vmul.f32 %v1969, %v1974
      %v1979 = vld [vmem:[%s37] sm:$0xff]
      %1981 = vset.pattern.permute.xlu0 0
      %1982 = vperm.xlu0 %1981, %v1979
      %v1983 = vpop.permute.xlu0 %1982
      %v1985 = vadd.f32 %v1976, %v1983
      %v1986 = vadd.f32 %v1977, %v1983
      %v1987 = vadd.f32 %v1978, %v1983
      %v1988 = vmax.f32 %v1985, 0.0
      %v1989 = vmax.f32 %v1986, 0.0
      %v1990 = vmax.f32 %v1987, 0.0
      %v1992 = vlaneseq
      %v1993 = vshrl.u32 %v1992, 7
      %v1994 = vsub.s32 0, %v1993
      %v1995 = vrot.slane %v1642, %v1994
      %v1996 = vlaneseq
      %v1997 = vshrl.u32 %v1996, 7
      %v1998 = vsub.s32 1, %v1997
      %v1999 = vrot.slane %v1642, %v1998
      %v2000 = vlaneseq
      %v2001 = vshrl.u32 %v2000, 7
      %v2002 = vsub.s32 2, %v2001
      %v2003 = vrot.slane %v1642, %v2002
      %v2007 = vmul.f32 %v1988, %v1995
      %v2008 = vmul.f32 %v1989, %v1999
      %v2009 = vmul.f32 %v1990, %v2003
      %v2010 = vpack.c.bf16 %v2007, %v2007
      %v2011 = vpack.c.bf16 %v2008, %v2008
      %v2012 = vpack.c.bf16 %v2009, %v2009
      %2013 = vst.msk [vmem:[#allocation3] sm:$0xf] %vm1510, 0
      %2014 = vst.msk [vmem:[#allocation3 + $0xc] sm:$0xf] %vm1510, 0
      %2015 = vst.msk [vmem:[#allocation3 + $0x18] sm:$0xf] %vm1510, 0
      %2016 = vst.msk [vmem:[#allocation3 + $0x8] sm:$0xf] %vm1518, 0
      %2017 = vst.msk [vmem:[#allocation3 + $0x14] sm:$0xf] %vm1518, 0
      %2018 = vst.msk [vmem:[#allocation3 + $0x20] sm:$0xf] %vm1518, 0
      %v2022 = vunpack.c.l.b16 %v2010
      %v2023 = vunpack.c.l.b16 %v2011
      %v2024 = vunpack.c.l.b16 %v2012
      %v2025 = vpack.c.b16 %v2023, %v2022
      %v2026 = vpack.c.b16 %v2024, %v2024
      %2027 = vrot.lane.b32.xlu0 %v2025, 19
      %v2028 = vpop.permute.xlu0 %2027
      %2029 = vrot.lane.b32.xlu0 %v2026, 19
      %v2030 = vpop.permute.xlu0 %2029
      %v2031 = vrot.slane %v2028, 4
      %v2032 = vsel %vm1538, %v2031, %v2028
      %v2033 = vsel %vm1538, %v2031, %v2030
      %vm2036 = vcmask 1043608
      %vm2037 = vcmask 1047556
      %vm2038 = vmor %vm2037, %vm2036
      %2039 = vst.msk [vmem:[#allocation3] sm:$0xff] %vm2038, %v2032
      %vm2040 = vcmask 412672
      %2041 = vst.msk [vmem:[#allocation3 + $0x8] sm:$0xf] %vm2040, %v2033
      %2042 = vrot.lane.b32.xlu0 %v2025, 18
      %v2043 = vpop.permute.xlu0 %2042
      %2044 = vrot.lane.b32.xlu0 %v2026, 18
      %v2045 = vpop.permute.xlu0 %2044
      %v2046 = vrot.slane %v2043, 4
      %v2047 = vsel %vm1579, %v2046, %v2043
      %v2048 = vsel %vm1579, %v2046, %v2045
      %vm2051 = vcmask 1043600
      %vm2052 = vmor %vm2037, %vm2051
      %2053 = vst.msk [vmem:[#allocation3 + $0xc] sm:$0xff] %vm2052, %v2047
      %vm2054 = vcmask 404480
      %2055 = vst.msk [vmem:[#allocation3 + $0x14] sm:$0xf] %vm2054, %v2048
      %2056 = vrot.lane.b32.xlu0 %v2025, 17
      %v2057 = vpop.permute.xlu0 %2056
      %2058 = vrot.lane.b32.xlu0 %v2026, 17
      %v2059 = vpop.permute.xlu0 %2058
      %v2060 = vrot.slane %v2057, 4
      %v2061 = vsel %vm1613, %v2060, %v2057
      %v2062 = vsel %vm1613, %v2060, %v2059
      %vm2065 = vcmask 1043592
      %vm2066 = vmor %vm2037, %vm2065
      %2067 = vst.msk [vmem:[#allocation3 + $0x18] sm:$0xff] %vm2066, %v2061
      %vm2068 = vcmask 396288
      %2069 = vst.msk [vmem:[#allocation3 + $0x20] sm:$0xf] %vm2068, %v2062
      %v2070 = vld [vmem:[%s7] sm:$0xf]
      %v2071 = vld [vmem:[#allocation3] sm:$0xff]
      %v2072 = vld [vmem:[#allocation3 + $0x8] sm:$0xf]
      %v2073 = vld [vmem:[#allocation3 + $0xc] sm:$0xff]
      %v2074 = vld [vmem:[#allocation3 + $0x14] sm:$0xf]
      %v2075 = vld [vmem:[#allocation3 + $0x18] sm:$0xff]
      %v2076 = vld [vmem:[#allocation3 + $0x20] sm:$0xf]
      %s2077 = scalar_lea.vmem %s7, 4
      %v2078 = vld [vmem:[%s2077] sm:$0xf]
      %v2085 = vunpack.c.l.b16 %v2071
      %v2086 = vunpack.c.h.b16 %v2071
      %v2087 = vunpack.c.l.b16 %v2072
      %v2088 = vunpack.c.l.b16 %v2073
      %v2089 = vunpack.c.h.b16 %v2073
      %v2090 = vunpack.c.l.b16 %v2074
      %v2091 = vunpack.c.l.b16 %v2075
      %v2092 = vunpack.c.h.b16 %v2075
      %v2093 = vunpack.c.l.b16 %v2076
      %v2094 = vpack.c.b16 %v2088, %v2085
      %v2095 = vpack.c.b16 %v2089, %v2086
      %v2096 = vpack.c.b16 %v2090, %v2087
      %v2097 = vpack.c.b16 %v2091, %v2091
      %v2098 = vpack.c.b16 %v2092, %v2092
      %v2099 = vpack.c.b16 %v2093, %v2093
      %2100 = vrot.lane.b32.xlu0 %v2094, 110
      %v2101 = vpop.permute.xlu0 %2100
      %2102 = vrot.lane.b32.xlu0 %v2095, 110
      %v2103 = vpop.permute.xlu0 %2102
      %2104 = vrot.lane.b32.xlu0 %v2096, 110
      %v2105 = vpop.permute.xlu0 %2104
      %2106 = vrot.lane.b32.xlu0 %v2097, 110
      %v2107 = vpop.permute.xlu0 %2106
      %2108 = vrot.lane.b32.xlu0 %v2098, 110
      %v2109 = vpop.permute.xlu0 %2108
      %2110 = vrot.lane.b32.xlu0 %v2099, 110
      %v2111 = vpop.permute.xlu0 %2110
      %v2112 = vsel %vm1669, %v2101, %v2103
      %v2113 = vsel %vm1669, %v2103, %v2105
      %v2114 = vsel %vm1669, %v2107, %v2109
      %v2115 = vsel %vm1669, %v2109, %v2111
      %vm2119 = vcmask 195584
      %v2121 = vsel %vm2119, %v2078, 0
      %v2124 = vsel %vm1676, %v2114, 0
      %v2127 = vsel %vm1676, %v2115, 0
      %v2130 = vsel %vm1676, %v2111, 0
      %2132 = vmatprep.subr.bf16.mxu0 %v2113
      %2133 = vmatpush1.bf16.msra.mxu0 %v2112
      %2134 = vmatprep.subr.bf16.mxu0 %v2127
      %2135 = vmatpush1.bf16.msra.mxu0 %v2124
      %2136 = vmatprep.subr.bf16.mxu0 0
      %2137 = vmatpush1.bf16.msra.mxu0 0
      %2138 = vmatprep.subr.bf16.mxu0 0
      %2139 = vmatpush1.bf16.msra.mxu0 0
      %2140 = vmatprep.subr.bf16.mxu0 0
      %2141 = vmatpush1.bf16.msra.mxu0 0
      %2142 = vmatprep.subr.bf16.mxu0 0
      %2143 = vmatpush1.bf16.msra.mxu0 0
      %2144 = vmatprep.subr.bf16.mxu0 0
      %2145 = vmatpush1.bf16.msra.mxu0 0
      %2146 = vmatprep.subr.bf16.mxu0 0
      %2147 = vmatpush1.bf16.msra.mxu0 0
      %2148 = vmatprep.subr.bf16.mxu0 0
      %2149 = vmatpush1.bf16.msra.mxu0 0
      %2150 = vmatprep.subr.bf16.mxu0 0
      %2151 = vmatpush1.bf16.msra.mxu0 0
      %2152 = vmatprep.subr.bf16.mxu0 0
      %2153 = vmatpush1.bf16.msra.mxu0 0
      %2154 = vmatprep.subr.bf16.mxu0 0
      %2155 = vmatpush1.bf16.msra.mxu0 0
      %2156 = vmatprep.subr.bf16.mxu0 0
      %2157 = vmatpush1.bf16.msra.mxu0 0
      %2158 = vmatprep.subr.bf16.mxu0 0
      %2159 = vmatpush1.bf16.msra.mxu0 0
      %2160 = vmatprep.subr.bf16.mxu0 0
      %2161 = vmatpush1.bf16.msra.mxu0 0
      %2162 = vmatprep.subr.bf16.mxu0 0
      %2163 = vmatpush1.bf16.msra.mxu0 0
      %2164 = vmatprep.mubr.bf16.mxu0 0
      %2165 = vmatmul.mubr.bf16.gmra.mrb[0].mxu0 %v2121
      %v2166 = vpop.f32.mrb[0].mxu0
      %v2167 = vadd.f32 0.0, %v2166
      %v2168 = vpop.f32.mrb[0].mxu0
      %v2169 = vadd.f32 0.0, %v2168
      %v2170 = vpop.f32.mrb[0].mxu0
      %v2171 = vpop.f32.mrb[0].mxu0
      %2172 = vdwg.mxu0
      %2173 = vmatprep.subr.bf16.mxu0 0
      %2174 = vmatpush1.bf16.msra.mxu0 %v2105
      %2175 = vmatprep.subr.bf16.mxu0 0
      %2176 = vmatpush1.bf16.msra.mxu0 %v2130
      %2177 = vmatprep.subr.bf16.mxu0 0
      %2178 = vmatpush1.bf16.msra.mxu0 0
      %2179 = vmatprep.subr.bf16.mxu0 0
      %2180 = vmatpush1.bf16.msra.mxu0 0
      %2181 = vmatprep.subr.bf16.mxu0 0
      %2182 = vmatpush1.bf16.msra.mxu0 0
      %2183 = vmatprep.subr.bf16.mxu0 0
      %2184 = vmatpush1.bf16.msra.mxu0 0
      %2185 = vmatprep.subr.bf16.mxu0 0
      %2186 = vmatpush1.bf16.msra.mxu0 0
      %2187 = vmatprep.subr.bf16.mxu0 0
      %2188 = vmatpush1.bf16.msra.mxu0 0
      %2189 = vmatprep.subr.bf16.mxu0 0
      %2190 = vmatpush1.bf16.msra.mxu0 0
      %2191 = vmatprep.subr.bf16.mxu0 0
      %2192 = vmatpush1.bf16.msra.mxu0 0
      %2193 = vmatprep.subr.bf16.mxu0 0
      %2194 = vmatpush1.bf16.msra.mxu0 0
      %2195 = vmatprep.subr.bf16.mxu0 0
      %2196 = vmatpush1.bf16.msra.mxu0 0
      %2197 = vmatprep.subr.bf16.mxu0 0
      %2198 = vmatpush1.bf16.msra.mxu0 0
      %2199 = vmatprep.subr.bf16.mxu0 0
      %2200 = vmatpush1.bf16.msra.mxu0 0
      %2201 = vmatprep.subr.bf16.mxu0 0
      %2202 = vmatpush1.bf16.msra.mxu0 0
      %2203 = vmatprep.subr.bf16.mxu0 0
      %2204 = vmatpush1.bf16.msra.mxu0 0
      %2205 = vmatprep.mubr.bf16.mxu0 0
      %2206 = vmatmul.mubr.bf16.gmra.mrb[0].mxu0 %v2121
      %v2207 = vpop.f32.mrb[0].mxu0
      %v2208 = vadd.f32 0.0, %v2207
      %v2209 = vpop.f32.mrb[0].mxu0
      %v2210 = vpop.f32.mrb[0].mxu0
      %v2211 = vpop.f32.mrb[0].mxu0
      %2212 = vdwg.mxu0
      %v2217 = vsel %vm2119, %v2070, 0
      %v2220 = vsel %vm1676, %v2097, 0
      %v2223 = vsel %vm1676, %v2098, 0
      %v2226 = vsel %vm1676, %v2099, 0
      %2228 = vmatprep.subr.bf16.mxu0 %v2095
      %2229 = vmatpush1.bf16.msra.mxu0 %v2094
      %2230 = vmatprep.subr.bf16.mxu0 %v2223
      %2231 = vmatpush1.bf16.msra.mxu0 %v2220
      %2232 = vmatprep.subr.bf16.mxu0 0
      %2233 = vmatpush1.bf16.msra.mxu0 0
      %2234 = vmatprep.subr.bf16.mxu0 0
      %2235 = vmatpush1.bf16.msra.mxu0 0
      %2236 = vmatprep.subr.bf16.mxu0 0
      %2237 = vmatpush1.bf16.msra.mxu0 0
      %2238 = vmatprep.subr.bf16.mxu0 0
      %2239 = vmatpush1.bf16.msra.mxu0 0
      %2240 = vmatprep.subr.bf16.mxu0 0
      %2241 = vmatpush1.bf16.msra.mxu0 0
      %2242 = vmatprep.subr.bf16.mxu0 0
      %2243 = vmatpush1.bf16.msra.mxu0 0
      %2244 = vmatprep.subr.bf16.mxu0 0
      %2245 = vmatpush1.bf16.msra.mxu0 0
      %2246 = vmatprep.subr.bf16.mxu0 0
      %2247 = vmatpush1.bf16.msra.mxu0 0
      %2248 = vmatprep.subr.bf16.mxu0 0
      %2249 = vmatpush1.bf16.msra.mxu0 0
      %2250 = vmatprep.subr.bf16.mxu0 0
      %2251 = vmatpush1.bf16.msra.mxu0 0
      %2252 = vmatprep.subr.bf16.mxu0 0
      %2253 = vmatpush1.bf16.msra.mxu0 0
      %2254 = vmatprep.subr.bf16.mxu0 0
      %2255 = vmatpush1.bf16.msra.mxu0 0
      %2256 = vmatprep.subr.bf16.mxu0 0
      %2257 = vmatpush1.bf16.msra.mxu0 0
      %2258 = vmatprep.subr.bf16.mxu0 0
      %2259 = vmatpush1.bf16.msra.mxu0 0
      %2260 = vmatprep.mubr.bf16.mxu0 0
      %2261 = vmatmul.mubr.bf16.gmra.mrb[0].mxu0 %v2217
      %v2262 = vpop.f32.mrb[0].mxu0
      %v2263 = vadd.f32 %v2167, %v2262
      %v2264 = vpop.f32.mrb[0].mxu0
      %v2265 = vadd.f32 %v2169, %v2264
      %v2266 = vpop.f32.mrb[0].mxu0
      %v2267 = vpop.f32.mrb[0].mxu0
      %2268 = vdwg.mxu0
      %2269 = vmatprep.subr.bf16.mxu0 0
      %2270 = vmatpush1.bf16.msra.mxu0 %v2096
      %2271 = vmatprep.subr.bf16.mxu0 0
      %2272 = vmatpush1.bf16.msra.mxu0 %v2226
      %2273 = vmatprep.subr.bf16.mxu0 0
      %2274 = vmatpush1.bf16.msra.mxu0 0
      %2275 = vmatprep.subr.bf16.mxu0 0
      %2276 = vmatpush1.bf16.msra.mxu0 0
      %2277 = vmatprep.subr.bf16.mxu0 0
      %2278 = vmatpush1.bf16.msra.mxu0 0
      %2279 = vmatprep.subr.bf16.mxu0 0
      %2280 = vmatpush1.bf16.msra.mxu0 0
      %2281 = vmatprep.subr.bf16.mxu0 0
      %2282 = vmatpush1.bf16.msra.mxu0 0
      %2283 = vmatprep.subr.bf16.mxu0 0
      %2284 = vmatpush1.bf16.msra.mxu0 0
      %2285 = vmatprep.subr.bf16.mxu0 0
      %2286 = vmatpush1.bf16.msra.mxu0 0
      %2287 = vmatprep.subr.bf16.mxu0 0
      %2288 = vmatpush1.bf16.msra.mxu0 0
      %2289 = vmatprep.subr.bf16.mxu0 0
      %2290 = vmatpush1.bf16.msra.mxu0 0
      %2291 = vmatprep.subr.bf16.mxu0 0
      %2292 = vmatpush1.bf16.msra.mxu0 0
      %2293 = vmatprep.subr.bf16.mxu0 0
      %2294 = vmatpush1.bf16.msra.mxu0 0
      %2295 = vmatprep.subr.bf16.mxu0 0
      %2296 = vmatpush1.bf16.msra.mxu0 0
      %2297 = vmatprep.subr.bf16.mxu0 0
      %2298 = vmatpush1.bf16.msra.mxu0 0
      %2299 = vmatprep.subr.bf16.mxu0 0
      %2300 = vmatpush1.bf16.msra.mxu0 0
      %2301 = vmatprep.mubr.bf16.mxu0 0
      %2302 = vmatmul.mubr.bf16.gmra.mrb[0].mxu0 %v2217
      %v2303 = vpop.f32.mrb[0].mxu0
      %v2304 = vadd.f32 %v2208, %v2303
      %v2305 = vpop.f32.mrb[0].mxu0
      %v2306 = vpop.f32.mrb[0].mxu0
      %v2307 = vpop.f32.mrb[0].mxu0
      %2308 = vdwg.mxu0
      %s2309 = scalar_lea.vmem %s7, 8
      %v2310 = vld [vmem:[%s2309] sm:$0xf]
      %2311 = vrot.lane.b32.xlu0 %v2094, 92
      %v2312 = vpop.permute.xlu0 %2311
      %2313 = vrot.lane.b32.xlu0 %v2095, 92
      %v2314 = vpop.permute.xlu0 %2313
      %2315 = vrot.lane.b32.xlu0 %v2096, 92
      %v2316 = vpop.permute.xlu0 %2315
      %2317 = vrot.lane.b32.xlu0 %v2097, 92
      %v2318 = vpop.permute.xlu0 %2317
      %2319 = vrot.lane.b32.xlu0 %v2098, 92
      %v2320 = vpop.permute.xlu0 %2319
      %2321 = vrot.lane.b32.xlu0 %v2099, 92
      %v2322 = vpop.permute.xlu0 %2321
      %v2323 = vsel %vm1871, %v2312, %v2314
      %v2324 = vsel %vm1871, %v2314, %v2316
      %v2325 = vsel %vm1871, %v2318, %v2320
      %v2326 = vsel %vm1871, %v2320, %v2322
      %v2331 = vsel %vm2119, %v2310, 0
      %v2334 = vsel %vm1676, %v2325, 0
      %v2337 = vsel %vm1676, %v2326, 0
      %v2340 = vsel %vm1676, %v2322, 0
      %2342 = vmatprep.subr.bf16.mxu0 %v2324
      %2343 = vmatpush1.bf16.msra.mxu0 %v2323
      %2344 = vmatprep.subr.bf16.mxu0 %v2337
      %2345 = vmatpush1.bf16.msra.mxu0 %v2334
      %2346 = vmatprep.subr.bf16.mxu0 0
      %2347 = vmatpush1.bf16.msra.mxu0 0
      %2348 = vmatprep.subr.bf16.mxu0 0
      %2349 = vmatpush1.bf16.msra.mxu0 0
      %2350 = vmatprep.subr.bf16.mxu0 0
      %2351 = vmatpush1.bf16.msra.mxu0 0
      %2352 = vmatprep.subr.bf16.mxu0 0
      %2353 = vmatpush1.bf16.msra.mxu0 0
      %2354 = vmatprep.subr.bf16.mxu0 0
      %2355 = vmatpush1.bf16.msra.mxu0 0
      %2356 = vmatprep.subr.bf16.mxu0 0
      %2357 = vmatpush1.bf16.msra.mxu0 0
      %2358 = vmatprep.subr.bf16.mxu0 0
      %2359 = vmatpush1.bf16.msra.mxu0 0
      %2360 = vmatprep.subr.bf16.mxu0 0
      %2361 = vmatpush1.bf16.msra.mxu0 0
      %2362 = vmatprep.subr.bf16.mxu0 0
      %2363 = vmatpush1.bf16.msra.mxu0 0
      %2364 = vmatprep.subr.bf16.mxu0 0
      %2365 = vmatpush1.bf16.msra.mxu0 0
      %2366 = vmatprep.subr.bf16.mxu0 0
      %2367 = vmatpush1.bf16.msra.mxu0 0
      %2368 = vmatprep.subr.bf16.mxu0 0
      %2369 = vmatpush1.bf16.msra.mxu0 0
      %2370 = vmatprep.subr.bf16.mxu0 0
      %2371 = vmatpush1.bf16.msra.mxu0 0
      %2372 = vmatprep.subr.bf16.mxu0 0
      %2373 = vmatpush1.bf16.msra.mxu0 0
      %2374 = vmatprep.mubr.bf16.mxu0 0
      %2375 = vmatmul.mubr.bf16.gmra.mrb[0].mxu0 %v2331
      %v2376 = vpop.f32.mrb[0].mxu0
      %v2377 = vadd.f32 0.0, %v2376
      %v2378 = vpop.f32.mrb[0].mxu0
      %v2379 = vadd.f32 0.0, %v2378
      %v2380 = vpop.f32.mrb[0].mxu0
      %v2381 = vpop.f32.mrb[0].mxu0
      %2382 = vdwg.mxu0
      %2383 = vmatprep.subr.bf16.mxu0 0
      %2384 = vmatpush1.bf16.msra.mxu0 %v2316
      %2385 = vmatprep.subr.bf16.mxu0 0
      %2386 = vmatpush1.bf16.msra.mxu0 %v2340
      %2387 = vmatprep.subr.bf16.mxu0 0
      %2388 = vmatpush1.bf16.msra.mxu0 0
      %2389 = vmatprep.subr.bf16.mxu0 0
      %2390 = vmatpush1.bf16.msra.mxu0 0
      %2391 = vmatprep.subr.bf16.mxu0 0
      %2392 = vmatpush1.bf16.msra.mxu0 0
      %2393 = vmatprep.subr.bf16.mxu0 0
      %2394 = vmatpush1.bf16.msra.mxu0 0
      %2395 = vmatprep.subr.bf16.mxu0 0
      %2396 = vmatpush1.bf16.msra.mxu0 0
      %2397 = vmatprep.subr.bf16.mxu0 0
      %2398 = vmatpush1.bf16.msra.mxu0 0
      %2399 = vmatprep.subr.bf16.mxu0 0
      %2400 = vmatpush1.bf16.msra.mxu0 0
      %2401 = vmatprep.subr.bf16.mxu0 0
      %2402 = vmatpush1.bf16.msra.mxu0 0
      %2403 = vmatprep.subr.bf16.mxu0 0
      %2404 = vmatpush1.bf16.msra.mxu0 0
      %2405 = vmatprep.subr.bf16.mxu0 0
      %2406 = vmatpush1.bf16.msra.mxu0 0
      %2407 = vmatprep.subr.bf16.mxu0 0
      %2408 = vmatpush1.bf16.msra.mxu0 0
      %2409 = vmatprep.subr.bf16.mxu0 0
      %2410 = vmatpush1.bf16.msra.mxu0 0
      %2411 = vmatprep.subr.bf16.mxu0 0
      %2412 = vmatpush1.bf16.msra.mxu0 0
      %2413 = vmatprep.subr.bf16.mxu0 0
      %2414 = vmatpush1.bf16.msra.mxu0 0
      %2415 = vmatprep.mubr.bf16.mxu0 0
      %2416 = vmatmul.mubr.bf16.gmra.mrb[0].mxu0 %v2331
      %v2417 = vpop.f32.mrb[0].mxu0
      %v2418 = vadd.f32 0.0, %v2417
      %v2419 = vpop.f32.mrb[0].mxu0
      %v2420 = vpop.f32.mrb[0].mxu0
      %v2421 = vpop.f32.mrb[0].mxu0
      %2422 = vdwg.mxu0
      %v2423 = vadd.f32 %v2263, %v2377
      %v2424 = vadd.f32 %v2265, %v2379
      %v2425 = vadd.f32 %v2304, %v2418
      %v2426 = vld [vmem:[%s23] sm:$0xff]
      %2428 = vset.pattern.permute.xlu0 0
      %2429 = vperm.xlu0 %2428, %v2426
      %v2430 = vpop.permute.xlu0 %2429
      %v2432 = vmul.f32 %v2423, %v2430
      %v2433 = vmul.f32 %v2424, %v2430
      %v2434 = vmul.f32 %v2425, %v2430
      %v2435 = vld [vmem:[%s39] sm:$0xff]
      %2437 = vset.pattern.permute.xlu0 0
      %2438 = vperm.xlu0 %2437, %v2435
      %v2439 = vpop.permute.xlu0 %2438
      %v2441 = vadd.f32 %v2432, %v2439
      %v2442 = vadd.f32 %v2433, %v2439
      %v2443 = vadd.f32 %v2434, %v2439
      %v2444 = vmax.f32 %v2441, 0.0
      %v2445 = vmax.f32 %v2442, 0.0
      %v2446 = vmax.f32 %v2443, 0.0
      %2450 = vrot.lane.b32.xlu0 %v2444, 110
      %v2451 = vpop.permute.xlu0 %2450
      %2452 = vrot.lane.b32.xlu0 %v2445, 110
      %v2453 = vpop.permute.xlu0 %2452
      %2454 = vrot.lane.b32.xlu0 %v2446, 110
      %v2455 = vpop.permute.xlu0 %2454
      %vm2456 = vcmask 900096
      %v2457 = vsel %vm2456, %v2451, %v2453
      %v2458 = vsel %vm2456, %v2453, %v2455
      %v2462 = vmax.f32 %v2444, %v2457
      %v2463 = vmax.f32 %v2445, %v2458
      %v2464 = vmax.f32 %v2446, %v2455
      %v2465 = vpack.c.bf16 %v2462, %v2462
      %v2466 = vpack.c.bf16 %v2463, %v2463
      %v2467 = vpack.c.bf16 %v2464, %v2464
      %v2468 = vld [vmem:[%s61] sm:$0xf]
      %v2469 = vld [vmem:[%s61 + $0x4] sm:$0xf]
      %v2470 = vld [vmem:[%s61 + $0x8] sm:$0xf]
      %v2471 = vld [vmem:[%s61 + $0xc] sm:$0xf]
      %v2472 = vld [vmem:[%s61 + $0x10] sm:$0xf]
      %v2473 = vld [vmem:[%s61 + $0x14] sm:$0xf]
      %v2474 = vld [vmem:[%s61 + $0x18] sm:$0xf]
      %v2475 = vld [vmem:[%s61 + $0x1c] sm:$0xf]
      %v2476 = vld [vmem:[%s61 + $0x20] sm:$0xf]
      %v2477 = vld [vmem:[%s61 + $0x24] sm:$0xf]
      %v2478 = vld [vmem:[%s61 + $0x28] sm:$0xf]
      %v2479 = vld [vmem:[%s61 + $0x2c] sm:$0xf]
      %v2480 = vld [vmem:[%s61 + $0x30] sm:$0xf]
      %v2481 = vld [vmem:[%s61 + $0x34] sm:$0xf]
      %v2482 = vld [vmem:[%s61 + $0x38] sm:$0xf]
      %v2483 = vld [vmem:[%s61 + $0x3c] sm:$0xf]
      %v2484 = vld [vmem:[%s61 + $0x40] sm:$0xf]
      %v2485 = vld [vmem:[%s61 + $0x44] sm:$0xf]
      %v2486 = vld [vmem:[%s61 + $0x48] sm:$0xf]
      %v2487 = vld [vmem:[%s61 + $0x4c] sm:$0xf]
      %v2488 = vld [vmem:[%s61 + $0x50] sm:$0xf]
      %v2489 = vld [vmem:[%s61 + $0x54] sm:$0xf]
      %v2490 = vld [vmem:[%s61 + $0x58] sm:$0xf]
      %v2491 = vld [vmem:[%s61 + $0x5c] sm:$0xf]
      %v2492 = vld [vmem:[%s61 + $0x60] sm:$0xf]
      %v2493 = vld [vmem:[%s61 + $0x64] sm:$0xf]
      %v2494 = vld [vmem:[%s61 + $0x68] sm:$0xf]
      %v2495 = vld [vmem:[%s61 + $0x6c] sm:$0xf]
      %v2496 = vld [vmem:[%s61 + $0x70] sm:$0xf]
      %v2497 = vld [vmem:[%s61 + $0x74] sm:$0xf]
      %v2498 = vld [vmem:[%s61 + $0x78] sm:$0xf]
      %v2499 = vld [vmem:[%s61 + $0x7c] sm:$0xf]
      %v2500 = vld [vmem:[%s61 + $0x80] sm:$0xf]
      %v2501 = vld [vmem:[%s61 + $0x84] sm:$0x7]
      %v2536 = vunpack.c.l.b16 %v2468
      %v2537 = vunpack.c.l.b16 %v2469
      %v2538 = vunpack.c.l.b16 %v2470
      %v2539 = vunpack.c.l.b16 %v2471
      %v2540 = vunpack.c.l.b16 %v2472
      %v2541 = vunpack.c.l.b16 %v2473
      %v2542 = vunpack.c.l.b16 %v2474
      %v2543 = vunpack.c.l.b16 %v2475
      %v2544 = vunpack.c.l.b16 %v2476
      %v2545 = vunpack.c.l.b16 %v2477
      %v2546 = vunpack.c.l.b16 %v2478
      %v2547 = vunpack.c.l.b16 %v2479
      %v2548 = vunpack.c.l.b16 %v2480
      %v2549 = vunpack.c.l.b16 %v2481
      %v2550 = vunpack.c.l.b16 %v2482
      %v2551 = vunpack.c.l.b16 %v2483
      %v2552 = vunpack.c.l.b16 %v2484
      %v2553 = vunpack.c.l.b16 %v2485
      %v2554 = vunpack.c.l.b16 %v2486
      %v2555 = vunpack.c.l.b16 %v2487
      %v2556 = vunpack.c.l.b16 %v2488
      %v2557 = vunpack.c.l.b16 %v2489
      %v2558 = vunpack.c.l.b16 %v2490
      %v2559 = vunpack.c.l.b16 %v2491
      %v2560 = vunpack.c.l.b16 %v2492
      %v2561 = vunpack.c.l.b16 %v2493
      %v2562 = vunpack.c.l.b16 %v2494
      %v2563 = vunpack.c.l.b16 %v2495
      %v2564 = vunpack.c.l.b16 %v2496
      %v2565 = vunpack.c.l.b16 %v2497
      %v2566 = vunpack.c.l.b16 %v2498
      %v2567 = vunpack.c.l.b16 %v2499
      %v2568 = vunpack.c.l.b16 %v2500
      %v2569 = vunpack.c.l.b16 %v2501
      %v2570 = vpack.c.b16 %v2537, %v2536
      %v2571 = vpack.c.b16 %v2539, %v2538
      %v2572 = vpack.c.b16 %v2541, %v2540
      %v2573 = vpack.c.b16 %v2543, %v2542
      %v2574 = vpack.c.b16 %v2545, %v2544
      %v2575 = vpack.c.b16 %v2547, %v2546
      %v2576 = vpack.c.b16 %v2549, %v2548
      %v2577 = vpack.c.b16 %v2551, %v2550
      %v2578 = vpack.c.b16 %v2553, %v2552
      %v2579 = vpack.c.b16 %v2555, %v2554
      %v2580 = vpack.c.b16 %v2557, %v2556
      %v2581 = vpack.c.b16 %v2559, %v2558
      %v2582 = vpack.c.b16 %v2561, %v2560
      %v2583 = vpack.c.b16 %v2563, %v2562
      %v2584 = vpack.c.b16 %v2565, %v2564
      %v2585 = vpack.c.b16 %v2567, %v2566
      %v2586 = vpack.c.b16 %v2569, %v2568
      %vm2603 = vcmask 113664
      %v2605 = vsel %vm2603, %v2467, 0
      %vm2607 = vcmask 1046528
      %v2609 = vsel %vm2607, %v2586, 0
      %2611 = vmatprep.subr.bf16.mxu0 0
      %2612 = vmatpush1.bf16.msra.mxu0 %v2570
      %2613 = vmatprep.subr.bf16.mxu0 0
      %2614 = vmatpush1.bf16.msra.mxu0 %v2571
      %2615 = vmatprep.subr.bf16.mxu0 0
      %2616 = vmatpush1.bf16.msra.mxu0 %v2572
      %2617 = vmatprep.subr.bf16.mxu0 0
      %2618 = vmatpush1.bf16.msra.mxu0 %v2573
      %2619 = vmatprep.subr.bf16.mxu0 0
      %2620 = vmatpush1.bf16.msra.mxu0 %v2574
      %2621 = vmatprep.subr.bf16.mxu0 0
      %2622 = vmatpush1.bf16.msra.mxu0 %v2575
      %2623 = vmatprep.subr.bf16.mxu0 0
      %2624 = vmatpush1.bf16.msra.mxu0 %v2576
      %2625 = vmatprep.subr.bf16.mxu0 0
      %2626 = vmatpush1.bf16.msra.mxu0 %v2577
      %2627 = vmatprep.subr.bf16.mxu0 0
      %2628 = vmatpush1.bf16.msra.mxu0 %v2578
      %2629 = vmatprep.subr.bf16.mxu0 0
      %2630 = vmatpush1.bf16.msra.mxu0 %v2579
      %2631 = vmatprep.subr.bf16.mxu0 0
      %2632 = vmatpush1.bf16.msra.mxu0 %v2580
      %2633 = vmatprep.subr.bf16.mxu0 0
      %2634 = vmatpush1.bf16.msra.mxu0 %v2581
      %2635 = vmatprep.subr.bf16.mxu0 0
      %2636 = vmatpush1.bf16.msra.mxu0 %v2582
      %2637 = vmatprep.subr.bf16.mxu0 0
      %2638 = vmatpush1.bf16.msra.mxu0 %v2583
      %2639 = vmatprep.subr.bf16.mxu0 0
      %2640 = vmatpush1.bf16.msra.mxu0 %v2584
      %2641 = vmatprep.subr.bf16.mxu0 0
      %2642 = vmatpush1.bf16.msra.mxu0 %v2585
      %2643 = vmatprep.mubr.bf16.mxu0 %v2466
      %2644 = vmatmul.mubr.bf16.gmra.mrb[0].mxu0 %v2465
      %v2645 = vpop.f32.mrb[0].mxu0
      %v2646 = vadd.f32 0.0, %v2645
      %v2647 = vpop.f32.mrb[0].mxu0
      %v2648 = vpop.f32.mrb[0].mxu0
      %v2649 = vpop.f32.mrb[0].mxu0
      %2650 = vdwg.mxu0
      %2651 = vmatprep.subr.bf16.mxu0 0
      %2652 = vmatpush1.bf16.msra.mxu0 %v2609
      %2653 = vmatprep.subr.bf16.mxu0 0
      %2654 = vmatpush1.bf16.msra.mxu0 0
      %2655 = vmatprep.subr.bf16.mxu0 0
      %2656 = vmatpush1.bf16.msra.mxu0 0
      %2657 = vmatprep.subr.bf16.mxu0 0
      %2658 = vmatpush1.bf16.msra.mxu0 0
      %2659 = vmatprep.subr.bf16.mxu0 0
      %2660 = vmatpush1.bf16.msra.mxu0 0
      %2661 = vmatprep.subr.bf16.mxu0 0
      %2662 = vmatpush1.bf16.msra.mxu0 0
      %2663 = vmatprep.subr.bf16.mxu0 0
      %2664 = vmatpush1.bf16.msra.mxu0 0
      %2665 = vmatprep.subr.bf16.mxu0 0
      %2666 = vmatpush1.bf16.msra.mxu0 0
      %2667 = vmatprep.subr.bf16.mxu0 0
      %2668 = vmatpush1.bf16.msra.mxu0 0
      %2669 = vmatprep.subr.bf16.mxu0 0
      %2670 = vmatpush1.bf16.msra.mxu0 0
      %2671 = vmatprep.subr.bf16.mxu0 0
      %2672 = vmatpush1.bf16.msra.mxu0 0
      %2673 = vmatprep.subr.bf16.mxu0 0
      %2674 = vmatpush1.bf16.msra.mxu0 0
      %2675 = vmatprep.subr.bf16.mxu0 0
      %2676 = vmatpush1.bf16.msra.mxu0 0
      %2677 = vmatprep.subr.bf16.mxu0 0
      %2678 = vmatpush1.bf16.msra.mxu0 0
      %2679 = vmatprep.subr.bf16.mxu0 0
      %2680 = vmatpush1.bf16.msra.mxu0 0
      %2681 = vmatprep.subr.bf16.mxu0 0
      %2682 = vmatpush1.bf16.msra.mxu0 0
      %2683 = vmatprep.mubr.bf16.mxu0 0
      %2684 = vmatmul.mubr.bf16.gmra.mrb[0].mxu0 %v2605
      %v2685 = vpop.f32.mrb[0].mxu0
      %v2686 = vadd.f32 %v2646, %v2685
      %v2687 = vpop.f32.mrb[0].mxu0
      %v2688 = vpop.f32.mrb[0].mxu0
      %v2689 = vpop.f32.mrb[0].mxu0
      %2690 = vdwg.mxu0
      %v2691 = vld [vmem:[%s63] sm:$0xf]
      %v2692 = vld [vmem:[%s63 + $0x4] sm:$0xf]
      %v2693 = vld [vmem:[%s63 + $0x8] sm:$0xf]
      %v2694 = vld [vmem:[%s63 + $0xc] sm:$0xf]
      %v2695 = vld [vmem:[%s63 + $0x10] sm:$0xf]
      %v2696 = vld [vmem:[%s63 + $0x14] sm:$0xf]
      %v2697 = vld [vmem:[%s63 + $0x18] sm:$0xf]
      %v2698 = vld [vmem:[%s63 + $0x1c] sm:$0xf]
      %v2699 = vld [vmem:[%s63 + $0x20] sm:$0xf]
      %v2700 = vld [vmem:[%s63 + $0x24] sm:$0xf]
      %v2701 = vld [vmem:[%s63 + $0x28] sm:$0xf]
      %v2702 = vld [vmem:[%s63 + $0x2c] sm:$0xf]
      %v2703 = vld [vmem:[%s63 + $0x30] sm:$0xf]
      %v2704 = vld [vmem:[%s63 + $0x34] sm:$0xf]
      %v2705 = vld [vmem:[%s63 + $0x38] sm:$0xf]
      %v2706 = vld [vmem:[%s63 + $0x3c] sm:$0xf]
      %v2707 = vld [vmem:[%s63 + $0x40] sm:$0xf]
      %v2708 = vld [vmem:[%s63 + $0x44] sm:$0xf]
      %v2709 = vld [vmem:[%s63 + $0x48] sm:$0xf]
      %v2710 = vld [vmem:[%s63 + $0x4c] sm:$0xf]
      %v2711 = vld [vmem:[%s63 + $0x50] sm:$0xf]
      %v2712 = vld [vmem:[%s63 + $0x54] sm:$0xf]
      %v2713 = vld [vmem:[%s63 + $0x58] sm:$0xf]
      %v2714 = vld [vmem:[%s63 + $0x5c] sm:$0xf]
      %v2715 = vld [vmem:[%s63 + $0x60] sm:$0xf]
      %v2716 = vld [vmem:[%s63 + $0x64] sm:$0xf]
      %v2717 = vld [vmem:[%s63 + $0x68] sm:$0xf]
      %v2718 = vld [vmem:[%s63 + $0x6c] sm:$0xf]
      %v2719 = vld [vmem:[%s63 + $0x70] sm:$0xf]
      %v2720 = vld [vmem:[%s63 + $0x74] sm:$0xf]
      %v2721 = vld [vmem:[%s63 + $0x78] sm:$0xf]
      %v2722 = vld [vmem:[%s63 + $0x7c] sm:$0xf]
      %v2723 = vld [vmem:[%s63 + $0x80] sm:$0xf]
      %v2724 = vld [vmem:[%s63 + $0x84] sm:$0x7]
      %v2759 = vunpack.c.l.b16 %v2691
      %v2760 = vunpack.c.l.b16 %v2692
      %v2761 = vunpack.c.l.b16 %v2693
      %v2762 = vunpack.c.l.b16 %v2694
      %v2763 = vunpack.c.l.b16 %v2695
      %v2764 = vunpack.c.l.b16 %v2696
      %v2765 = vunpack.c.l.b16 %v2697
      %v2766 = vunpack.c.l.b16 %v2698
      %v2767 = vunpack.c.l.b16 %v2699
      %v2768 = vunpack.c.l.b16 %v2700
      %v2769 = vunpack.c.l.b16 %v2701
      %v2770 = vunpack.c.l.b16 %v2702
      %v2771 = vunpack.c.l.b16 %v2703
      %v2772 = vunpack.c.l.b16 %v2704
      %v2773 = vunpack.c.l.b16 %v2705
      %v2774 = vunpack.c.l.b16 %v2706
      %v2775 = vunpack.c.l.b16 %v2707
      %v2776 = vunpack.c.l.b16 %v2708
      %v2777 = vunpack.c.l.b16 %v2709
      %v2778 = vunpack.c.l.b16 %v2710
      %v2779 = vunpack.c.l.b16 %v2711
      %v2780 = vunpack.c.l.b16 %v2712
      %v2781 = vunpack.c.l.b16 %v2713
      %v2782 = vunpack.c.l.b16 %v2714
      %v2783 = vunpack.c.l.b16 %v2715
      %v2784 = vunpack.c.l.b16 %v2716
      %v2785 = vunpack.c.l.b16 %v2717
      %v2786 = vunpack.c.l.b16 %v2718
      %v2787 = vunpack.c.l.b16 %v2719
      %v2788 = vunpack.c.l.b16 %v2720
      %v2789 = vunpack.c.l.b16 %v2721
      %v2790 = vunpack.c.l.b16 %v2722
      %v2791 = vunpack.c.l.b16 %v2723
      %v2792 = vunpack.c.l.b16 %v2724
      %v2793 = vpack.c.b16 %v2760, %v2759
      %v2794 = vpack.c.b16 %v2762, %v2761
      %v2795 = vpack.c.b16 %v2764, %v2763
      %v2796 = vpack.c.b16 %v2766, %v2765
      %v2797 = vpack.c.b16 %v2768, %v2767
      %v2798 = vpack.c.b16 %v2770, %v2769
      %v2799 = vpack.c.b16 %v2772, %v2771
      %v2800 = vpack.c.b16 %v2774, %v2773
      %v2801 = vpack.c.b16 %v2776, %v2775
      %v2802 = vpack.c.b16 %v2778, %v2777
      %v2803 = vpack.c.b16 %v2780, %v2779
      %v2804 = vpack.c.b16 %v2782, %v2781
      %v2805 = vpack.c.b16 %v2784, %v2783
      %v2806 = vpack.c.b16 %v2786, %v2785
      %v2807 = vpack.c.b16 %v2788, %v2787
      %v2808 = vpack.c.b16 %v2790, %v2789
      %v2809 = vpack.c.b16 %v2792, %v2791
      %v2827 = vsel %vm2607, %v2809, 0
      %2829 = vmatprep.subr.bf16.mxu0 0
      %2830 = vmatpush1.bf16.msra.mxu0 %v2793
      %2831 = vmatprep.subr.bf16.mxu0 0
      %2832 = vmatpush1.bf16.msra.mxu0 %v2794
      %2833 = vmatprep.subr.bf16.mxu0 0
      %2834 = vmatpush1.bf16.msra.mxu0 %v2795
      %2835 = vmatprep.subr.bf16.mxu0 0
      %2836 = vmatpush1.bf16.msra.mxu0 %v2796
      %2837 = vmatprep.subr.bf16.mxu0 0
      %2838 = vmatpush1.bf16.msra.mxu0 %v2797
      %2839 = vmatprep.subr.bf16.mxu0 0
      %2840 = vmatpush1.bf16.msra.mxu0 %v2798
      %2841 = vmatprep.subr.bf16.mxu0 0
      %2842 = vmatpush1.bf16.msra.mxu0 %v2799
      %2843 = vmatprep.subr.bf16.mxu0 0
      %2844 = vmatpush1.bf16.msra.mxu0 %v2800
      %2845 = vmatprep.subr.bf16.mxu0 0
      %2846 = vmatpush1.bf16.msra.mxu0 %v2801
      %2847 = vmatprep.subr.bf16.mxu0 0
      %2848 = vmatpush1.bf16.msra.mxu0 %v2802
      %2849 = vmatprep.subr.bf16.mxu0 0
      %2850 = vmatpush1.bf16.msra.mxu0 %v2803
      %2851 = vmatprep.subr.bf16.mxu0 0
      %2852 = vmatpush1.bf16.msra.mxu0 %v2804
      %2853 = vmatprep.subr.bf16.mxu0 0
      %2854 = vmatpush1.bf16.msra.mxu0 %v2805
      %2855 = vmatprep.subr.bf16.mxu0 0
      %2856 = vmatpush1.bf16.msra.mxu0 %v2806
      %2857 = vmatprep.subr.bf16.mxu0 0
      %2858 = vmatpush1.bf16.msra.mxu0 %v2807
      %2859 = vmatprep.subr.bf16.mxu0 0
      %2860 = vmatpush1.bf16.msra.mxu0 %v2808
      %2861 = vmatprep.mubr.bf16.mxu0 %v2466
      %2862 = vmatmul.mubr.bf16.gmra.mrb[0].mxu0 %v2465
      %v2863 = vpop.f32.mrb[0].mxu0
      %v2864 = vadd.f32 0.0, %v2863
      %v2865 = vpop.f32.mrb[0].mxu0
      %v2866 = vpop.f32.mrb[0].mxu0
      %v2867 = vpop.f32.mrb[0].mxu0
      %2868 = vdwg.mxu0
      %2869 = vmatprep.subr.bf16.mxu0 0
      %2870 = vmatpush1.bf16.msra.mxu0 %v2827
      %2871 = vmatprep.subr.bf16.mxu0 0
      %2872 = vmatpush1.bf16.msra.mxu0 0
      %2873 = vmatprep.subr.bf16.mxu0 0
      %2874 = vmatpush1.bf16.msra.mxu0 0
      %2875 = vmatprep.subr.bf16.mxu0 0
      %2876 = vmatpush1.bf16.msra.mxu0 0
      %2877 = vmatprep.subr.bf16.mxu0 0
      %2878 = vmatpush1.bf16.msra.mxu0 0
      %2879 = vmatprep.subr.bf16.mxu0 0
      %2880 = vmatpush1.bf16.msra.mxu0 0
      %2881 = vmatprep.subr.bf16.mxu0 0
      %2882 = vmatpush1.bf16.msra.mxu0 0
      %2883 = vmatprep.subr.bf16.mxu0 0
      %2884 = vmatpush1.bf16.msra.mxu0 0
      %2885 = vmatprep.subr.bf16.mxu0 0
      %2886 = vmatpush1.bf16.msra.mxu0 0
      %2887 = vmatprep.subr.bf16.mxu0 0
      %2888 = vmatpush1.bf16.msra.mxu0 0
      %2889 = vmatprep.subr.bf16.mxu0 0
      %2890 = vmatpush1.bf16.msra.mxu0 0
      %2891 = vmatprep.subr.bf16.mxu0 0
      %2892 = vmatpush1.bf16.msra.mxu0 0
      %2893 = vmatprep.subr.bf16.mxu0 0
      %2894 = vmatpush1.bf16.msra.mxu0 0
      %2895 = vmatprep.subr.bf16.mxu0 0
      %2896 = vmatpush1.bf16.msra.mxu0 0
      %2897 = vmatprep.subr.bf16.mxu0 0
      %2898 = vmatpush1.bf16.msra.mxu0 0
      %2899 = vmatprep.subr.bf16.mxu0 0
      %2900 = vmatpush1.bf16.msra.mxu0 0
      %2901 = vmatprep.mubr.bf16.mxu0 0
      %2902 = vmatmul.mubr.bf16.gmra.mrb[0].mxu0 %v2605
      %v2903 = vpop.f32.mrb[0].mxu0
      %v2904 = vadd.f32 %v2864, %v2903
      %v2905 = vpop.f32.mrb[0].mxu0
      %v2906 = vpop.f32.mrb[0].mxu0
      %v2907 = vpop.f32.mrb[0].mxu0
      %2908 = vdwg.mxu0
      %v2909 = vmax.f32 %v2686, %v2904
      %v2910 = vpack.c.bf16 %v2909, %v2909
      %vm2911 = vcmask 84992
      %2912 = vst.msk [vmem:[#allocation4] sm:$0xf] %vm2911, 0
      %2913 = vst.msk [vmem:[#allocation4 + $0x4] sm:$0xf] %vm2911, 0
      %2914 = vst.msk [vmem:[#allocation4 + $0x8] sm:$0xf] %vm2911, 0
      %vm2915 = vcmask 896712
      %2916 = vst.msk [vmem:[#allocation4] sm:$0xf] %vm2915, 0
      %2917 = vst.msk [vmem:[#allocation4 + $0x4] sm:$0xf] %vm2915, 0
      %2918 = vst.msk [vmem:[#allocation4 + $0x8] sm:$0xf] %vm2915, 0
      %v2920 = vunpack.c.l.b16 %v2910
      %v2921 = vpack.c.b16 %v2920, %v2920
      %2922 = vrot.lane.b32.xlu0 %v2921, 11
      %v2923 = vpop.permute.xlu0 %2922
      %vm2925 = vcmask 740440
      %2926 = vst.msk [vmem:[#allocation4] sm:$0xf] %vm2925, %v2923
      %2927 = vrot.lane.b32.xlu0 %v2921, 10
      %v2928 = vpop.permute.xlu0 %2927
      %vm2930 = vcmask 732240
      %2931 = vst.msk [vmem:[#allocation4 + $0x4] sm:$0xf] %vm2930, %v2928
      %2932 = vrot.lane.b32.xlu0 %v2921, 9
      %v2933 = vpop.permute.xlu0 %2932
      %vm2935 = vcmask 724040
      %2936 = vst.msk [vmem:[#allocation4 + $0x8] sm:$0xf] %vm2935, %v2933
      %v2937 = vld [vmem:[%s55] sm:$0x1]
      %v2938 = vld [vmem:[%s9] sm:$0xf]
      %v2939 = vld [vmem:[%s9 + $0x4] sm:$0xf]
      %v2940 = vld [vmem:[#allocation4] sm:$0xf]
      %v2941 = vld [vmem:[#allocation4 + $0x4] sm:$0xf]
      %v2942 = vld [vmem:[#allocation4 + $0x8] sm:$0xf]
      %s2943 = scalar_lea.vmem %s9, 8
      %v2944 = vld [vmem:[%s2943] sm:$0xf]
      %v2945 = vld [vmem:[%s2943 + $0x4] sm:$0xf]
      %v2948 = vunpack.c.l.b16 %v2944
      %v2949 = vunpack.c.l.b16 %v2945
      %v2950 = vpack.c.b16 %v2949, %v2948
      %v2954 = vunpack.c.l.b16 %v2940
      %v2955 = vunpack.c.l.b16 %v2941
      %v2956 = vunpack.c.l.b16 %v2942
      %v2957 = vpack.c.b16 %v2955, %v2954
      %v2958 = vpack.c.b16 %v2956, %v2956
      %2959 = vrot.lane.b32.xlu0 %v2957, 118
      %v2960 = vpop.permute.xlu0 %2959
      %2961 = vrot.lane.b32.xlu0 %v2958, 118
      %v2962 = vpop.permute.xlu0 %2961
      %v2965 = vsel %vm2119, %v2950, 0
      %v2968 = vsel %vm1676, %v2962, 0
      %2970 = vmatprep.subr.bf16.mxu0 0
      %2971 = vmatpush1.bf16.msra.mxu0 %v2960
      %2972 = vmatprep.subr.bf16.mxu0 0
      %2973 = vmatpush1.bf16.msra.mxu0 %v2968
      %2974 = vmatprep.subr.bf16.mxu0 0
      %2975 = vmatpush1.bf16.msra.mxu0 0
      %2976 = vmatprep.subr.bf16.mxu0 0
      %2977 = vmatpush1.bf16.msra.mxu0 0
      %2978 = vmatprep.subr.bf16.mxu0 0
      %2979 = vmatpush1.bf16.msra.mxu0 0
      %2980 = vmatprep.subr.bf16.mxu0 0
      %2981 = vmatpush1.bf16.msra.mxu0 0
      %2982 = vmatprep.subr.bf16.mxu0 0
      %2983 = vmatpush1.bf16.msra.mxu0 0
      %2984 = vmatprep.subr.bf16.mxu0 0
      %2985 = vmatpush1.bf16.msra.mxu0 0
      %2986 = vmatprep.subr.bf16.mxu0 0
      %2987 = vmatpush1.bf16.msra.mxu0 0
      %2988 = vmatprep.subr.bf16.mxu0 0
      %2989 = vmatpush1.bf16.msra.mxu0 0
      %2990 = vmatprep.subr.bf16.mxu0 0
      %2991 = vmatpush1.bf16.msra.mxu0 0
      %2992 = vmatprep.subr.bf16.mxu0 0
      %2993 = vmatpush1.bf16.msra.mxu0 0
      %2994 = vmatprep.subr.bf16.mxu0 0
      %2995 = vmatpush1.bf16.msra.mxu0 0
      %2996 = vmatprep.subr.bf16.mxu0 0
      %2997 = vmatpush1.bf16.msra.mxu0 0
      %2998 = vmatprep.subr.bf16.mxu0 0
      %2999 = vmatpush1.bf16.msra.mxu0 0
      %3000 = vmatprep.subr.bf16.mxu0 0
      %3001 = vmatpush1.bf16.msra.mxu0 0
      %3002 = vmatprep.mubr.bf16.mxu0 0
      %3003 = vmatmul.mubr.bf16.gmra.mrb[0].mxu0 %v2965
      %v3004 = vpop.f32.mrb[0].mxu0
      %v3005 = vadd.f32 0.0, %v3004
      %v3006 = vpop.f32.mrb[0].mxu0
      %v3007 = vpop.f32.mrb[0].mxu0
      %v3008 = vadd.f32 0.0, %v3007
      %v3009 = vpop.f32.mrb[0].mxu0
      %3010 = vdwg.mxu0
      %v3013 = vunpack.c.l.b16 %v2938
      %v3014 = vunpack.c.l.b16 %v2939
      %v3015 = vpack.c.b16 %v3014, %v3013
      %v3018 = vsel %vm2119, %v3015, 0
      %v3021 = vsel %vm1676, %v2958, 0
      %3023 = vmatprep.subr.bf16.mxu0 0
      %3024 = vmatpush1.bf16.msra.mxu0 %v2957
      %3025 = vmatprep.subr.bf16.mxu0 0
      %3026 = vmatpush1.bf16.msra.mxu0 %v3021
      %3027 = vmatprep.subr.bf16.mxu0 0
      %3028 = vmatpush1.bf16.msra.mxu0 0
      %3029 = vmatprep.subr.bf16.mxu0 0
      %3030 = vmatpush1.bf16.msra.mxu0 0
      %3031 = vmatprep.subr.bf16.mxu0 0
      %3032 = vmatpush1.bf16.msra.mxu0 0
      %3033 = vmatprep.subr.bf16.mxu0 0
      %3034 = vmatpush1.bf16.msra.mxu0 0
      %3035 = vmatprep.subr.bf16.mxu0 0
      %3036 = vmatpush1.bf16.msra.mxu0 0
      %3037 = vmatprep.subr.bf16.mxu0 0
      %3038 = vmatpush1.bf16.msra.mxu0 0
      %3039 = vmatprep.subr.bf16.mxu0 0
      %3040 = vmatpush1.bf16.msra.mxu0 0
      %3041 = vmatprep.subr.bf16.mxu0 0
      %3042 = vmatpush1.bf16.msra.mxu0 0
      %3043 = vmatprep.subr.bf16.mxu0 0
      %3044 = vmatpush1.bf16.msra.mxu0 0
      %3045 = vmatprep.subr.bf16.mxu0 0
      %3046 = vmatpush1.bf16.msra.mxu0 0
      %3047 = vmatprep.subr.bf16.mxu0 0
      %3048 = vmatpush1.bf16.msra.mxu0 0
      %3049 = vmatprep.subr.bf16.mxu0 0
      %3050 = vmatpush1.bf16.msra.mxu0 0
      %3051 = vmatprep.subr.bf16.mxu0 0
      %3052 = vmatpush1.bf16.msra.mxu0 0
      %3053 = vmatprep.subr.bf16.mxu0 0
      %3054 = vmatpush1.bf16.msra.mxu0 0
      %3055 = vmatprep.mubr.bf16.mxu0 0
      %3056 = vmatmul.mubr.bf16.gmra.mrb[0].mxu0 %v3018
      %v3057 = vpop.f32.mrb[0].mxu0
      %v3058 = vadd.f32 %v3005, %v3057
      %v3059 = vpop.f32.mrb[0].mxu0
      %v3060 = vpop.f32.mrb[0].mxu0
      %v3061 = vadd.f32 %v3008, %v3060
      %v3062 = vpop.f32.mrb[0].mxu0
      %3063 = vdwg.mxu0
      %s3064 = scalar_lea.vmem %s9, 16
      %v3065 = vld [vmem:[%s3064] sm:$0xf]
      %v3066 = vld [vmem:[%s3064 + $0x4] sm:$0xf]
      %v3069 = vunpack.c.l.b16 %v3065
      %v3070 = vunpack.c.l.b16 %v3066
      %v3071 = vpack.c.b16 %v3070, %v3069
      %3072 = vrot.lane.b32.xlu0 %v2957, 108
      %v3073 = vpop.permute.xlu0 %3072
      %3074 = vrot.lane.b32.xlu0 %v2958, 108
      %v3075 = vpop.permute.xlu0 %3074
      %v3078 = vsel %vm2119, %v3071, 0
      %v3081 = vsel %vm1676, %v3075, 0
      %3083 = vmatprep.subr.bf16.mxu0 0
      %3084 = vmatpush1.bf16.msra.mxu0 %v3073
      %3085 = vmatprep.subr.bf16.mxu0 0
      %3086 = vmatpush1.bf16.msra.mxu0 %v3081
      %3087 = vmatprep.subr.bf16.mxu0 0
      %3088 = vmatpush1.bf16.msra.mxu0 0
      %3089 = vmatprep.subr.bf16.mxu0 0
      %3090 = vmatpush1.bf16.msra.mxu0 0
      %3091 = vmatprep.subr.bf16.mxu0 0
      %3092 = vmatpush1.bf16.msra.mxu0 0
      %3093 = vmatprep.subr.bf16.mxu0 0
      %3094 = vmatpush1.bf16.msra.mxu0 0
      %3095 = vmatprep.subr.bf16.mxu0 0
      %3096 = vmatpush1.bf16.msra.mxu0 0
      %3097 = vmatprep.subr.bf16.mxu0 0
      %3098 = vmatpush1.bf16.msra.mxu0 0
      %3099 = vmatprep.subr.bf16.mxu0 0
      %3100 = vmatpush1.bf16.msra.mxu0 0
      %3101 = vmatprep.subr.bf16.mxu0 0
      %3102 = vmatpush1.bf16.msra.mxu0 0
      %3103 = vmatprep.subr.bf16.mxu0 0
      %3104 = vmatpush1.bf16.msra.mxu0 0
      %3105 = vmatprep.subr.bf16.mxu0 0
      %3106 = vmatpush1.bf16.msra.mxu0 0
      %3107 = vmatprep.subr.bf16.mxu0 0
      %3108 = vmatpush1.bf16.msra.mxu0 0
      %3109 = vmatprep.subr.bf16.mxu0 0
      %3110 = vmatpush1.bf16.msra.mxu0 0
      %3111 = vmatprep.subr.bf16.mxu0 0
      %3112 = vmatpush1.bf16.msra.mxu0 0
      %3113 = vmatprep.subr.bf16.mxu0 0
      %3114 = vmatpush1.bf16.msra.mxu0 0
      %3115 = vmatprep.mubr.bf16.mxu0 0
      %3116 = vmatmul.mubr.bf16.gmra.mrb[0].mxu0 %v3078
      %v3117 = vpop.f32.mrb[0].mxu0
      %v3118 = vadd.f32 0.0, %v3117
      %v3119 = vpop.f32.mrb[0].mxu0
      %v3120 = vpop.f32.mrb[0].mxu0
      %v3121 = vadd.f32 0.0, %v3120
      %v3122 = vpop.f32.mrb[0].mxu0
      %3123 = vdwg.mxu0
      %v3124 = vadd.f32 %v3058, %v3118
      %v3125 = vadd.f32 %v3061, %v3121
      %v3126 = vld [vmem:[%s25] sm:$0xff]
      %v3127 = vld [vmem:[%s25 + $0x8] sm:$0xff]
      %3129 = vset.pattern.permute.xlu0 0
      %3130 = vperm.xlu0 %3129, %v3126
      %v3131 = vpop.permute.xlu0 %3130
      %3134 = vset.pattern.permute.xlu0 0
      %3135 = vperm.xlu0 %3134, %v3127
      %v3136 = vpop.permute.xlu0 %3135
      %v3138 = vmul.f32 %v3124, %v3131
      %v3139 = vmul.f32 %v3125, %v3136
      %v3140 = vld [vmem:[%s41] sm:$0xff]
      %v3141 = vld [vmem:[%s41 + $0x8] sm:$0xff]
      %3143 = vset.pattern.permute.xlu0 0
      %3144 = vperm.xlu0 %3143, %v3140
      %v3145 = vpop.permute.xlu0 %3144
      %3148 = vset.pattern.permute.xlu0 0
      %3149 = vperm.xlu0 %3148, %v3141
      %v3150 = vpop.permute.xlu0 %3149
      %v3152 = vadd.f32 %v3138, %v3145
      %v3153 = vadd.f32 %v3139, %v3150
      %v3154 = vmax.f32 %v3152, 0.0
      %v3155 = vmax.f32 %v3153, 0.0
      %v3157 = vlaneseq
      %v3158 = vshrl.u32 %v3157, 7
      %v3159 = vsub.s32 0, %v3158
      %v3160 = vrot.slane %v2937, %v3159
      %v3162 = vmul.f32 %v3154, %v3160
      %v3163 = vmul.f32 %v3155, %v3160
      %v3164 = vpack.c.bf16 %v3163, %v3162
      %vm3165 = vcmask 89088
      %3166 = vst.msk [vmem:[#allocation5] sm:$0xff] %vm3165, 0
      %3167 = vst.msk [vmem:[#allocation5 + $0x8] sm:$0xff] %vm3165, 0
      %3168 = vst.msk [vmem:[#allocation5 + $0x10] sm:$0xff] %vm3165, 0
      %vm3169 = vcmask 900808
      %3170 = vst.msk [vmem:[#allocation5] sm:$0xff] %vm3169, 0
      %3171 = vst.msk [vmem:[#allocation5 + $0x8] sm:$0xff] %vm3169, 0
      %3172 = vst.msk [vmem:[#allocation5 + $0x10] sm:$0xff] %vm3169, 0
      %3174 = vrot.lane.b32.xlu0 %v3164, 11
      %v3175 = vpop.permute.xlu0 %3174
      %vm3177 = vcmask 744536
      %3178 = vst.msk [vmem:[#allocation5] sm:$0xff] %vm3177, %v3175
      %3179 = vrot.lane.b32.xlu0 %v3164, 10
      %v3180 = vpop.permute.xlu0 %3179
      %vm3182 = vcmask 736336
      %3183 = vst.msk [vmem:[#allocation5 + $0x8] sm:$0xff] %vm3182, %v3180
      %3184 = vrot.lane.b32.xlu0 %v3164, 9
      %v3185 = vpop.permute.xlu0 %3184
      %vm3187 = vcmask 728136
      %3188 = vst.msk [vmem:[#allocation5 + $0x10] sm:$0xff] %vm3187, %v3185
      %v3189 = vld [vmem:[%s11] sm:$0xf]
      %v3190 = vld [vmem:[%s11 + $0x4] sm:$0xf]
      %v3191 = vld [vmem:[#allocation5] sm:$0xff]
      %v3192 = vld [vmem:[#allocation5 + $0x8] sm:$0xff]
      %v3193 = vld [vmem:[#allocation5 + $0x10] sm:$0xff]
      %s3194 = scalar_lea.vmem %s11, 8
      %v3195 = vld [vmem:[%s3194] sm:$0xf]
      %v3196 = vld [vmem:[%s3194 + $0x4] sm:$0xf]
      %v3199 = vunpack.c.l.b16 %v3195
      %v3200 = vunpack.c.l.b16 %v3196
      %v3201 = vpack.c.b16 %v3200, %v3199
      %3205 = vrot.lane.b32.xlu0 %v3191, 118
      %v3206 = vpop.permute.xlu0 %3205
      %3207 = vrot.lane.b32.xlu0 %v3192, 118
      %v3208 = vpop.permute.xlu0 %3207
      %3209 = vrot.lane.b32.xlu0 %v3193, 118
      %v3210 = vpop.permute.xlu0 %3209
      %vm3214 = vcmask 392192
      %v3216 = vsel %vm3214, %v3201, 0
      %3218 = vmatprep.subr.bf16.mxu0 0
      %3219 = vmatpush1.bf16.msra.mxu0 %v3206
      %3220 = vmatprep.subr.bf16.mxu0 0
      %3221 = vmatpush1.bf16.msra.mxu0 %v3208
      %3222 = vmatprep.subr.bf16.mxu0 0
      %3223 = vmatpush1.bf16.msra.mxu0 %v3210
      %3224 = vmatprep.subr.bf16.mxu0 0
      %3225 = vmatpush1.bf16.msra.mxu0 0
      %3226 = vmatprep.subr.bf16.mxu0 0
      %3227 = vmatpush1.bf16.msra.mxu0 0
      %3228 = vmatprep.subr.bf16.mxu0 0
      %3229 = vmatpush1.bf16.msra.mxu0 0
      %3230 = vmatprep.subr.bf16.mxu0 0
      %3231 = vmatpush1.bf16.msra.mxu0 0
      %3232 = vmatprep.subr.bf16.mxu0 0
      %3233 = vmatpush1.bf16.msra.mxu0 0
      %3234 = vmatprep.subr.bf16.mxu0 0
      %3235 = vmatpush1.bf16.msra.mxu0 0
      %3236 = vmatprep.subr.bf16.mxu0 0
      %3237 = vmatpush1.bf16.msra.mxu0 0
      %3238 = vmatprep.subr.bf16.mxu0 0
      %3239 = vmatpush1.bf16.msra.mxu0 0
      %3240 = vmatprep.subr.bf16.mxu0 0
      %3241 = vmatpush1.bf16.msra.mxu0 0
      %3242 = vmatprep.subr.bf16.mxu0 0
      %3243 = vmatpush1.bf16.msra.mxu0 0
      %3244 = vmatprep.subr.bf16.mxu0 0
      %3245 = vmatpush1.bf16.msra.mxu0 0
      %3246 = vmatprep.subr.bf16.mxu0 0
      %3247 = vmatpush1.bf16.msra.mxu0 0
      %3248 = vmatprep.subr.bf16.mxu0 0
      %3249 = vmatpush1.bf16.msra.mxu0 0
      %3250 = vmatprep.mubr.bf16.mxu0 0
      %3251 = vmatmul.mubr.bf16.gmra.mrb[0].mxu0 %v3216
      %v3252 = vpop.f32.mrb[0].mxu0
      %v3253 = vadd.f32 0.0, %v3252
      %v3254 = vpop.f32.mrb[0].mxu0
      %v3255 = vpop.f32.mrb[0].mxu0
      %v3256 = vadd.f32 0.0, %v3255
      %v3257 = vpop.f32.mrb[0].mxu0
      %3258 = vdwg.mxu0
      %v3261 = vunpack.c.l.b16 %v3189
      %v3262 = vunpack.c.l.b16 %v3190
      %v3263 = vpack.c.b16 %v3262, %v3261
      %v3265 = vsel %vm3214, %v3263, 0
      %3267 = vmatprep.subr.bf16.mxu0 0
      %3268 = vmatpush1.bf16.msra.mxu0 %v3191
      %3269 = vmatprep.subr.bf16.mxu0 0
      %3270 = vmatpush1.bf16.msra.mxu0 %v3192
      %3271 = vmatprep.subr.bf16.mxu0 0
      %3272 = vmatpush1.bf16.msra.mxu0 %v3193
      %3273 = vmatprep.subr.bf16.mxu0 0
      %3274 = vmatpush1.bf16.msra.mxu0 0
      %3275 = vmatprep.subr.bf16.mxu0 0
      %3276 = vmatpush1.bf16.msra.mxu0 0
      %3277 = vmatprep.subr.bf16.mxu0 0
      %3278 = vmatpush1.bf16.msra.mxu0 0
      %3279 = vmatprep.subr.bf16.mxu0 0
      %3280 = vmatpush1.bf16.msra.mxu0 0
      %3281 = vmatprep.subr.bf16.mxu0 0
      %3282 = vmatpush1.bf16.msra.mxu0 0
      %3283 = vmatprep.subr.bf16.mxu0 0
      %3284 = vmatpush1.bf16.msra.mxu0 0
      %3285 = vmatprep.subr.bf16.mxu0 0
      %3286 = vmatpush1.bf16.msra.mxu0 0
      %3287 = vmatprep.subr.bf16.mxu0 0
      %3288 = vmatpush1.bf16.msra.mxu0 0
      %3289 = vmatprep.subr.bf16.mxu0 0
      %3290 = vmatpush1.bf16.msra.mxu0 0
      %3291 = vmatprep.subr.bf16.mxu0 0
      %3292 = vmatpush1.bf16.msra.mxu0 0
      %3293 = vmatprep.subr.bf16.mxu0 0
      %3294 = vmatpush1.bf16.msra.mxu0 0
      %3295 = vmatprep.subr.bf16.mxu0 0
      %3296 = vmatpush1.bf16.msra.mxu0 0
      %3297 = vmatprep.subr.bf16.mxu0 0
      %3298 = vmatpush1.bf16.msra.mxu0 0
      %3299 = vmatprep.mubr.bf16.mxu0 0
      %3300 = vmatmul.mubr.bf16.gmra.mrb[0].mxu0 %v3265
      %v3301 = vpop.f32.mrb[0].mxu0
      %v3302 = vadd.f32 %v3253, %v3301
      %v3303 = vpop.f32.mrb[0].mxu0
      %v3304 = vpop.f32.mrb[0].mxu0
      %v3305 = vadd.f32 %v3256, %v3304
      %v3306 = vpop.f32.mrb[0].mxu0
      %3307 = vdwg.mxu0
      %s3308 = scalar_lea.vmem %s11, 16
      %v3309 = vld [vmem:[%s3308] sm:$0xf]
      %v3310 = vld [vmem:[%s3308 + $0x4] sm:$0xf]
      %v3313 = vunpack.c.l.b16 %v3309
      %v3314 = vunpack.c.l.b16 %v3310
      %v3315 = vpack.c.b16 %v3314, %v3313
      %3316 = vrot.lane.b32.xlu0 %v3191, 108
      %v3317 = vpop.permute.xlu0 %3316
      %3318 = vrot.lane.b32.xlu0 %v3192, 108
      %v3319 = vpop.permute.xlu0 %3318
      %3320 = vrot.lane.b32.xlu0 %v3193, 108
      %v3321 = vpop.permute.xlu0 %3320
      %v3326 = vsel %vm3214, %v3315, 0
      %3328 = vmatprep.subr.bf16.mxu0 0
      %3329 = vmatpush1.bf16.msra.mxu0 %v3317
      %3330 = vmatprep.subr.bf16.mxu0 0
      %3331 = vmatpush1.bf16.msra.mxu0 %v3319
      %3332 = vmatprep.subr.bf16.mxu0 0
      %3333 = vmatpush1.bf16.msra.mxu0 %v3321
      %3334 = vmatprep.subr.bf16.mxu0 0
      %3335 = vmatpush1.bf16.msra.mxu0 0
      %3336 = vmatprep.subr.bf16.mxu0 0
      %3337 = vmatpush1.bf16.msra.mxu0 0
      %3338 = vmatprep.subr.bf16.mxu0 0
      %3339 = vmatpush1.bf16.msra.mxu0 0
      %3340 = vmatprep.subr.bf16.mxu0 0
      %3341 = vmatpush1.bf16.msra.mxu0 0
      %3342 = vmatprep.subr.bf16.mxu0 0
      %3343 = vmatpush1.bf16.msra.mxu0 0
      %3344 = vmatprep.subr.bf16.mxu0 0
      %3345 = vmatpush1.bf16.msra.mxu0 0
      %3346 = vmatprep.subr.bf16.mxu0 0
      %3347 = vmatpush1.bf16.msra.mxu0 0
      %3348 = vmatprep.subr.bf16.mxu0 0
      %3349 = vmatpush1.bf16.msra.mxu0 0
      %3350 = vmatprep.subr.bf16.mxu0 0
      %3351 = vmatpush1.bf16.msra.mxu0 0
      %3352 = vmatprep.subr.bf16.mxu0 0
      %3353 = vmatpush1.bf16.msra.mxu0 0
      %3354 = vmatprep.subr.bf16.mxu0 0
      %3355 = vmatpush1.bf16.msra.mxu0 0
      %3356 = vmatprep.subr.bf16.mxu0 0
      %3357 = vmatpush1.bf16.msra.mxu0 0
      %3358 = vmatprep.subr.bf16.mxu0 0
      %3359 = vmatpush1.bf16.msra.mxu0 0
      %3360 = vmatprep.mubr.bf16.mxu0 0
      %3361 = vmatmul.mubr.bf16.gmra.mrb[0].mxu0 %v3326
      %v3362 = vpop.f32.mrb[0].mxu0
      %v3363 = vadd.f32 0.0, %v3362
      %v3364 = vpop.f32.mrb[0].mxu0
      %v3365 = vpop.f32.mrb[0].mxu0
      %v3366 = vadd.f32 0.0, %v3365
      %v3367 = vpop.f32.mrb[0].mxu0
      %3368 = vdwg.mxu0
      %v3369 = vadd.f32 %v3302, %v3363
      %v3370 = vadd.f32 %v3305, %v3366
      %v3371 = vld [vmem:[%s27] sm:$0xff]
      %v3372 = vld [vmem:[%s27 + $0x8] sm:$0xff]
      %3374 = vset.pattern.permute.xlu0 0
      %3375 = vperm.xlu0 %3374, %v3371
      %v3376 = vpop.permute.xlu0 %3375
      %3379 = vset.pattern.permute.xlu0 0
      %3380 = vperm.xlu0 %3379, %v3372
      %v3381 = vpop.permute.xlu0 %3380
      %v3383 = vmul.f32 %v3369, %v3376
      %v3384 = vmul.f32 %v3370, %v3381
      %v3385 = vld [vmem:[%s43] sm:$0xff]
      %v3386 = vld [vmem:[%s43 + $0x8] sm:$0xff]
      %3388 = vset.pattern.permute.xlu0 0
      %3389 = vperm.xlu0 %3388, %v3385
      %v3390 = vpop.permute.xlu0 %3389
      %3393 = vset.pattern.permute.xlu0 0
      %3394 = vperm.xlu0 %3393, %v3386
      %v3395 = vpop.permute.xlu0 %3394
      %v3397 = vadd.f32 %v3383, %v3390
      %v3398 = vadd.f32 %v3384, %v3395
      %v3399 = vmax.f32 %v3397, 0.0
      %v3400 = vmax.f32 %v3398, 0.0
      %3403 = vrot.lane.b32.xlu0 %v3399, 118
      %v3404 = vpop.permute.xlu0 %3403
      %3405 = vrot.lane.b32.xlu0 %v3400, 118
      %v3406 = vpop.permute.xlu0 %3405
      %v3409 = vmax.f32 %v3399, %v3404
      %v3410 = vmax.f32 %v3400, %v3406
      %v3411 = vpack.c.bf16 %v3410, %v3409
      %v3412 = vld [vmem:[%s65] sm:$0xf]
      %v3413 = vld [vmem:[%s65 + $0x4] sm:$0xf]
      %v3414 = vld [vmem:[%s65 + $0x8] sm:$0xf]
      %v3415 = vld [vmem:[%s65 + $0xc] sm:$0xf]
      %v3416 = vld [vmem:[%s65 + $0x10] sm:$0xf]
      %v3417 = vld [vmem:[%s65 + $0x14] sm:$0xf]
      %v3418 = vld [vmem:[%s65 + $0x18] sm:$0xf]
      %v3419 = vld [vmem:[%s65 + $0x1c] sm:$0xf]
      %v3420 = vld [vmem:[%s65 + $0x20] sm:$0x7]
      %v3430 = vunpack.c.l.b16 %v3412
      %v3431 = vunpack.c.l.b16 %v3413
      %v3432 = vunpack.c.l.b16 %v3414
      %v3433 = vunpack.c.l.b16 %v3415
      %v3434 = vunpack.c.l.b16 %v3416
      %v3435 = vunpack.c.l.b16 %v3417
      %v3436 = vunpack.c.l.b16 %v3418
      %v3437 = vunpack.c.l.b16 %v3419
      %v3438 = vunpack.c.l.b16 %v3420
      %v3439 = vpack.c.b16 %v3431, %v3430
      %v3440 = vpack.c.b16 %v3433, %v3432
      %v3441 = vpack.c.b16 %v3435, %v3434
      %v3442 = vpack.c.b16 %v3437, %v3436
      %v3443 = vpack.c.b16 %v3438, %v3438
      %vm3448 = vcmask 572416
      %v3450 = vsel %vm3448, %v3411, 0
      %vm3452 = vcmask 1042432
      %v3454 = vsel %vm3452, %v3443, 0
      %3456 = vmatprep.subr.bf16.mxu0 0
      %3457 = vmatpush1.bf16.msra.mxu0 %v3439
      %3458 = vmatprep.subr.bf16.mxu0 0
      %3459 = vmatpush1.bf16.msra.mxu0 %v3440
      %3460 = vmatprep.subr.bf16.mxu0 0
      %3461 = vmatpush1.bf16.msra.mxu0 %v3441
      %3462 = vmatprep.subr.bf16.mxu0 0
      %3463 = vmatpush1.bf16.msra.mxu0 %v3442
      %3464 = vmatprep.subr.bf16.mxu0 0
      %3465 = vmatpush1.bf16.msra.mxu0 %v3454
      %3466 = vmatprep.subr.bf16.mxu0 0
      %3467 = vmatpush1.bf16.msra.mxu0 0
      %3468 = vmatprep.subr.bf16.mxu0 0
      %3469 = vmatpush1.bf16.msra.mxu0 0
      %3470 = vmatprep.subr.bf16.mxu0 0
      %3471 = vmatpush1.bf16.msra.mxu0 0
      %3472 = vmatprep.subr.bf16.mxu0 0
      %3473 = vmatpush1.bf16.msra.mxu0 0
      %3474 = vmatprep.subr.bf16.mxu0 0
      %3475 = vmatpush1.bf16.msra.mxu0 0
      %3476 = vmatprep.subr.bf16.mxu0 0
      %3477 = vmatpush1.bf16.msra.mxu0 0
      %3478 = vmatprep.subr.bf16.mxu0 0
      %3479 = vmatpush1.bf16.msra.mxu0 0
      %3480 = vmatprep.subr.bf16.mxu0 0
      %3481 = vmatpush1.bf16.msra.mxu0 0
      %3482 = vmatprep.subr.bf16.mxu0 0
      %3483 = vmatpush1.bf16.msra.mxu0 0
      %3484 = vmatprep.subr.bf16.mxu0 0
      %3485 = vmatpush1.bf16.msra.mxu0 0
      %3486 = vmatprep.subr.bf16.mxu0 0
      %3487 = vmatpush1.bf16.msra.mxu0 0
      %3488 = vmatprep.mubr.bf16.mxu0 0
      %3489 = vmatmul.mubr.bf16.gmra.mrb[0].mxu0 %v3450
      %v3490 = vpop.f32.mrb[0].mxu0
      %v3491 = vadd.f32 0.0, %v3490
      %v3492 = vpop.f32.mrb[0].mxu0
      %v3493 = vpop.f32.mrb[0].mxu0
      %v3494 = vadd.f32 0.0, %v3493
      %v3495 = vpop.f32.mrb[0].mxu0
      %3496 = vdwg.mxu0
      %v3497 = vld [vmem:[%s67] sm:$0xf]
      %v3498 = vld [vmem:[%s67 + $0x4] sm:$0xf]
      %v3499 = vld [vmem:[%s67 + $0x8] sm:$0xf]
      %v3500 = vld [vmem:[%s67 + $0xc] sm:$0xf]
      %v3501 = vld [vmem:[%s67 + $0x10] sm:$0xf]
      %v3502 = vld [vmem:[%s67 + $0x14] sm:$0xf]
      %v3503 = vld [vmem:[%s67 + $0x18] sm:$0xf]
      %v3504 = vld [vmem:[%s67 + $0x1c] sm:$0xf]
      %v3505 = vld [vmem:[%s67 + $0x20] sm:$0x7]
      %v3515 = vunpack.c.l.b16 %v3497
      %v3516 = vunpack.c.l.b16 %v3498
      %v3517 = vunpack.c.l.b16 %v3499
      %v3518 = vunpack.c.l.b16 %v3500
      %v3519 = vunpack.c.l.b16 %v3501
      %v3520 = vunpack.c.l.b16 %v3502
      %v3521 = vunpack.c.l.b16 %v3503
      %v3522 = vunpack.c.l.b16 %v3504
      %v3523 = vunpack.c.l.b16 %v3505
      %v3524 = vpack.c.b16 %v3516, %v3515
      %v3525 = vpack.c.b16 %v3518, %v3517
      %v3526 = vpack.c.b16 %v3520, %v3519
      %v3527 = vpack.c.b16 %v3522, %v3521
      %v3528 = vpack.c.b16 %v3523, %v3523
      %v3534 = vsel %vm3452, %v3528, 0
      %3536 = vmatprep.subr.bf16.mxu0 0
      %3537 = vmatpush1.bf16.msra.mxu0 %v3524
      %3538 = vmatprep.subr.bf16.mxu0 0
      %3539 = vmatpush1.bf16.msra.mxu0 %v3525
      %3540 = vmatprep.subr.bf16.mxu0 0
      %3541 = vmatpush1.bf16.msra.mxu0 %v3526
      %3542 = vmatprep.subr.bf16.mxu0 0
      %3543 = vmatpush1.bf16.msra.mxu0 %v3527
      %3544 = vmatprep.subr.bf16.mxu0 0
      %3545 = vmatpush1.bf16.msra.mxu0 %v3534
      %3546 = vmatprep.subr.bf16.mxu0 0
      %3547 = vmatpush1.bf16.msra.mxu0 0
      %3548 = vmatprep.subr.bf16.mxu0 0
      %3549 = vmatpush1.bf16.msra.mxu0 0
      %3550 = vmatprep.subr.bf16.mxu0 0
      %3551 = vmatpush1.bf16.msra.mxu0 0
      %3552 = vmatprep.subr.bf16.mxu0 0
      %3553 = vmatpush1.bf16.msra.mxu0 0
      %3554 = vmatprep.subr.bf16.mxu0 0
      %3555 = vmatpush1.bf16.msra.mxu0 0
      %3556 = vmatprep.subr.bf16.mxu0 0
      %3557 = vmatpush1.bf16.msra.mxu0 0
      %3558 = vmatprep.subr.bf16.mxu0 0
      %3559 = vmatpush1.bf16.msra.mxu0 0
      %3560 = vmatprep.subr.bf16.mxu0 0
      %3561 = vmatpush1.bf16.msra.mxu0 0
      %3562 = vmatprep.subr.bf16.mxu0 0
      %3563 = vmatpush1.bf16.msra.mxu0 0
      %3564 = vmatprep.subr.bf16.mxu0 0
      %3565 = vmatpush1.bf16.msra.mxu0 0
      %3566 = vmatprep.subr.bf16.mxu0 0
      %3567 = vmatpush1.bf16.msra.mxu0 0
      %3568 = vmatprep.mubr.bf16.mxu0 0
      %3569 = vmatmul.mubr.bf16.gmra.mrb[0].mxu0 %v3450
      %v3570 = vpop.f32.mrb[0].mxu0
      %v3571 = vadd.f32 0.0, %v3570
      %v3572 = vpop.f32.mrb[0].mxu0
      %v3573 = vpop.f32.mrb[0].mxu0
      %v3574 = vadd.f32 0.0, %v3573
      %v3575 = vpop.f32.mrb[0].mxu0
      %3576 = vdwg.mxu0
      %v3577 = vmax.f32 %v3491, %v3571
      %v3578 = vmax.f32 %v3494, %v3574
      %v3579 = vpack.c.bf16 %v3578, %v3577
      %vm3580 = vcmask 56320
      %3581 = vst.msk [vmem:[#allocation6] sm:$0xff] %vm3580, 0
      %3582 = vst.msk [vmem:[#allocation6 + $0x8] sm:$0xff] %vm3580, 0
      %3583 = vst.msk [vmem:[#allocation6 + $0x10] sm:$0xff] %vm3580, 0
      %vm3584 = vcmask 343272
      %3585 = vst.msk [vmem:[#allocation6] sm:$0xff] %vm3584, 0
      %3586 = vst.msk [vmem:[#allocation6 + $0x8] sm:$0xff] %vm3584, 0
      %3587 = vst.msk [vmem:[#allocation6 + $0x10] sm:$0xff] %vm3584, 0
      %3589 = vrot.lane.b32.xlu0 %v3579, 7
      %v3590 = vpop.permute.xlu0 %3589
      %vm3592 = vcmask 252984
      %3593 = vst.msk [vmem:[#allocation6] sm:$0xff] %vm3592, %v3590
      %3594 = vrot.lane.b32.xlu0 %v3579, 6
      %v3595 = vpop.permute.xlu0 %3594
      %vm3597 = vcmask 244784
      %3598 = vst.msk [vmem:[#allocation6 + $0x8] sm:$0xff] %vm3597, %v3595
      %3599 = vrot.lane.b32.xlu0 %v3579, 5
      %v3600 = vpop.permute.xlu0 %3599
      %vm3602 = vcmask 236584
      %3603 = vst.msk [vmem:[#allocation6 + $0x10] sm:$0xff] %vm3602, %v3600
      %v3604 = vld [vmem:[%s57] sm:$0x1]
      %v3605 = vld [vmem:[%s13] sm:$0xf]
      %v3606 = vld [vmem:[%s13 + $0x4] sm:$0xf]
      %v3607 = vld [vmem:[%s13 + $0x8] sm:$0xf]
      %v3608 = vld [vmem:[%s13 + $0xc] sm:$0xf]
      %v3609 = vld [vmem:[#allocation6] sm:$0xff]
      %v3610 = vld [vmem:[#allocation6 + $0x8] sm:$0xff]
      %v3611 = vld [vmem:[#allocation6 + $0x10] sm:$0xff]
      %s3612 = scalar_lea.vmem %s13, 16
      %v3613 = vld [vmem:[%s3612] sm:$0xf]
      %v3614 = vld [vmem:[%s3612 + $0x4] sm:$0xf]
      %v3615 = vld [vmem:[%s3612 + $0x8] sm:$0xf]
      %v3616 = vld [vmem:[%s3612 + $0xc] sm:$0xf]
      %v3621 = vunpack.c.l.b16 %v3613
      %v3622 = vunpack.c.l.b16 %v3614
      %v3623 = vunpack.c.l.b16 %v3615
      %v3624 = vunpack.c.l.b16 %v3616
      %v3625 = vpack.c.b16 %v3622, %v3621
      %v3626 = vpack.c.b16 %v3624, %v3623
      %3630 = vrot.lane.b32.xlu0 %v3609, 122
      %v3631 = vpop.permute.xlu0 %3630
      %3632 = vrot.lane.b32.xlu0 %v3610, 122
      %v3633 = vpop.permute.xlu0 %3632
      %3634 = vrot.lane.b32.xlu0 %v3611, 122
      %v3635 = vpop.permute.xlu0 %3634
      %v3640 = vsel %vm3214, %v3625, 0
      %v3643 = vsel %vm3214, %v3626, 0
      %3645 = vmatprep.subr.bf16.mxu0 0
      %3646 = vmatpush1.bf16.msra.mxu0 %v3631
      %3647 = vmatprep.subr.bf16.mxu0 0
      %3648 = vmatpush1.bf16.msra.mxu0 %v3633
      %3649 = vmatprep.subr.bf16.mxu0 0
      %3650 = vmatpush1.bf16.msra.mxu0 %v3635
      %3651 = vmatprep.subr.bf16.mxu0 0
      %3652 = vmatpush1.bf16.msra.mxu0 0
      %3653 = vmatprep.subr.bf16.mxu0 0
      %3654 = vmatpush1.bf16.msra.mxu0 0
      %3655 = vmatprep.subr.bf16.mxu0 0
      %3656 = vmatpush1.bf16.msra.mxu0 0
      %3657 = vmatprep.subr.bf16.mxu0 0
      %3658 = vmatpush1.bf16.msra.mxu0 0
      %3659 = vmatprep.subr.bf16.mxu0 0
      %3660 = vmatpush1.bf16.msra.mxu0 0
      %3661 = vmatprep.subr.bf16.mxu0 0
      %3662 = vmatpush1.bf16.msra.mxu0 0
      %3663 = vmatprep.subr.bf16.mxu0 0
      %3664 = vmatpush1.bf16.msra.mxu0 0
      %3665 = vmatprep.subr.bf16.mxu0 0
      %3666 = vmatpush1.bf16.msra.mxu0 0
      %3667 = vmatprep.subr.bf16.mxu0 0
      %3668 = vmatpush1.bf16.msra.mxu0 0
      %3669 = vmatprep.subr.bf16.mxu0 0
      %3670 = vmatpush1.bf16.msra.mxu0 0
      %3671 = vmatprep.subr.bf16.mxu0 0
      %3672 = vmatpush1.bf16.msra.mxu0 0
      %3673 = vmatprep.subr.bf16.mxu0 0
      %3674 = vmatpush1.bf16.msra.mxu0 0
      %3675 = vmatprep.subr.bf16.mxu0 0
      %3676 = vmatpush1.bf16.msra.mxu0 0
      %3677 = vmatprep.mubr.bf16.mxu0 0
      %3678 = vmatmul.mubr.bf16.gmra.mrb[0].mxu0 %v3640
      %v3679 = vpop.f32.mrb[0].mxu0
      %v3680 = vadd.f32 0.0, %v3679
      %v3681 = vpop.f32.mrb[0].mxu0
      %v3682 = vpop.f32.mrb[0].mxu0
      %v3683 = vadd.f32 0.0, %v3682
      %v3684 = vpop.f32.mrb[0].mxu0
      %3685 = vmatprep.mubr.bf16.mxu0 0
      %3686 = vmatmul.mubr.bf16.gmra.mrb[0].mxu0 %v3643
      %v3687 = vpop.f32.mrb[0].mxu0
      %v3688 = vadd.f32 0.0, %v3687
      %v3689 = vpop.f32.mrb[0].mxu0
      %v3690 = vpop.f32.mrb[0].mxu0
      %v3691 = vadd.f32 0.0, %v3690
      %v3692 = vpop.f32.mrb[0].mxu0
      %3693 = vdwg.mxu0
      %v3698 = vunpack.c.l.b16 %v3605
      %v3699 = vunpack.c.l.b16 %v3606
      %v3700 = vunpack.c.l.b16 %v3607
      %v3701 = vunpack.c.l.b16 %v3608
      %v3702 = vpack.c.b16 %v3699, %v3698
      %v3703 = vpack.c.b16 %v3701, %v3700
      %v3705 = vsel %vm3214, %v3702, 0
      %v3708 = vsel %vm3214, %v3703, 0
      %3710 = vmatprep.subr.bf16.mxu0 0
      %3711 = vmatpush1.bf16.msra.mxu0 %v3609
      %3712 = vmatprep.subr.bf16.mxu0 0
      %3713 = vmatpush1.bf16.msra.mxu0 %v3610
      %3714 = vmatprep.subr.bf16.mxu0 0
      %3715 = vmatpush1.bf16.msra.mxu0 %v3611
      %3716 = vmatprep.subr.bf16.mxu0 0
      %3717 = vmatpush1.bf16.msra.mxu0 0
      %3718 = vmatprep.subr.bf16.mxu0 0
      %3719 = vmatpush1.bf16.msra.mxu0 0
      %3720 = vmatprep.subr.bf16.mxu0 0
      %3721 = vmatpush1.bf16.msra.mxu0 0
      %3722 = vmatprep.subr.bf16.mxu0 0
      %3723 = vmatpush1.bf16.msra.mxu0 0
      %3724 = vmatprep.subr.bf16.mxu0 0
      %3725 = vmatpush1.bf16.msra.mxu0 0
      %3726 = vmatprep.subr.bf16.mxu0 0
      %3727 = vmatpush1.bf16.msra.mxu0 0
      %3728 = vmatprep.subr.bf16.mxu0 0
      %3729 = vmatpush1.bf16.msra.mxu0 0
      %3730 = vmatprep.subr.bf16.mxu0 0
      %3731 = vmatpush1.bf16.msra.mxu0 0
      %3732 = vmatprep.subr.bf16.mxu0 0
      %3733 = vmatpush1.bf16.msra.mxu0 0
      %3734 = vmatprep.subr.bf16.mxu0 0
      %3735 = vmatpush1.bf16.msra.mxu0 0
      %3736 = vmatprep.subr.bf16.mxu0 0
      %3737 = vmatpush1.bf16.msra.mxu0 0
      %3738 = vmatprep.subr.bf16.mxu0 0
      %3739 = vmatpush1.bf16.msra.mxu0 0
      %3740 = vmatprep.subr.bf16.mxu0 0
      %3741 = vmatpush1.bf16.msra.mxu0 0
      %3742 = vmatprep.mubr.bf16.mxu0 0
      %3743 = vmatmul.mubr.bf16.gmra.mrb[0].mxu0 %v3705
      %v3744 = vpop.f32.mrb[0].mxu0
      %v3745 = vadd.f32 %v3680, %v3744
      %v3746 = vpop.f32.mrb[0].mxu0
      %v3747 = vpop.f32.mrb[0].mxu0
      %v3748 = vadd.f32 %v3683, %v3747
      %v3749 = vpop.f32.mrb[0].mxu0
      %3750 = vmatprep.mubr.bf16.mxu0 0
      %3751 = vmatmul.mubr.bf16.gmra.mrb[0].mxu0 %v3708
      %v3752 = vpop.f32.mrb[0].mxu0
      %v3753 = vadd.f32 %v3688, %v3752
      %v3754 = vpop.f32.mrb[0].mxu0
      %v3755 = vpop.f32.mrb[0].mxu0
      %v3756 = vadd.f32 %v3691, %v3755
      %v3757 = vpop.f32.mrb[0].mxu0
      %3758 = vdwg.mxu0
      %s3759 = scalar_lea.vmem %s13, 32
      %v3760 = vld [vmem:[%s3759] sm:$0xf]
      %v3761 = vld [vmem:[%s3759 + $0x4] sm:$0xf]
      %v3762 = vld [vmem:[%s3759 + $0x8] sm:$0xf]
      %v3763 = vld [vmem:[%s3759 + $0xc] sm:$0xf]
      %v3768 = vunpack.c.l.b16 %v3760
      %v3769 = vunpack.c.l.b16 %v3761
      %v3770 = vunpack.c.l.b16 %v3762
      %v3771 = vunpack.c.l.b16 %v3763
      %v3772 = vpack.c.b16 %v3769, %v3768
      %v3773 = vpack.c.b16 %v3771, %v3770
      %3774 = vrot.lane.b32.xlu0 %v3609, 116
      %v3775 = vpop.permute.xlu0 %3774
      %3776 = vrot.lane.b32.xlu0 %v3610, 116
      %v3777 = vpop.permute.xlu0 %3776
      %3778 = vrot.lane.b32.xlu0 %v3611, 116
      %v3779 = vpop.permute.xlu0 %3778
      %v3784 = vsel %vm3214, %v3772, 0
      %v3787 = vsel %vm3214, %v3773, 0
      %3789 = vmatprep.subr.bf16.mxu0 0
      %3790 = vmatpush1.bf16.msra.mxu0 %v3775
      %3791 = vmatprep.subr.bf16.mxu0 0
      %3792 = vmatpush1.bf16.msra.mxu0 %v3777
      %3793 = vmatprep.subr.bf16.mxu0 0
      %3794 = vmatpush1.bf16.msra.mxu0 %v3779
      %3795 = vmatprep.subr.bf16.mxu0 0
      %3796 = vmatpush1.bf16.msra.mxu0 0
      %3797 = vmatprep.subr.bf16.mxu0 0
      %3798 = vmatpush1.bf16.msra.mxu0 0
      %3799 = vmatprep.subr.bf16.mxu0 0
      %3800 = vmatpush1.bf16.msra.mxu0 0
      %3801 = vmatprep.subr.bf16.mxu0 0
      %3802 = vmatpush1.bf16.msra.mxu0 0
      %3803 = vmatprep.subr.bf16.mxu0 0
      %3804 = vmatpush1.bf16.msra.mxu0 0
      %3805 = vmatprep.subr.bf16.mxu0 0
      %3806 = vmatpush1.bf16.msra.mxu0 0
      %3807 = vmatprep.subr.bf16.mxu0 0
      %3808 = vmatpush1.bf16.msra.mxu0 0
      %3809 = vmatprep.subr.bf16.mxu0 0
      %3810 = vmatpush1.bf16.msra.mxu0 0
      %3811 = vmatprep.subr.bf16.mxu0 0
      %3812 = vmatpush1.bf16.msra.mxu0 0
      %3813 = vmatprep.subr.bf16.mxu0 0
      %3814 = vmatpush1.bf16.msra.mxu0 0
      %3815 = vmatprep.subr.bf16.mxu0 0
      %3816 = vmatpush1.bf16.msra.mxu0 0
      %3817 = vmatprep.subr.bf16.mxu0 0
      %3818 = vmatpush1.bf16.msra.mxu0 0
      %3819 = vmatprep.subr.bf16.mxu0 0
      %3820 = vmatpush1.bf16.msra.mxu0 0
      %3821 = vmatprep.mubr.bf16.mxu0 0
      %3822 = vmatmul.mubr.bf16.gmra.mrb[0].mxu0 %v3784
      %v3823 = vpop.f32.mrb[0].mxu0
      %v3824 = vadd.f32 0.0, %v3823
      %v3825 = vpop.f32.mrb[0].mxu0
      %v3826 = vpop.f32.mrb[0].mxu0
      %v3827 = vadd.f32 0.0, %v3826
      %v3828 = vpop.f32.mrb[0].mxu0
      %3829 = vmatprep.mubr.bf16.mxu0 0
      %3830 = vmatmul.mubr.bf16.gmra.mrb[0].mxu0 %v3787
      %v3831 = vpop.f32.mrb[0].mxu0
      %v3832 = vadd.f32 0.0, %v3831
      %v3833 = vpop.f32.mrb[0].mxu0
      %v3834 = vpop.f32.mrb[0].mxu0
      %v3835 = vadd.f32 0.0, %v3834
      %v3836 = vpop.f32.mrb[0].mxu0
      %3837 = vdwg.mxu0
      %v3838 = vadd.f32 %v3745, %v3824
      %v3839 = vadd.f32 %v3748, %v3827
      %v3840 = vadd.f32 %v3753, %v3832
      %v3841 = vadd.f32 %v3756, %v3835
      %v3842 = vld [vmem:[%s29] sm:$0xff]
      %v3843 = vld [vmem:[%s29 + $0x8] sm:$0xff]
      %v3844 = vld [vmem:[%s29 + $0x10] sm:$0xff]
      %v3845 = vld [vmem:[%s29 + $0x18] sm:$0xff]
      %3847 = vset.pattern.permute.xlu0 0
      %3848 = vperm.xlu0 %3847, %v3842
      %v3849 = vpop.permute.xlu0 %3848
      %3852 = vset.pattern.permute.xlu0 0
      %3853 = vperm.xlu0 %3852, %v3843
      %v3854 = vpop.permute.xlu0 %3853
      %3857 = vset.pattern.permute.xlu0 0
      %3858 = vperm.xlu0 %3857, %v3844
      %v3859 = vpop.permute.xlu0 %3858
      %3862 = vset.pattern.permute.xlu0 0
      %3863 = vperm.xlu0 %3862, %v3845
      %v3864 = vpop.permute.xlu0 %3863
      %v3866 = vmul.f32 %v3838, %v3849
      %v3867 = vmul.f32 %v3839, %v3854
      %v3868 = vmul.f32 %v3840, %v3859
      %v3869 = vmul.f32 %v3841, %v3864
      %v3870 = vld [vmem:[%s45] sm:$0xff]
      %v3871 = vld [vmem:[%s45 + $0x8] sm:$0xff]
      %v3872 = vld [vmem:[%s45 + $0x10] sm:$0xff]
      %v3873 = vld [vmem:[%s45 + $0x18] sm:$0xff]
      %3875 = vset.pattern.permute.xlu0 0
      %3876 = vperm.xlu0 %3875, %v3870
      %v3877 = vpop.permute.xlu0 %3876
      %3880 = vset.pattern.permute.xlu0 0
      %3881 = vperm.xlu0 %3880, %v3871
      %v3882 = vpop.permute.xlu0 %3881
      %3885 = vset.pattern.permute.xlu0 0
      %3886 = vperm.xlu0 %3885, %v3872
      %v3887 = vpop.permute.xlu0 %3886
      %3890 = vset.pattern.permute.xlu0 0
      %3891 = vperm.xlu0 %3890, %v3873
      %v3892 = vpop.permute.xlu0 %3891
      %v3894 = vadd.f32 %v3866, %v3877
      %v3895 = vadd.f32 %v3867, %v3882
      %v3896 = vadd.f32 %v3868, %v3887
      %v3897 = vadd.f32 %v3869, %v3892
      %v3898 = vmax.f32 %v3894, 0.0
      %v3899 = vmax.f32 %v3895, 0.0
      %v3900 = vmax.f32 %v3896, 0.0
      %v3901 = vmax.f32 %v3897, 0.0
      %v3903 = vlaneseq
      %v3904 = vshrl.u32 %v3903, 7
      %v3905 = vsub.s32 0, %v3904
      %v3906 = vrot.slane %v3604, %v3905
      %v3908 = vmul.f32 %v3898, %v3906
      %v3909 = vmul.f32 %v3899, %v3906
      %v3910 = vmul.f32 %v3900, %v3906
      %v3911 = vmul.f32 %v3901, %v3906
      %v3912 = vpack.c.bf16 %v3909, %v3908
      %v3913 = vpack.c.bf16 %v3911, %v3910
      %3914 = vst.msk [vmem:[#allocation7] sm:$0xff] %vm3580, 0
      %3915 = vst.msk [vmem:[#allocation7 + $0x8] sm:$0xff] %vm3580, 0
      %3916 = vst.msk [vmem:[#allocation7 + $0x10] sm:$0xff] %vm3580, 0
      %3917 = vst.msk [vmem:[#allocation7 + $0x18] sm:$0xff] %vm3580, 0
      %3918 = vst.msk [vmem:[#allocation7 + $0x20] sm:$0xff] %vm3580, 0
      %3919 = vst.msk [vmem:[#allocation7 + $0x28] sm:$0xff] %vm3580, 0
      %3920 = vst.msk [vmem:[#allocation7] sm:$0xff] %vm3584, 0
      %3921 = vst.msk [vmem:[#allocation7 + $0x8] sm:$0xff] %vm3584, 0
      %3922 = vst.msk [vmem:[#allocation7 + $0x10] sm:$0xff] %vm3584, 0
      %3923 = vst.msk [vmem:[#allocation7 + $0x18] sm:$0xff] %vm3584, 0
      %3924 = vst.msk [vmem:[#allocation7 + $0x20] sm:$0xff] %vm3584, 0
      %3925 = vst.msk [vmem:[#allocation7 + $0x28] sm:$0xff] %vm3584, 0
      %3928 = vrot.lane.b32.xlu0 %v3912, 7
      %v3929 = vpop.permute.xlu0 %3928
      %3930 = vrot.lane.b32.xlu0 %v3913, 7
      %v3931 = vpop.permute.xlu0 %3930
      %3934 = vst.msk [vmem:[#allocation7] sm:$0xff] %vm3592, %v3929
      %3935 = vst.msk [vmem:[#allocation7 + $0x8] sm:$0xff] %vm3592, %v3931
      %3936 = vrot.lane.b32.xlu0 %v3912, 6
      %v3937 = vpop.permute.xlu0 %3936
      %3938 = vrot.lane.b32.xlu0 %v3913, 6
      %v3939 = vpop.permute.xlu0 %3938
      %3942 = vst.msk [vmem:[#allocation7 + $0x10] sm:$0xff] %vm3597, %v3937
      %3943 = vst.msk [vmem:[#allocation7 + $0x18] sm:$0xff] %vm3597, %v3939
      %3944 = vrot.lane.b32.xlu0 %v3912, 5
      %v3945 = vpop.permute.xlu0 %3944
      %3946 = vrot.lane.b32.xlu0 %v3913, 5
      %v3947 = vpop.permute.xlu0 %3946
      %3950 = vst.msk [vmem:[#allocation7 + $0x20] sm:$0xff] %vm3602, %v3945
      %3951 = vst.msk [vmem:[#allocation7 + $0x28] sm:$0xff] %vm3602, %v3947
      %v3952 = vld [vmem:[%s15] sm:$0xf]
      %v3953 = vld [vmem:[%s15 + $0x4] sm:$0xf]
      %v3954 = vld [vmem:[%s15 + $0x8] sm:$0xf]
      %v3955 = vld [vmem:[%s15 + $0xc] sm:$0xf]
      %v3956 = vld [vmem:[#allocation7] sm:$0xff]
      %v3957 = vld [vmem:[#allocation7 + $0x8] sm:$0xff]
      %v3958 = vld [vmem:[#allocation7 + $0x10] sm:$0xff]
      %v3959 = vld [vmem:[#allocation7 + $0x18] sm:$0xff]
      %v3960 = vld [vmem:[#allocation7 + $0x20] sm:$0xff]
      %v3961 = vld [vmem:[#allocation7 + $0x28] sm:$0xff]
      %s3962 = scalar_lea.vmem %s15, 16
      %v3963 = vld [vmem:[%s3962] sm:$0xf]
      %v3964 = vld [vmem:[%s3962 + $0x4] sm:$0xf]
      %v3965 = vld [vmem:[%s3962 + $0x8] sm:$0xf]
      %v3966 = vld [vmem:[%s3962 + $0xc] sm:$0xf]
      %v3971 = vunpack.c.l.b16 %v3963
      %v3972 = vunpack.c.l.b16 %v3964
      %v3973 = vunpack.c.l.b16 %v3965
      %v3974 = vunpack.c.l.b16 %v3966
      %v3975 = vpack.c.b16 %v3972, %v3971
      %v3976 = vpack.c.b16 %v3974, %v3973
      %3983 = vrot.lane.b32.xlu0 %v3956, 122
      %v3984 = vpop.permute.xlu0 %3983
      %3985 = vrot.lane.b32.xlu0 %v3957, 122
      %v3986 = vpop.permute.xlu0 %3985
      %3987 = vrot.lane.b32.xlu0 %v3958, 122
      %v3988 = vpop.permute.xlu0 %3987
      %3989 = vrot.lane.b32.xlu0 %v3959, 122
      %v3990 = vpop.permute.xlu0 %3989
      %3991 = vrot.lane.b32.xlu0 %v3960, 122
      %v3992 = vpop.permute.xlu0 %3991
      %3993 = vrot.lane.b32.xlu0 %v3961, 122
      %v3994 = vpop.permute.xlu0 %3993
      %vm4001 = vcmask 785408
      %v4003 = vsel %vm4001, %v3975, 0
      %v4006 = vsel %vm4001, %v3976, 0
      %4008 = vmatprep.subr.bf16.mxu0 0
      %4009 = vmatpush1.bf16.msra.mxu0 %v3984
      %4010 = vmatprep.subr.bf16.mxu0 0
      %4011 = vmatpush1.bf16.msra.mxu0 %v3986
      %4012 = vmatprep.subr.bf16.mxu0 0
      %4013 = vmatpush1.bf16.msra.mxu0 %v3988
      %4014 = vmatprep.subr.bf16.mxu0 0
      %4015 = vmatpush1.bf16.msra.mxu0 %v3990
      %4016 = vmatprep.subr.bf16.mxu0 0
      %4017 = vmatpush1.bf16.msra.mxu0 %v3992
      %4018 = vmatprep.subr.bf16.mxu0 0
      %4019 = vmatpush1.bf16.msra.mxu0 %v3994
      %4020 = vmatprep.subr.bf16.mxu0 0
      %4021 = vmatpush1.bf16.msra.mxu0 0
      %4022 = vmatprep.subr.bf16.mxu0 0
      %4023 = vmatpush1.bf16.msra.mxu0 0
      %4024 = vmatprep.subr.bf16.mxu0 0
      %4025 = vmatpush1.bf16.msra.mxu0 0
      %4026 = vmatprep.subr.bf16.mxu0 0
      %4027 = vmatpush1.bf16.msra.mxu0 0
      %4028 = vmatprep.subr.bf16.mxu0 0
      %4029 = vmatpush1.bf16.msra.mxu0 0
      %4030 = vmatprep.subr.bf16.mxu0 0
      %4031 = vmatpush1.bf16.msra.mxu0 0
      %4032 = vmatprep.subr.bf16.mxu0 0
      %4033 = vmatpush1.bf16.msra.mxu0 0
      %4034 = vmatprep.subr.bf16.mxu0 0
      %4035 = vmatpush1.bf16.msra.mxu0 0
      %4036 = vmatprep.subr.bf16.mxu0 0
      %4037 = vmatpush1.bf16.msra.mxu0 0
      %4038 = vmatprep.subr.bf16.mxu0 0
      %4039 = vmatpush1.bf16.msra.mxu0 0
      %4040 = vmatprep.mubr.bf16.mxu0 0
      %4041 = vmatmul.mubr.bf16.gmra.mrb[0].mxu0 %v4003
      %v4042 = vpop.f32.mrb[0].mxu0
      %v4043 = vadd.f32 0.0, %v4042
      %v4044 = vpop.f32.mrb[0].mxu0
      %v4045 = vpop.f32.mrb[0].mxu0
      %v4046 = vadd.f32 0.0, %v4045
      %v4047 = vpop.f32.mrb[0].mxu0
      %4048 = vmatprep.mubr.bf16.mxu0 0
      %4049 = vmatmul.mubr.bf16.gmra.mrb[0].mxu0 %v4006
      %v4050 = vpop.f32.mrb[0].mxu0
      %v4051 = vadd.f32 0.0, %v4050
      %v4052 = vpop.f32.mrb[0].mxu0
      %v4053 = vpop.f32.mrb[0].mxu0
      %v4054 = vadd.f32 0.0, %v4053
      %v4055 = vpop.f32.mrb[0].mxu0
      %4056 = vdwg.mxu0
      %v4061 = vunpack.c.l.b16 %v3952
      %v4062 = vunpack.c.l.b16 %v3953
      %v4063 = vunpack.c.l.b16 %v3954
      %v4064 = vunpack.c.l.b16 %v3955
      %v4065 = vpack.c.b16 %v4062, %v4061
      %v4066 = vpack.c.b16 %v4064, %v4063
      %v4068 = vsel %vm4001, %v4065, 0
      %v4071 = vsel %vm4001, %v4066, 0
      %4073 = vmatprep.subr.bf16.mxu0 0
      %4074 = vmatpush1.bf16.msra.mxu0 %v3956
      %4075 = vmatprep.subr.bf16.mxu0 0
      %4076 = vmatpush1.bf16.msra.mxu0 %v3957
      %4077 = vmatprep.subr.bf16.mxu0 0
      %4078 = vmatpush1.bf16.msra.mxu0 %v3958
      %4079 = vmatprep.subr.bf16.mxu0 0
      %4080 = vmatpush1.bf16.msra.mxu0 %v3959
      %4081 = vmatprep.subr.bf16.mxu0 0
      %4082 = vmatpush1.bf16.msra.mxu0 %v3960
      %4083 = vmatprep.subr.bf16.mxu0 0
      %4084 = vmatpush1.bf16.msra.mxu0 %v3961
      %4085 = vmatprep.subr.bf16.mxu0 0
      %4086 = vmatpush1.bf16.msra.mxu0 0
      %4087 = vmatprep.subr.bf16.mxu0 0
      %4088 = vmatpush1.bf16.msra.mxu0 0
      %4089 = vmatprep.subr.bf16.mxu0 0
      %4090 = vmatpush1.bf16.msra.mxu0 0
      %4091 = vmatprep.subr.bf16.mxu0 0
      %4092 = vmatpush1.bf16.msra.mxu0 0
      %4093 = vmatprep.subr.bf16.mxu0 0
      %4094 = vmatpush1.bf16.msra.mxu0 0
      %4095 = vmatprep.subr.bf16.mxu0 0
      %4096 = vmatpush1.bf16.msra.mxu0 0
      %4097 = vmatprep.subr.bf16.mxu0 0
      %4098 = vmatpush1.bf16.msra.mxu0 0
      %4099 = vmatprep.subr.bf16.mxu0 0
      %4100 = vmatpush1.bf16.msra.mxu0 0
      %4101 = vmatprep.subr.bf16.mxu0 0
      %4102 = vmatpush1.bf16.msra.mxu0 0
      %4103 = vmatprep.subr.bf16.mxu0 0
      %4104 = vmatpush1.bf16.msra.mxu0 0
      %4105 = vmatprep.mubr.bf16.mxu0 0
      %4106 = vmatmul.mubr.bf16.gmra.mrb[0].mxu0 %v4068
      %v4107 = vpop.f32.mrb[0].mxu0
      %v4108 = vadd.f32 %v4043, %v4107
      %v4109 = vpop.f32.mrb[0].mxu0
      %v4110 = vpop.f32.mrb[0].mxu0
      %v4111 = vadd.f32 %v4046, %v4110
      %v4112 = vpop.f32.mrb[0].mxu0
      %4113 = vmatprep.mubr.bf16.mxu0 0
      %4114 = vmatmul.mubr.bf16.gmra.mrb[0].mxu0 %v4071
      %v4115 = vpop.f32.mrb[0].mxu0
      %v4116 = vadd.f32 %v4051, %v4115
      %v4117 = vpop.f32.mrb[0].mxu0
      %v4118 = vpop.f32.mrb[0].mxu0
      %v4119 = vadd.f32 %v4054, %v4118
      %v4120 = vpop.f32.mrb[0].mxu0
      %4121 = vdwg.mxu0
      %s4122 = scalar_lea.vmem %s15, 32
      %v4123 = vld [vmem:[%s4122] sm:$0xf]
      %v4124 = vld [vmem:[%s4122 + $0x4] sm:$0xf]
      %v4125 = vld [vmem:[%s4122 + $0x8] sm:$0xf]
      %v4126 = vld [vmem:[%s4122 + $0xc] sm:$0xf]
      %v4131 = vunpack.c.l.b16 %v4123
      %v4132 = vunpack.c.l.b16 %v4124
      %v4133 = vunpack.c.l.b16 %v4125
      %v4134 = vunpack.c.l.b16 %v4126
      %v4135 = vpack.c.b16 %v4132, %v4131
      %v4136 = vpack.c.b16 %v4134, %v4133
      %4137 = vrot.lane.b32.xlu0 %v3956, 116
      %v4138 = vpop.permute.xlu0 %4137
      %4139 = vrot.lane.b32.xlu0 %v3957, 116
      %v4140 = vpop.permute.xlu0 %4139
      %4141 = vrot.lane.b32.xlu0 %v3958, 116
      %v4142 = vpop.permute.xlu0 %4141
      %4143 = vrot.lane.b32.xlu0 %v3959, 116
      %v4144 = vpop.permute.xlu0 %4143
      %4145 = vrot.lane.b32.xlu0 %v3960, 116
      %v4146 = vpop.permute.xlu0 %4145
      %4147 = vrot.lane.b32.xlu0 %v3961, 116
      %v4148 = vpop.permute.xlu0 %4147
      %v4156 = vsel %vm4001, %v4135, 0
      %v4159 = vsel %vm4001, %v4136, 0
      %4161 = vmatprep.subr.bf16.mxu0 0
      %4162 = vmatpush1.bf16.msra.mxu0 %v4138
      %4163 = vmatprep.subr.bf16.mxu0 0
      %4164 = vmatpush1.bf16.msra.mxu0 %v4140
      %4165 = vmatprep.subr.bf16.mxu0 0
      %4166 = vmatpush1.bf16.msra.mxu0 %v4142
      %4167 = vmatprep.subr.bf16.mxu0 0
      %4168 = vmatpush1.bf16.msra.mxu0 %v4144
      %4169 = vmatprep.subr.bf16.mxu0 0
      %4170 = vmatpush1.bf16.msra.mxu0 %v4146
      %4171 = vmatprep.subr.bf16.mxu0 0
      %4172 = vmatpush1.bf16.msra.mxu0 %v4148
      %4173 = vmatprep.subr.bf16.mxu0 0
      %4174 = vmatpush1.bf16.msra.mxu0 0
      %4175 = vmatprep.subr.bf16.mxu0 0
      %4176 = vmatpush1.bf16.msra.mxu0 0
      %4177 = vmatprep.subr.bf16.mxu0 0
      %4178 = vmatpush1.bf16.msra.mxu0 0
      %4179 = vmatprep.subr.bf16.mxu0 0
      %4180 = vmatpush1.bf16.msra.mxu0 0
      %4181 = vmatprep.subr.bf16.mxu0 0
      %4182 = vmatpush1.bf16.msra.mxu0 0
      %4183 = vmatprep.subr.bf16.mxu0 0
      %4184 = vmatpush1.bf16.msra.mxu0 0
      %4185 = vmatprep.subr.bf16.mxu0 0
      %4186 = vmatpush1.bf16.msra.mxu0 0
      %4187 = vmatprep.subr.bf16.mxu0 0
      %4188 = vmatpush1.bf16.msra.mxu0 0
      %4189 = vmatprep.subr.bf16.mxu0 0
      %4190 = vmatpush1.bf16.msra.mxu0 0
      %4191 = vmatprep.subr.bf16.mxu0 0
      %4192 = vmatpush1.bf16.msra.mxu0 0
      %4193 = vmatprep.mubr.bf16.mxu0 0
      %4194 = vmatmul.mubr.bf16.gmra.mrb[0].mxu0 %v4156
      %v4195 = vpop.f32.mrb[0].mxu0
      %v4196 = vadd.f32 0.0, %v4195
      %v4197 = vpop.f32.mrb[0].mxu0
      %v4198 = vpop.f32.mrb[0].mxu0
      %v4199 = vadd.f32 0.0, %v4198
      %v4200 = vpop.f32.mrb[0].mxu0
      %4201 = vmatprep.mubr.bf16.mxu0 0
      %4202 = vmatmul.mubr.bf16.gmra.mrb[0].mxu0 %v4159
      %v4203 = vpop.f32.mrb[0].mxu0
      %v4204 = vadd.f32 0.0, %v4203
      %v4205 = vpop.f32.mrb[0].mxu0
      %v4206 = vpop.f32.mrb[0].mxu0
      %v4207 = vadd.f32 0.0, %v4206
      %v4208 = vpop.f32.mrb[0].mxu0
      %4209 = vdwg.mxu0
      %v4210 = vadd.f32 %v4108, %v4196
      %v4211 = vadd.f32 %v4111, %v4199
      %v4212 = vadd.f32 %v4116, %v4204
      %v4213 = vadd.f32 %v4119, %v4207
      %v4214 = vld [vmem:[%s31] sm:$0xff]
      %v4215 = vld [vmem:[%s31 + $0x8] sm:$0xff]
      %v4216 = vld [vmem:[%s31 + $0x10] sm:$0xff]
      %v4217 = vld [vmem:[%s31 + $0x18] sm:$0xff]
      %4219 = vset.pattern.permute.xlu0 0
      %4220 = vperm.xlu0 %4219, %v4214
      %v4221 = vpop.permute.xlu0 %4220
      %4224 = vset.pattern.permute.xlu0 0
      %4225 = vperm.xlu0 %4224, %v4215
      %v4226 = vpop.permute.xlu0 %4225
      %4229 = vset.pattern.permute.xlu0 0
      %4230 = vperm.xlu0 %4229, %v4216
      %v4231 = vpop.permute.xlu0 %4230
      %4234 = vset.pattern.permute.xlu0 0
      %4235 = vperm.xlu0 %4234, %v4217
      %v4236 = vpop.permute.xlu0 %4235
      %v4238 = vmul.f32 %v4210, %v4221
      %v4239 = vmul.f32 %v4211, %v4226
      %v4240 = vmul.f32 %v4212, %v4231
      %v4241 = vmul.f32 %v4213, %v4236
      %v4242 = vld [vmem:[%s47] sm:$0xff]
      %v4243 = vld [vmem:[%s47 + $0x8] sm:$0xff]
      %v4244 = vld [vmem:[%s47 + $0x10] sm:$0xff]
      %v4245 = vld [vmem:[%s47 + $0x18] sm:$0xff]
      %4247 = vset.pattern.permute.xlu0 0
      %4248 = vperm.xlu0 %4247, %v4242
      %v4249 = vpop.permute.xlu0 %4248
      %4252 = vset.pattern.permute.xlu0 0
      %4253 = vperm.xlu0 %4252, %v4243
      %v4254 = vpop.permute.xlu0 %4253
      %4257 = vset.pattern.permute.xlu0 0
      %4258 = vperm.xlu0 %4257, %v4244
      %v4259 = vpop.permute.xlu0 %4258
      %4262 = vset.pattern.permute.xlu0 0
      %4263 = vperm.xlu0 %4262, %v4245
      %v4264 = vpop.permute.xlu0 %4263
      %v4266 = vadd.f32 %v4238, %v4249
      %v4267 = vadd.f32 %v4239, %v4254
      %v4268 = vadd.f32 %v4240, %v4259
      %v4269 = vadd.f32 %v4241, %v4264
      %v4270 = vmax.f32 %v4266, 0.0
      %v4271 = vmax.f32 %v4267, 0.0
      %v4272 = vmax.f32 %v4268, 0.0
      %v4273 = vmax.f32 %v4269, 0.0
      %4278 = vrot.lane.b32.xlu0 %v4270, 122
      %v4279 = vpop.permute.xlu0 %4278
      %4280 = vrot.lane.b32.xlu0 %v4271, 122
      %v4281 = vpop.permute.xlu0 %4280
      %4282 = vrot.lane.b32.xlu0 %v4272, 122
      %v4283 = vpop.permute.xlu0 %4282
      %4284 = vrot.lane.b32.xlu0 %v4273, 122
      %v4285 = vpop.permute.xlu0 %4284
      %v4290 = vmax.f32 %v4270, %v4279
      %v4291 = vmax.f32 %v4271, %v4281
      %v4292 = vmax.f32 %v4272, %v4283
      %v4293 = vmax.f32 %v4273, %v4285
      %v4294 = vpack.c.bf16 %v4291, %v4290
      %v4295 = vpack.c.bf16 %v4293, %v4292
      %v4296 = vld [vmem:[%s69] sm:$0xf]
      %v4297 = vld [vmem:[%s69 + $0x4] sm:$0xf]
      %v4298 = vld [vmem:[%s69 + $0x8] sm:$0x1]
      %v4302 = vunpack.c.l.b16 %v4296
      %v4303 = vunpack.c.l.b16 %v4297
      %v4304 = vunpack.c.l.b16 %v4298
      %v4305 = vpack.c.b16 %v4303, %v4302
      %v4306 = vpack.c.b16 %v4304, %v4304
      %vm4308 = vcmask 146432
      %v4310 = vsel %vm4308, %v4294, 0
      %v4313 = vsel %vm4308, %v4295, 0
      %vm4315 = vcmask 1040384
      %v4317 = vsel %vm4315, %v4306, 0
      %4319 = vmatprep.subr.bf16.mxu0 0
      %4320 = vmatpush1.bf16.msra.mxu0 %v4305
      %4321 = vmatprep.subr.bf16.mxu0 0
      %4322 = vmatpush1.bf16.msra.mxu0 %v4317
      %4323 = vmatprep.subr.bf16.mxu0 0
      %4324 = vmatpush1.bf16.msra.mxu0 0
      %4325 = vmatprep.subr.bf16.mxu0 0
      %4326 = vmatpush1.bf16.msra.mxu0 0
      %4327 = vmatprep.subr.bf16.mxu0 0
      %4328 = vmatpush1.bf16.msra.mxu0 0
      %4329 = vmatprep.subr.bf16.mxu0 0
      %4330 = vmatpush1.bf16.msra.mxu0 0
      %4331 = vmatprep.subr.bf16.mxu0 0
      %4332 = vmatpush1.bf16.msra.mxu0 0
      %4333 = vmatprep.subr.bf16.mxu0 0
      %4334 = vmatpush1.bf16.msra.mxu0 0
      %4335 = vmatprep.subr.bf16.mxu0 0
      %4336 = vmatpush1.bf16.msra.mxu0 0
      %4337 = vmatprep.subr.bf16.mxu0 0
      %4338 = vmatpush1.bf16.msra.mxu0 0
      %4339 = vmatprep.subr.bf16.mxu0 0
      %4340 = vmatpush1.bf16.msra.mxu0 0
      %4341 = vmatprep.subr.bf16.mxu0 0
      %4342 = vmatpush1.bf16.msra.mxu0 0
      %4343 = vmatprep.subr.bf16.mxu0 0
      %4344 = vmatpush1.bf16.msra.mxu0 0
      %4345 = vmatprep.subr.bf16.mxu0 0
      %4346 = vmatpush1.bf16.msra.mxu0 0
      %4347 = vmatprep.subr.bf16.mxu0 0
      %4348 = vmatpush1.bf16.msra.mxu0 0
      %4349 = vmatprep.subr.bf16.mxu0 0
      %4350 = vmatpush1.bf16.msra.mxu0 0
      %4351 = vmatprep.mubr.bf16.mxu0 0
      %4352 = vmatmul.mubr.bf16.gmra.mrb[0].mxu0 %v4310
      %v4353 = vpop.f32.mrb[0].mxu0
      %v4354 = vadd.f32 0.0, %v4353
      %v4355 = vpop.f32.mrb[0].mxu0
      %v4356 = vpop.f32.mrb[0].mxu0
      %v4357 = vadd.f32 0.0, %v4356
      %v4358 = vpop.f32.mrb[0].mxu0
      %4359 = vmatprep.mubr.bf16.mxu0 0
      %4360 = vmatmul.mubr.bf16.gmra.mrb[0].mxu0 %v4313
      %v4361 = vpop.f32.mrb[0].mxu0
      %v4362 = vadd.f32 0.0, %v4361
      %v4363 = vpop.f32.mrb[0].mxu0
      %v4364 = vpop.f32.mrb[0].mxu0
      %v4365 = vadd.f32 0.0, %v4364
      %v4366 = vpop.f32.mrb[0].mxu0
      %4367 = vdwg.mxu0
      %v4368 = vld [vmem:[%s71] sm:$0xf]
      %v4369 = vld [vmem:[%s71 + $0x4] sm:$0xf]
      %v4370 = vld [vmem:[%s71 + $0x8] sm:$0x1]
      %v4374 = vunpack.c.l.b16 %v4368
      %v4375 = vunpack.c.l.b16 %v4369
      %v4376 = vunpack.c.l.b16 %v4370
      %v4377 = vpack.c.b16 %v4375, %v4374
      %v4378 = vpack.c.b16 %v4376, %v4376
      %v4381 = vsel %vm4315, %v4378, 0
      %4383 = vmatprep.subr.bf16.mxu0 0
      %4384 = vmatpush1.bf16.msra.mxu0 %v4377
      %4385 = vmatprep.subr.bf16.mxu0 0
      %4386 = vmatpush1.bf16.msra.mxu0 %v4381
      %4387 = vmatprep.subr.bf16.mxu0 0
      %4388 = vmatpush1.bf16.msra.mxu0 0
      %4389 = vmatprep.subr.bf16.mxu0 0
      %4390 = vmatpush1.bf16.msra.mxu0 0
      %4391 = vmatprep.subr.bf16.mxu0 0
      %4392 = vmatpush1.bf16.msra.mxu0 0
      %4393 = vmatprep.subr.bf16.mxu0 0
      %4394 = vmatpush1.bf16.msra.mxu0 0
      %4395 = vmatprep.subr.bf16.mxu0 0
      %4396 = vmatpush1.bf16.msra.mxu0 0
      %4397 = vmatprep.subr.bf16.mxu0 0
      %4398 = vmatpush1.bf16.msra.mxu0 0
      %4399 = vmatprep.subr.bf16.mxu0 0
      %4400 = vmatpush1.bf16.msra.mxu0 0
      %4401 = vmatprep.subr.bf16.mxu0 0
      %4402 = vmatpush1.bf16.msra.mxu0 0
      %4403 = vmatprep.subr.bf16.mxu0 0
      %4404 = vmatpush1.bf16.msra.mxu0 0
      %4405 = vmatprep.subr.bf16.mxu0 0
      %4406 = vmatpush1.bf16.msra.mxu0 0
      %4407 = vmatprep.subr.bf16.mxu0 0
      %4408 = vmatpush1.bf16.msra.mxu0 0
      %4409 = vmatprep.subr.bf16.mxu0 0
      %4410 = vmatpush1.bf16.msra.mxu0 0
      %4411 = vmatprep.subr.bf16.mxu0 0
      %4412 = vmatpush1.bf16.msra.mxu0 0
      %4413 = vmatprep.subr.bf16.mxu0 0
      %4414 = vmatpush1.bf16.msra.mxu0 0
      %4415 = vmatprep.mubr.bf16.mxu0 0
      %4416 = vmatmul.mubr.bf16.gmra.mrb[0].mxu0 %v4310
      %v4417 = vpop.f32.mrb[0].mxu0
      %v4418 = vadd.f32 0.0, %v4417
      %v4419 = vpop.f32.mrb[0].mxu0
      %v4420 = vpop.f32.mrb[0].mxu0
      %v4421 = vadd.f32 0.0, %v4420
      %v4422 = vpop.f32.mrb[0].mxu0
      %4423 = vmatprep.mubr.bf16.mxu0 0
      %4424 = vmatmul.mubr.bf16.gmra.mrb[0].mxu0 %v4313
      %v4425 = vpop.f32.mrb[0].mxu0
      %v4426 = vadd.f32 0.0, %v4425
      %v4427 = vpop.f32.mrb[0].mxu0
      %v4428 = vpop.f32.mrb[0].mxu0
      %v4429 = vadd.f32 0.0, %v4428
      %v4430 = vpop.f32.mrb[0].mxu0
      %4431 = vdwg.mxu0
      %v4432 = vmax.f32 %v4354, %v4418
      %v4433 = vmax.f32 %v4357, %v4421
      %v4434 = vmax.f32 %v4362, %v4426
      %v4435 = vmax.f32 %v4365, %v4429
      %v4436 = vpack.c.bf16 %v4433, %v4432
      %v4437 = vpack.c.bf16 %v4435, %v4434
      %vm4438 = vcmask 39936
      %4439 = vst.msk [vmem:[#allocation8] sm:$0xff] %vm4438, 0
      %4440 = vst.msk [vmem:[#allocation8 + $0x8] sm:$0xff] %vm4438, 0
      %4441 = vst.msk [vmem:[#allocation8 + $0x10] sm:$0xff] %vm4438, 0
      %4442 = vst.msk [vmem:[#allocation8 + $0x18] sm:$0xff] %vm4438, 0
      %4443 = vst.msk [vmem:[#allocation8 + $0x20] sm:$0xff] %vm4438, 0
      %4444 = vst.msk [vmem:[#allocation8 + $0x28] sm:$0xff] %vm4438, 0
      %vm4445 = vcmask 162904
      %4446 = vst.msk [vmem:[#allocation8] sm:$0xff] %vm4445, 0
      %4447 = vst.msk [vmem:[#allocation8 + $0x8] sm:$0xff] %vm4445, 0
      %4448 = vst.msk [vmem:[#allocation8 + $0x10] sm:$0xff] %vm4445, 0
      %4449 = vst.msk [vmem:[#allocation8 + $0x18] sm:$0xff] %vm4445, 0
      %4450 = vst.msk [vmem:[#allocation8 + $0x20] sm:$0xff] %vm4445, 0
      %4451 = vst.msk [vmem:[#allocation8 + $0x28] sm:$0xff] %vm4445, 0
      %4454 = vrot.lane.b32.xlu0 %v4436, 5
      %v4455 = vpop.permute.xlu0 %4454
      %4456 = vrot.lane.b32.xlu0 %v4437, 5
      %v4457 = vpop.permute.xlu0 %4456
      %vm4460 = vcmask 105512
      %4461 = vst.msk [vmem:[#allocation8] sm:$0xff] %vm4460, %v4455
      %4462 = vst.msk [vmem:[#allocation8 + $0x8] sm:$0xff] %vm4460, %v4457
      %4463 = vrot.lane.b32.xlu0 %v4436, 4
      %v4464 = vpop.permute.xlu0 %4463
      %4465 = vrot.lane.b32.xlu0 %v4437, 4
      %v4466 = vpop.permute.xlu0 %4465
      %vm4469 = vcmask 97312
      %4470 = vst.msk [vmem:[#allocation8 + $0x10] sm:$0xff] %vm4469, %v4464
      %4471 = vst.msk [vmem:[#allocation8 + $0x18] sm:$0xff] %vm4469, %v4466
      %4472 = vrot.lane.b32.xlu0 %v4436, 3
      %v4473 = vpop.permute.xlu0 %4472
      %4474 = vrot.lane.b32.xlu0 %v4437, 3
      %v4475 = vpop.permute.xlu0 %4474
      %vm4478 = vcmask 89112
      %4479 = vst.msk [vmem:[#allocation8 + $0x20] sm:$0xff] %vm4478, %v4473
      %4480 = vst.msk [vmem:[#allocation8 + $0x28] sm:$0xff] %vm4478, %v4475
      %v4481 = vld [vmem:[%s59] sm:$0x1]
      %v4482 = vld [vmem:[%s17] sm:$0xf]
      %v4483 = vld [vmem:[%s17 + $0x4] sm:$0xf]
      %v4484 = vld [vmem:[%s17 + $0x8] sm:$0xf]
      %v4485 = vld [vmem:[%s17 + $0xc] sm:$0xf]
      %v4486 = vld [vmem:[#allocation8] sm:$0xff]
      %v4487 = vld [vmem:[#allocation8 + $0x8] sm:$0xff]
      %v4488 = vld [vmem:[#allocation8 + $0x10] sm:$0xff]
      %v4489 = vld [vmem:[#allocation8 + $0x18] sm:$0xff]
      %v4490 = vld [vmem:[#allocation8 + $0x20] sm:$0xff]
      %v4491 = vld [vmem:[#allocation8 + $0x28] sm:$0xff]
      %s4492 = scalar_lea.vmem %s17, 16
      %v4493 = vld [vmem:[%s4492] sm:$0xf]
      %v4494 = vld [vmem:[%s4492 + $0x4] sm:$0xf]
      %v4495 = vld [vmem:[%s4492 + $0x8] sm:$0xf]
      %v4496 = vld [vmem:[%s4492 + $0xc] sm:$0xf]
      %v4501 = vunpack.c.l.b16 %v4493
      %v4502 = vunpack.c.l.b16 %v4494
      %v4503 = vunpack.c.l.b16 %v4495
      %v4504 = vunpack.c.l.b16 %v4496
      %v4505 = vpack.c.b16 %v4502, %v4501
      %v4506 = vpack.c.b16 %v4504, %v4503
      %4513 = vrot.lane.b32.xlu0 %v4486, 124
      %v4514 = vpop.permute.xlu0 %4513
      %4515 = vrot.lane.b32.xlu0 %v4487, 124
      %v4516 = vpop.permute.xlu0 %4515
      %4517 = vrot.lane.b32.xlu0 %v4488, 124
      %v4518 = vpop.permute.xlu0 %4517
      %4519 = vrot.lane.b32.xlu0 %v4489, 124
      %v4520 = vpop.permute.xlu0 %4519
      %4521 = vrot.lane.b32.xlu0 %v4490, 124
      %v4522 = vpop.permute.xlu0 %4521
      %4523 = vrot.lane.b32.xlu0 %v4491, 124
      %v4524 = vpop.permute.xlu0 %4523
      %v4532 = vsel %vm4001, %v4505, 0
      %v4535 = vsel %vm4001, %v4506, 0
      %4537 = vmatprep.subr.bf16.mxu0 0
      %4538 = vmatpush1.bf16.msra.mxu0 %v4514
      %4539 = vmatprep.subr.bf16.mxu0 0
      %4540 = vmatpush1.bf16.msra.mxu0 %v4516
      %4541 = vmatprep.subr.bf16.mxu0 0
      %4542 = vmatpush1.bf16.msra.mxu0 %v4518
      %4543 = vmatprep.subr.bf16.mxu0 0
      %4544 = vmatpush1.bf16.msra.mxu0 %v4520
      %4545 = vmatprep.subr.bf16.mxu0 0
      %4546 = vmatpush1.bf16.msra.mxu0 %v4522
      %4547 = vmatprep.subr.bf16.mxu0 0
      %4548 = vmatpush1.bf16.msra.mxu0 %v4524
      %4549 = vmatprep.subr.bf16.mxu0 0
      %4550 = vmatpush1.bf16.msra.mxu0 0
      %4551 = vmatprep.subr.bf16.mxu0 0
      %4552 = vmatpush1.bf16.msra.mxu0 0
      %4553 = vmatprep.subr.bf16.mxu0 0
      %4554 = vmatpush1.bf16.msra.mxu0 0
      %4555 = vmatprep.subr.bf16.mxu0 0
      %4556 = vmatpush1.bf16.msra.mxu0 0
      %4557 = vmatprep.subr.bf16.mxu0 0
      %4558 = vmatpush1.bf16.msra.mxu0 0
      %4559 = vmatprep.subr.bf16.mxu0 0
      %4560 = vmatpush1.bf16.msra.mxu0 0
      %4561 = vmatprep.subr.bf16.mxu0 0
      %4562 = vmatpush1.bf16.msra.mxu0 0
      %4563 = vmatprep.subr.bf16.mxu0 0
      %4564 = vmatpush1.bf16.msra.mxu0 0
      %4565 = vmatprep.subr.bf16.mxu0 0
      %4566 = vmatpush1.bf16.msra.mxu0 0
      %4567 = vmatprep.subr.bf16.mxu0 0
      %4568 = vmatpush1.bf16.msra.mxu0 0
      %4569 = vmatprep.mubr.bf16.mxu0 0
      %4570 = vmatmul.mubr.bf16.gmra.mrb[0].mxu0 %v4532
      %v4571 = vpop.f32.mrb[0].mxu0
      %v4572 = vadd.f32 0.0, %v4571
      %v4573 = vpop.f32.mrb[0].mxu0
      %v4574 = vpop.f32.mrb[0].mxu0
      %v4575 = vadd.f32 0.0, %v4574
      %v4576 = vpop.f32.mrb[0].mxu0
      %4577 = vmatprep.mubr.bf16.mxu0 0
      %4578 = vmatmul.mubr.bf16.gmra.mrb[0].mxu0 %v4535
      %v4579 = vpop.f32.mrb[0].mxu0
      %v4580 = vadd.f32 0.0, %v4579
      %v4581 = vpop.f32.mrb[0].mxu0
      %v4582 = vpop.f32.mrb[0].mxu0
      %v4583 = vadd.f32 0.0, %v4582
      %v4584 = vpop.f32.mrb[0].mxu0
      %4585 = vdwg.mxu0
      %v4590 = vunpack.c.l.b16 %v4482
      %v4591 = vunpack.c.l.b16 %v4483
      %v4592 = vunpack.c.l.b16 %v4484
      %v4593 = vunpack.c.l.b16 %v4485
      %v4594 = vpack.c.b16 %v4591, %v4590
      %v4595 = vpack.c.b16 %v4593, %v4592
      %v4597 = vsel %vm4001, %v4594, 0
      %v4600 = vsel %vm4001, %v4595, 0
      %4602 = vmatprep.subr.bf16.mxu0 0
      %4603 = vmatpush1.bf16.msra.mxu0 %v4486
      %4604 = vmatprep.subr.bf16.mxu0 0
      %4605 = vmatpush1.bf16.msra.mxu0 %v4487
      %4606 = vmatprep.subr.bf16.mxu0 0
      %4607 = vmatpush1.bf16.msra.mxu0 %v4488
      %4608 = vmatprep.subr.bf16.mxu0 0
      %4609 = vmatpush1.bf16.msra.mxu0 %v4489
      %4610 = vmatprep.subr.bf16.mxu0 0
      %4611 = vmatpush1.bf16.msra.mxu0 %v4490
      %4612 = vmatprep.subr.bf16.mxu0 0
      %4613 = vmatpush1.bf16.msra.mxu0 %v4491
      %4614 = vmatprep.subr.bf16.mxu0 0
      %4615 = vmatpush1.bf16.msra.mxu0 0
      %4616 = vmatprep.subr.bf16.mxu0 0
      %4617 = vmatpush1.bf16.msra.mxu0 0
      %4618 = vmatprep.subr.bf16.mxu0 0
      %4619 = vmatpush1.bf16.msra.mxu0 0
      %4620 = vmatprep.subr.bf16.mxu0 0
      %4621 = vmatpush1.bf16.msra.mxu0 0
      %4622 = vmatprep.subr.bf16.mxu0 0
      %4623 = vmatpush1.bf16.msra.mxu0 0
      %4624 = vmatprep.subr.bf16.mxu0 0
      %4625 = vmatpush1.bf16.msra.mxu0 0
      %4626 = vmatprep.subr.bf16.mxu0 0
      %4627 = vmatpush1.bf16.msra.mxu0 0
      %4628 = vmatprep.subr.bf16.mxu0 0
      %4629 = vmatpush1.bf16.msra.mxu0 0
      %4630 = vmatprep.subr.bf16.mxu0 0
      %4631 = vmatpush1.bf16.msra.mxu0 0
      %4632 = vmatprep.subr.bf16.mxu0 0
      %4633 = vmatpush1.bf16.msra.mxu0 0
      %4634 = vmatprep.mubr.bf16.mxu0 0
      %4635 = vmatmul.mubr.bf16.gmra.mrb[0].mxu0 %v4597
      %v4636 = vpop.f32.mrb[0].mxu0
      %v4637 = vadd.f32 %v4572, %v4636
      %v4638 = vpop.f32.mrb[0].mxu0
      %v4639 = vpop.f32.mrb[0].mxu0
      %v4640 = vadd.f32 %v4575, %v4639
      %v4641 = vpop.f32.mrb[0].mxu0
      %4642 = vmatprep.mubr.bf16.mxu0 0
      %4643 = vmatmul.mubr.bf16.gmra.mrb[0].mxu0 %v4600
      %v4644 = vpop.f32.mrb[0].mxu0
      %v4645 = vadd.f32 %v4580, %v4644
      %v4646 = vpop.f32.mrb[0].mxu0
      %v4647 = vpop.f32.mrb[0].mxu0
      %v4648 = vadd.f32 %v4583, %v4647
      %v4649 = vpop.f32.mrb[0].mxu0
      %4650 = vdwg.mxu0
      %s4651 = scalar_lea.vmem %s17, 32
      %v4652 = vld [vmem:[%s4651] sm:$0xf]
      %v4653 = vld [vmem:[%s4651 + $0x4] sm:$0xf]
      %v4654 = vld [vmem:[%s4651 + $0x8] sm:$0xf]
      %v4655 = vld [vmem:[%s4651 + $0xc] sm:$0xf]
      %v4660 = vunpack.c.l.b16 %v4652
      %v4661 = vunpack.c.l.b16 %v4653
      %v4662 = vunpack.c.l.b16 %v4654
      %v4663 = vunpack.c.l.b16 %v4655
      %v4664 = vpack.c.b16 %v4661, %v4660
      %v4665 = vpack.c.b16 %v4663, %v4662
      %4666 = vrot.lane.b32.xlu0 %v4486, 120
      %v4667 = vpop.permute.xlu0 %4666
      %4668 = vrot.lane.b32.xlu0 %v4487, 120
      %v4669 = vpop.permute.xlu0 %4668
      %4670 = vrot.lane.b32.xlu0 %v4488, 120
      %v4671 = vpop.permute.xlu0 %4670
      %4672 = vrot.lane.b32.xlu0 %v4489, 120
      %v4673 = vpop.permute.xlu0 %4672
      %4674 = vrot.lane.b32.xlu0 %v4490, 120
      %v4675 = vpop.permute.xlu0 %4674
      %4676 = vrot.lane.b32.xlu0 %v4491, 120
      %v4677 = vpop.permute.xlu0 %4676
      %v4685 = vsel %vm4001, %v4664, 0
      %v4688 = vsel %vm4001, %v4665, 0
      %4690 = vmatprep.subr.bf16.mxu0 0
      %4691 = vmatpush1.bf16.msra.mxu0 %v4667
      %4692 = vmatprep.subr.bf16.mxu0 0
      %4693 = vmatpush1.bf16.msra.mxu0 %v4669
      %4694 = vmatprep.subr.bf16.mxu0 0
      %4695 = vmatpush1.bf16.msra.mxu0 %v4671
      %4696 = vmatprep.subr.bf16.mxu0 0
      %4697 = vmatpush1.bf16.msra.mxu0 %v4673
      %4698 = vmatprep.subr.bf16.mxu0 0
      %4699 = vmatpush1.bf16.msra.mxu0 %v4675
      %4700 = vmatprep.subr.bf16.mxu0 0
      %4701 = vmatpush1.bf16.msra.mxu0 %v4677
      %4702 = vmatprep.subr.bf16.mxu0 0
      %4703 = vmatpush1.bf16.msra.mxu0 0
      %4704 = vmatprep.subr.bf16.mxu0 0
      %4705 = vmatpush1.bf16.msra.mxu0 0
      %4706 = vmatprep.subr.bf16.mxu0 0
      %4707 = vmatpush1.bf16.msra.mxu0 0
      %4708 = vmatprep.subr.bf16.mxu0 0
      %4709 = vmatpush1.bf16.msra.mxu0 0
      %4710 = vmatprep.subr.bf16.mxu0 0
      %4711 = vmatpush1.bf16.msra.mxu0 0
      %4712 = vmatprep.subr.bf16.mxu0 0
      %4713 = vmatpush1.bf16.msra.mxu0 0
      %4714 = vmatprep.subr.bf16.mxu0 0
      %4715 = vmatpush1.bf16.msra.mxu0 0
      %4716 = vmatprep.subr.bf16.mxu0 0
      %4717 = vmatpush1.bf16.msra.mxu0 0
      %4718 = vmatprep.subr.bf16.mxu0 0
      %4719 = vmatpush1.bf16.msra.mxu0 0
      %4720 = vmatprep.subr.bf16.mxu0 0
      %4721 = vmatpush1.bf16.msra.mxu0 0
      %4722 = vmatprep.mubr.bf16.mxu0 0
      %4723 = vmatmul.mubr.bf16.gmra.mrb[0].mxu0 %v4685
      %v4724 = vpop.f32.mrb[0].mxu0
      %v4725 = vadd.f32 0.0, %v4724
      %v4726 = vpop.f32.mrb[0].mxu0
      %v4727 = vpop.f32.mrb[0].mxu0
      %v4728 = vadd.f32 0.0, %v4727
      %v4729 = vpop.f32.mrb[0].mxu0
      %4730 = vmatprep.mubr.bf16.mxu0 0
      %4731 = vmatmul.mubr.bf16.gmra.mrb[0].mxu0 %v4688
      %v4732 = vpop.f32.mrb[0].mxu0
      %v4733 = vadd.f32 0.0, %v4732
      %v4734 = vpop.f32.mrb[0].mxu0
      %v4735 = vpop.f32.mrb[0].mxu0
      %v4736 = vadd.f32 0.0, %v4735
      %v4737 = vpop.f32.mrb[0].mxu0
      %4738 = vdwg.mxu0
      %v4739 = vadd.f32 %v4637, %v4725
      %v4740 = vadd.f32 %v4640, %v4728
      %v4741 = vadd.f32 %v4645, %v4733
      %v4742 = vadd.f32 %v4648, %v4736
      %v4743 = vld [vmem:[%s33] sm:$0xff]
      %v4744 = vld [vmem:[%s33 + $0x8] sm:$0xff]
      %v4745 = vld [vmem:[%s33 + $0x10] sm:$0xff]
      %v4746 = vld [vmem:[%s33 + $0x18] sm:$0xff]
      %4748 = vset.pattern.permute.xlu0 0
      %4749 = vperm.xlu0 %4748, %v4743
      %v4750 = vpop.permute.xlu0 %4749
      %4753 = vset.pattern.permute.xlu0 0
      %4754 = vperm.xlu0 %4753, %v4744
      %v4755 = vpop.permute.xlu0 %4754
      %4758 = vset.pattern.permute.xlu0 0
      %4759 = vperm.xlu0 %4758, %v4745
      %v4760 = vpop.permute.xlu0 %4759
      %4763 = vset.pattern.permute.xlu0 0
      %4764 = vperm.xlu0 %4763, %v4746
      %v4765 = vpop.permute.xlu0 %4764
      %v4767 = vmul.f32 %v4739, %v4750
      %v4768 = vmul.f32 %v4740, %v4755
      %v4769 = vmul.f32 %v4741, %v4760
      %v4770 = vmul.f32 %v4742, %v4765
      %v4771 = vld [vmem:[%s49] sm:$0xff]
      %v4772 = vld [vmem:[%s49 + $0x8] sm:$0xff]
      %v4773 = vld [vmem:[%s49 + $0x10] sm:$0xff]
      %v4774 = vld [vmem:[%s49 + $0x18] sm:$0xff]
      %4776 = vset.pattern.permute.xlu0 0
      %4777 = vperm.xlu0 %4776, %v4771
      %v4778 = vpop.permute.xlu0 %4777
      %4781 = vset.pattern.permute.xlu0 0
      %4782 = vperm.xlu0 %4781, %v4772
      %v4783 = vpop.permute.xlu0 %4782
      %4786 = vset.pattern.permute.xlu0 0
      %4787 = vperm.xlu0 %4786, %v4773
      %v4788 = vpop.permute.xlu0 %4787
      %4791 = vset.pattern.permute.xlu0 0
      %4792 = vperm.xlu0 %4791, %v4774
      %v4793 = vpop.permute.xlu0 %4792
      %v4795 = vadd.f32 %v4767, %v4778
      %v4796 = vadd.f32 %v4768, %v4783
      %v4797 = vadd.f32 %v4769, %v4788
      %v4798 = vadd.f32 %v4770, %v4793
      %v4799 = vmax.f32 %v4795, 0.0
      %v4800 = vmax.f32 %v4796, 0.0
      %v4801 = vmax.f32 %v4797, 0.0
      %v4802 = vmax.f32 %v4798, 0.0
      %v4804 = vlaneseq
      %v4805 = vshrl.u32 %v4804, 7
      %v4806 = vsub.s32 0, %v4805
      %v4807 = vrot.slane %v4481, %v4806
      %v4809 = vmul.f32 %v4799, %v4807
      %v4810 = vmul.f32 %v4800, %v4807
      %v4811 = vmul.f32 %v4801, %v4807
      %v4812 = vmul.f32 %v4802, %v4807
      %v4813 = vpack.c.bf16 %v4810, %v4809
      %v4814 = vpack.c.bf16 %v4812, %v4811
      %4815 = vst.msk [vmem:[#allocation9] sm:$0xff] %vm4438, 0
      %4816 = vst.msk [vmem:[#allocation9 + $0x8] sm:$0xff] %vm4438, 0
      %4817 = vst.msk [vmem:[#allocation9 + $0x10] sm:$0xff] %vm4438, 0
      %4818 = vst.msk [vmem:[#allocation9 + $0x18] sm:$0xff] %vm4438, 0
      %4819 = vst.msk [vmem:[#allocation9 + $0x20] sm:$0xff] %vm4438, 0
      %4820 = vst.msk [vmem:[#allocation9 + $0x28] sm:$0xff] %vm4438, 0
      %4821 = vst.msk [vmem:[#allocation9] sm:$0xff] %vm4445, 0
      %4822 = vst.msk [vmem:[#allocation9 + $0x8] sm:$0xff] %vm4445, 0
      %4823 = vst.msk [vmem:[#allocation9 + $0x10] sm:$0xff] %vm4445, 0
      %4824 = vst.msk [vmem:[#allocation9 + $0x18] sm:$0xff] %vm4445, 0
      %4825 = vst.msk [vmem:[#allocation9 + $0x20] sm:$0xff] %vm4445, 0
      %4826 = vst.msk [vmem:[#allocation9 + $0x28] sm:$0xff] %vm4445, 0
      %4829 = vrot.lane.b32.xlu0 %v4813, 5
      %v4830 = vpop.permute.xlu0 %4829
      %4831 = vrot.lane.b32.xlu0 %v4814, 5
      %v4832 = vpop.permute.xlu0 %4831
      %4835 = vst.msk [vmem:[#allocation9] sm:$0xff] %vm4460, %v4830
      %4836 = vst.msk [vmem:[#allocation9 + $0x8] sm:$0xff] %vm4460, %v4832
      %4837 = vrot.lane.b32.xlu0 %v4813, 4
      %v4838 = vpop.permute.xlu0 %4837
      %4839 = vrot.lane.b32.xlu0 %v4814, 4
      %v4840 = vpop.permute.xlu0 %4839
      %4843 = vst.msk [vmem:[#allocation9 + $0x10] sm:$0xff] %vm4469, %v4838
      %4844 = vst.msk [vmem:[#allocation9 + $0x18] sm:$0xff] %vm4469, %v4840
      %4845 = vrot.lane.b32.xlu0 %v4813, 3
      %v4846 = vpop.permute.xlu0 %4845
      %4847 = vrot.lane.b32.xlu0 %v4814, 3
      %v4848 = vpop.permute.xlu0 %4847
      %4851 = vst.msk [vmem:[#allocation9 + $0x20] sm:$0xff] %vm4478, %v4846
      %4852 = vst.msk [vmem:[#allocation9 + $0x28] sm:$0xff] %vm4478, %v4848
      %v4853 = vld [vmem:[%s19] sm:$0xf]
      %v4854 = vld [vmem:[%s19 + $0x4] sm:$0xf]
      %v4855 = vld [vmem:[%s19 + $0x8] sm:$0xf]
      %v4856 = vld [vmem:[%s19 + $0xc] sm:$0xf]
      %v4857 = vld [vmem:[#allocation9] sm:$0xff]
      %v4858 = vld [vmem:[#allocation9 + $0x8] sm:$0xff]
      %v4859 = vld [vmem:[#allocation9 + $0x10] sm:$0xff]
      %v4860 = vld [vmem:[#allocation9 + $0x18] sm:$0xff]
      %v4861 = vld [vmem:[#allocation9 + $0x20] sm:$0xff]
      %v4862 = vld [vmem:[#allocation9 + $0x28] sm:$0xff]
      %s4863 = scalar_lea.vmem %s19, 16
      %v4864 = vld [vmem:[%s4863] sm:$0xf]
      %v4865 = vld [vmem:[%s4863 + $0x4] sm:$0xf]
      %v4866 = vld [vmem:[%s4863 + $0x8] sm:$0xf]
      %v4867 = vld [vmem:[%s4863 + $0xc] sm:$0xf]
      %v4872 = vunpack.c.l.b16 %v4864
      %v4873 = vunpack.c.l.b16 %v4865
      %v4874 = vunpack.c.l.b16 %v4866
      %v4875 = vunpack.c.l.b16 %v4867
      %v4876 = vpack.c.b16 %v4873, %v4872
      %v4877 = vpack.c.b16 %v4875, %v4874
      %4884 = vrot.lane.b32.xlu0 %v4857, 124
      %v4885 = vpop.permute.xlu0 %4884
      %4886 = vrot.lane.b32.xlu0 %v4858, 124
      %v4887 = vpop.permute.xlu0 %4886
      %4888 = vrot.lane.b32.xlu0 %v4859, 124
      %v4889 = vpop.permute.xlu0 %4888
      %4890 = vrot.lane.b32.xlu0 %v4860, 124
      %v4891 = vpop.permute.xlu0 %4890
      %4892 = vrot.lane.b32.xlu0 %v4861, 124
      %v4893 = vpop.permute.xlu0 %4892
      %4894 = vrot.lane.b32.xlu0 %v4862, 124
      %v4895 = vpop.permute.xlu0 %4894
      %v4903 = vsel %vm4001, %v4876, 0
      %v4906 = vsel %vm4001, %v4877, 0
      %4908 = vmatprep.subr.bf16.mxu0 0
      %4909 = vmatpush1.bf16.msra.mxu0 %v4885
      %4910 = vmatprep.subr.bf16.mxu0 0
      %4911 = vmatpush1.bf16.msra.mxu0 %v4887
      %4912 = vmatprep.subr.bf16.mxu0 0
      %4913 = vmatpush1.bf16.msra.mxu0 %v4889
      %4914 = vmatprep.subr.bf16.mxu0 0
      %4915 = vmatpush1.bf16.msra.mxu0 %v4891
      %4916 = vmatprep.subr.bf16.mxu0 0
      %4917 = vmatpush1.bf16.msra.mxu0 %v4893
      %4918 = vmatprep.subr.bf16.mxu0 0
      %4919 = vmatpush1.bf16.msra.mxu0 %v4895
      %4920 = vmatprep.subr.bf16.mxu0 0
      %4921 = vmatpush1.bf16.msra.mxu0 0
      %4922 = vmatprep.subr.bf16.mxu0 0
      %4923 = vmatpush1.bf16.msra.mxu0 0
      %4924 = vmatprep.subr.bf16.mxu0 0
      %4925 = vmatpush1.bf16.msra.mxu0 0
      %4926 = vmatprep.subr.bf16.mxu0 0
      %4927 = vmatpush1.bf16.msra.mxu0 0
      %4928 = vmatprep.subr.bf16.mxu0 0
      %4929 = vmatpush1.bf16.msra.mxu0 0
      %4930 = vmatprep.subr.bf16.mxu0 0
      %4931 = vmatpush1.bf16.msra.mxu0 0
      %4932 = vmatprep.subr.bf16.mxu0 0
      %4933 = vmatpush1.bf16.msra.mxu0 0
      %4934 = vmatprep.subr.bf16.mxu0 0
      %4935 = vmatpush1.bf16.msra.mxu0 0
      %4936 = vmatprep.subr.bf16.mxu0 0
      %4937 = vmatpush1.bf16.msra.mxu0 0
      %4938 = vmatprep.subr.bf16.mxu0 0
      %4939 = vmatpush1.bf16.msra.mxu0 0
      %4940 = vmatprep.mubr.bf16.mxu0 0
      %4941 = vmatmul.mubr.bf16.gmra.mrb[0].mxu0 %v4903
      %v4942 = vpop.f32.mrb[0].mxu0
      %v4943 = vadd.f32 0.0, %v4942
      %v4944 = vpop.f32.mrb[0].mxu0
      %v4945 = vpop.f32.mrb[0].mxu0
      %v4946 = vadd.f32 0.0, %v4945
      %v4947 = vpop.f32.mrb[0].mxu0
      %4948 = vmatprep.mubr.bf16.mxu0 0
      %4949 = vmatmul.mubr.bf16.gmra.mrb[0].mxu0 %v4906
      %v4950 = vpop.f32.mrb[0].mxu0
      %v4951 = vadd.f32 0.0, %v4950
      %v4952 = vpop.f32.mrb[0].mxu0
      %v4953 = vpop.f32.mrb[0].mxu0
      %v4954 = vadd.f32 0.0, %v4953
      %v4955 = vpop.f32.mrb[0].mxu0
      %4956 = vdwg.mxu0
      %v4961 = vunpack.c.l.b16 %v4853
      %v4962 = vunpack.c.l.b16 %v4854
      %v4963 = vunpack.c.l.b16 %v4855
      %v4964 = vunpack.c.l.b16 %v4856
      %v4965 = vpack.c.b16 %v4962, %v4961
      %v4966 = vpack.c.b16 %v4964, %v4963
      %v4968 = vsel %vm4001, %v4965, 0
      %v4971 = vsel %vm4001, %v4966, 0
      %4973 = vmatprep.subr.bf16.mxu0 0
      %4974 = vmatpush1.bf16.msra.mxu0 %v4857
      %4975 = vmatprep.subr.bf16.mxu0 0
      %4976 = vmatpush1.bf16.msra.mxu0 %v4858
      %4977 = vmatprep.subr.bf16.mxu0 0
      %4978 = vmatpush1.bf16.msra.mxu0 %v4859
      %4979 = vmatprep.subr.bf16.mxu0 0
      %4980 = vmatpush1.bf16.msra.mxu0 %v4860
      %4981 = vmatprep.subr.bf16.mxu0 0
      %4982 = vmatpush1.bf16.msra.mxu0 %v4861
      %4983 = vmatprep.subr.bf16.mxu0 0
      %4984 = vmatpush1.bf16.msra.mxu0 %v4862
      %4985 = vmatprep.subr.bf16.mxu0 0
      %4986 = vmatpush1.bf16.msra.mxu0 0
      %4987 = vmatprep.subr.bf16.mxu0 0
      %4988 = vmatpush1.bf16.msra.mxu0 0
      %4989 = vmatprep.subr.bf16.mxu0 0
      %4990 = vmatpush1.bf16.msra.mxu0 0
      %4991 = vmatprep.subr.bf16.mxu0 0
      %4992 = vmatpush1.bf16.msra.mxu0 0
      %4993 = vmatprep.subr.bf16.mxu0 0
      %4994 = vmatpush1.bf16.msra.mxu0 0
      %4995 = vmatprep.subr.bf16.mxu0 0
      %4996 = vmatpush1.bf16.msra.mxu0 0
      %4997 = vmatprep.subr.bf16.mxu0 0
      %4998 = vmatpush1.bf16.msra.mxu0 0
      %4999 = vmatprep.subr.bf16.mxu0 0
      %5000 = vmatpush1.bf16.msra.mxu0 0
      %5001 = vmatprep.subr.bf16.mxu0 0
      %5002 = vmatpush1.bf16.msra.mxu0 0
      %5003 = vmatprep.subr.bf16.mxu0 0
      %5004 = vmatpush1.bf16.msra.mxu0 0
      %5005 = vmatprep.mubr.bf16.mxu0 0
      %5006 = vmatmul.mubr.bf16.gmra.mrb[0].mxu0 %v4968
      %v5007 = vpop.f32.mrb[0].mxu0
      %v5008 = vadd.f32 %v4943, %v5007
      %v5009 = vpop.f32.mrb[0].mxu0
      %v5010 = vpop.f32.mrb[0].mxu0
      %v5011 = vadd.f32 %v4946, %v5010
      %v5012 = vpop.f32.mrb[0].mxu0
      %5013 = vmatprep.mubr.bf16.mxu0 0
      %5014 = vmatmul.mubr.bf16.gmra.mrb[0].mxu0 %v4971
      %v5015 = vpop.f32.mrb[0].mxu0
      %v5016 = vadd.f32 %v4951, %v5015
      %v5017 = vpop.f32.mrb[0].mxu0
      %v5018 = vpop.f32.mrb[0].mxu0
      %v5019 = vadd.f32 %v4954, %v5018
      %v5020 = vpop.f32.mrb[0].mxu0
      %5021 = vdwg.mxu0
      %s5022 = scalar_lea.vmem %s19, 32
      %v5023 = vld [vmem:[%s5022] sm:$0xf]
      %v5024 = vld [vmem:[%s5022 + $0x4] sm:$0xf]
      %v5025 = vld [vmem:[%s5022 + $0x8] sm:$0xf]
      %v5026 = vld [vmem:[%s5022 + $0xc] sm:$0xf]
      %v5031 = vunpack.c.l.b16 %v5023
      %v5032 = vunpack.c.l.b16 %v5024
      %v5033 = vunpack.c.l.b16 %v5025
      %v5034 = vunpack.c.l.b16 %v5026
      %v5035 = vpack.c.b16 %v5032, %v5031
      %v5036 = vpack.c.b16 %v5034, %v5033
      %5037 = vrot.lane.b32.xlu0 %v4857, 120
      %v5038 = vpop.permute.xlu0 %5037
      %5039 = vrot.lane.b32.xlu0 %v4858, 120
      %v5040 = vpop.permute.xlu0 %5039
      %5041 = vrot.lane.b32.xlu0 %v4859, 120
      %v5042 = vpop.permute.xlu0 %5041
      %5043 = vrot.lane.b32.xlu0 %v4860, 120
      %v5044 = vpop.permute.xlu0 %5043
      %5045 = vrot.lane.b32.xlu0 %v4861, 120
      %v5046 = vpop.permute.xlu0 %5045
      %5047 = vrot.lane.b32.xlu0 %v4862, 120
      %v5048 = vpop.permute.xlu0 %5047
      %v5056 = vsel %vm4001, %v5035, 0
      %v5059 = vsel %vm4001, %v5036, 0
      %5061 = vmatprep.subr.bf16.mxu0 0
      %5062 = vmatpush1.bf16.msra.mxu0 %v5038
      %5063 = vmatprep.subr.bf16.mxu0 0
      %5064 = vmatpush1.bf16.msra.mxu0 %v5040
      %5065 = vmatprep.subr.bf16.mxu0 0
      %5066 = vmatpush1.bf16.msra.mxu0 %v5042
      %5067 = vmatprep.subr.bf16.mxu0 0
      %5068 = vmatpush1.bf16.msra.mxu0 %v5044
      %5069 = vmatprep.subr.bf16.mxu0 0
      %5070 = vmatpush1.bf16.msra.mxu0 %v5046
      %5071 = vmatprep.subr.bf16.mxu0 0
      %5072 = vmatpush1.bf16.msra.mxu0 %v5048
      %5073 = vmatprep.subr.bf16.mxu0 0
      %5074 = vmatpush1.bf16.msra.mxu0 0
      %5075 = vmatprep.subr.bf16.mxu0 0
      %5076 = vmatpush1.bf16.msra.mxu0 0
      %5077 = vmatprep.subr.bf16.mxu0 0
      %5078 = vmatpush1.bf16.msra.mxu0 0
      %5079 = vmatprep.subr.bf16.mxu0 0
      %5080 = vmatpush1.bf16.msra.mxu0 0
      %5081 = vmatprep.subr.bf16.mxu0 0
      %5082 = vmatpush1.bf16.msra.mxu0 0
      %5083 = vmatprep.subr.bf16.mxu0 0
      %5084 = vmatpush1.bf16.msra.mxu0 0
      %5085 = vmatprep.subr.bf16.mxu0 0
      %5086 = vmatpush1.bf16.msra.mxu0 0
      %5087 = vmatprep.subr.bf16.mxu0 0
      %5088 = vmatpush1.bf16.msra.mxu0 0
      %5089 = vmatprep.subr.bf16.mxu0 0
      %5090 = vmatpush1.bf16.msra.mxu0 0
      %5091 = vmatprep.subr.bf16.mxu0 0
      %5092 = vmatpush1.bf16.msra.mxu0 0
      %5093 = vmatprep.mubr.bf16.mxu0 0
      %5094 = vmatmul.mubr.bf16.gmra.mrb[0].mxu0 %v5056
      %v5095 = vpop.f32.mrb[0].mxu0
      %v5096 = vadd.f32 0.0, %v5095
      %v5097 = vpop.f32.mrb[0].mxu0
      %v5098 = vpop.f32.mrb[0].mxu0
      %v5099 = vadd.f32 0.0, %v5098
      %v5100 = vpop.f32.mrb[0].mxu0
      %5101 = vmatprep.mubr.bf16.mxu0 0
      %5102 = vmatmul.mubr.bf16.gmra.mrb[0].mxu0 %v5059
      %v5103 = vpop.f32.mrb[0].mxu0
      %v5104 = vadd.f32 0.0, %v5103
      %v5105 = vpop.f32.mrb[0].mxu0
      %v5106 = vpop.f32.mrb[0].mxu0
      %v5107 = vadd.f32 0.0, %v5106
      %v5108 = vpop.f32.mrb[0].mxu0
      %5109 = vdwg.mxu0
      %v5110 = vadd.f32 %v5008, %v5096
      %v5111 = vadd.f32 %v5011, %v5099
      %v5112 = vadd.f32 %v5016, %v5104
      %v5113 = vadd.f32 %v5019, %v5107
      %v5114 = vld [vmem:[%s35] sm:$0xff]
      %v5115 = vld [vmem:[%s35 + $0x8] sm:$0xff]
      %v5116 = vld [vmem:[%s35 + $0x10] sm:$0xff]
      %v5117 = vld [vmem:[%s35 + $0x18] sm:$0xff]
      %5119 = vset.pattern.permute.xlu0 0
      %5120 = vperm.xlu0 %5119, %v5114
      %v5121 = vpop.permute.xlu0 %5120
      %5124 = vset.pattern.permute.xlu0 0
      %5125 = vperm.xlu0 %5124, %v5115
      %v5126 = vpop.permute.xlu0 %5125
      %5129 = vset.pattern.permute.xlu0 0
      %5130 = vperm.xlu0 %5129, %v5116
      %v5131 = vpop.permute.xlu0 %5130
      %5134 = vset.pattern.permute.xlu0 0
      %5135 = vperm.xlu0 %5134, %v5117
      %v5136 = vpop.permute.xlu0 %5135
      %v5138 = vmul.f32 %v5110, %v5121
      %v5139 = vmul.f32 %v5111, %v5126
      %v5140 = vmul.f32 %v5112, %v5131
      %v5141 = vmul.f32 %v5113, %v5136
      %v5142 = vld [vmem:[%s51] sm:$0xff]
      %v5143 = vld [vmem:[%s51 + $0x8] sm:$0xff]
      %v5144 = vld [vmem:[%s51 + $0x10] sm:$0xff]
      %v5145 = vld [vmem:[%s51 + $0x18] sm:$0xff]
      %5147 = vset.pattern.permute.xlu0 0
      %5148 = vperm.xlu0 %5147, %v5142
      %v5149 = vpop.permute.xlu0 %5148
      %5152 = vset.pattern.permute.xlu0 0
      %5153 = vperm.xlu0 %5152, %v5143
      %v5154 = vpop.permute.xlu0 %5153
      %5157 = vset.pattern.permute.xlu0 0
      %5158 = vperm.xlu0 %5157, %v5144
      %v5159 = vpop.permute.xlu0 %5158
      %5162 = vset.pattern.permute.xlu0 0
      %5163 = vperm.xlu0 %5162, %v5145
      %v5164 = vpop.permute.xlu0 %5163
      %v5166 = vadd.f32 %v5138, %v5149
      %v5167 = vadd.f32 %v5139, %v5154
      %v5168 = vadd.f32 %v5140, %v5159
      %v5169 = vadd.f32 %v5141, %v5164
      %v5170 = vmax.f32 %v5166, 0.0
      %v5171 = vmax.f32 %v5167, 0.0
      %v5172 = vmax.f32 %v5168, 0.0
      %v5173 = vmax.f32 %v5169, 0.0
      %vm5174 = vcmask 15360
      %5175 = vst.msk [vmem:[%s1098] sm:$0xff] %vm5174, %v5170
      %5176 = vst.msk [vmem:[%s1098 + $0x8] sm:$0xff] %vm5174, %v5171
      %5177 = vst.msk [vmem:[%s1098 + $0x10] sm:$0xff] %vm5174, %v5172
      %5178 = vst.msk [vmem:[%s1098 + $0x18] sm:$0xff] %vm5174, %v5173
      %5183 = vrot.lane.b32.xlu0 %v5170, 126
      %v5184 = vpop.permute.xlu0 %5183
      %5185 = vrot.lane.b32.xlu0 %v5171, 126
      %v5186 = vpop.permute.xlu0 %5185
      %5187 = vrot.lane.b32.xlu0 %v5172, 126
      %v5188 = vpop.permute.xlu0 %5187
      %5189 = vrot.lane.b32.xlu0 %v5173, 126
      %v5190 = vpop.permute.xlu0 %5189
      %vm5195 = vcmask 31760
      %5196 = vst.msk [vmem:[%s1098] sm:$0xff] %vm5195, %v5184
      %5197 = vst.msk [vmem:[%s1098 + $0x8] sm:$0xff] %vm5195, %v5186
      %5198 = vst.msk [vmem:[%s1098 + $0x10] sm:$0xff] %vm5195, %v5188
      %5199 = vst.msk [vmem:[%s1098 + $0x18] sm:$0xff] %vm5195, %v5190
      %p5200 = scmp.lt.s32.totalorder %s84, 1
      %s5201 = scalar_select %p5200, %s84, 1
      %s5202 = smul.addr %s5201, 4
      %s5203 = smul.addr %s5202, 8
      %s5204 = scalar_lea.vmem %s73, %s5203
      // Predicated region
      $region165: #{_lambda_.1} parent=163 // pred_check
        %p5205 = pneg %p863
      $region166: #{_lambda_.1} parent=163 // pred_check_branch
        %5207 = sbr.rel (%p5205) target = $region168
      $region167: #{_lambda_.1} parent=163 // pred_region
        _
      $region168: #{_lambda_.1} parent=163 // pred_fallthru
        _
    $region164: #{_lambda_.1} parent=5 // pred_fallthru
      _
    %p5208 = scmp.le.s32.totalorder 2, %s79
    // Predicated region
    $region169: #{_lambda_.1} parent=5 // pred_check
      %p5209 = pneg %p5208
    $region170: #{_lambda_.1} parent=5 // pred_check_branch
      %5211 = sbr.rel (%p5209) target = $region172
    $region171: #{_lambda_.1} parent=5 // pred_region
      %s5212 = ssub.s32 %s79, 2
      // Predicated region
      $region173: #{_lambda_.1} parent=171 // pred_check
        %p5213 = pneg %p869
      $region174: #{_lambda_.1} parent=171 // pred_check_branch
        %5215 = sbr.rel (%p5213) target = $region176
      $region175: #{_lambda_.1} parent=171 // pred_region
        %p5216 = scmp.lt.s32.totalorder %s85, 1
        %s5217 = scalar_select %p5216, %s85, 1
        %s5218 = smul.addr %s5217, 4
        %s5219 = smul.addr %s5218, 8
        %s5220 = scalar_lea.vmem %s73, %s5219
      $region176: #{_lambda_.1} parent=171 // pred_fallthru
        _
    $region172: #{_lambda_.1} parent=5 // pred_fallthru
      _
  $region6: #{_lambda_.1} parent=0 // loop_footer
    %s83 = sadd.s32 1, %s79
  $region7: #{_lambda_.1} parent=0 // loop_footer_branch
    %78 = sbr.rel target = $region3
  $region8: #{_lambda_.1} parent=0 // loop_exit
    _

</llo_original>
